<compile_context>
chip_gen: v7x
topology: tpu7x:2x2x1
jax: 0.10.0
libtpu: 0.0.40
codegen_flags: <defaults>
</compile_context>

<pallas_src>
import jax
import jax.numpy as jnp
from jax.experimental import pallas as pl
from jax.experimental.pallas import tpu as pltpu
import numpy as np


def _round_up(x, m):
    return ((x + m - 1) // m) * m


# ----------------------------------------------------------------------------
# Pallas kernel: one grid step = (document b, block of TI row-spans) x all columns.
# ----------------------------------------------------------------------------
def pairwise_score_kernel(
    gi_ref,    # (1, TI, Dp)  f32   row-span embeddings of this tile
    gj_ref,    # (1, SJ, Dp)  f32   all column-span embeddings of document b
    mi_ref,    # (1, TI, 1)   f32   mention scores of the row spans
    mj_ref,    # (1, SJ, 1)   f32   mention scores of the column spans
    w1a_ref, w1b_ref, w1c_ref,      # (Dp, Hp) bf16  -- W1 split over [g_i | g_j | g_i*g_j]
    b1_ref,                         # (1, Hp)  f32
    w2_ref,                         # (Hp, Hp) bf16
    b2_ref,                         # (1, Hp)  f32
    w3_ref,                         # (1, Hp)  f32   final projection as a row vector
    b3_ref,                         # (1, 1)   f32
    out_ref,                        # (1, 1, TI*SJ, 1) f32  flattened pair scores, r = i*SJ + j
):
    ti = gi_ref.shape[1]
    sj = gj_ref.shape[1]
    dp = gi_ref.shape[2]
    hp = w2_ref.shape[1]

    gi = gi_ref[0]            # (TI, Dp) f32
    gj = gj_ref[0]            # (SJ, Dp) f32

    # ---- layer 1, decomposed:  z1[i,j] = g_i@W1a + g_j@W1b + (g_i*g_j)@W1c + b1
    a_i = jnp.dot(gi.astype(jnp.bfloat16), w1a_ref[...],
                  preferred_element_type=jnp.float32)            # (TI, Hp)
    b_j = jnp.dot(gj.astype(jnp.bfloat16), w1b_ref[...],
                  preferred_element_type=jnp.float32)            # (SJ, Hp)

    # Replicate to the flattened pair axis r = i*SJ + j (j fastest).
    gi_rep = jnp.concatenate(
        [jnp.broadcast_to(gi[i:i + 1, :], (sj, dp)) for i in range(ti)], axis=0)   # (M, Dp)
    gj_rep = jnp.concatenate([gj] * ti, axis=0)                                     # (M, Dp)
    a_rep = jnp.concatenate(
        [jnp.broadcast_to(a_i[i:i + 1, :], (sj, hp)) for i in range(ti)], axis=0)   # (M, Hp)
    b_rep = jnp.concatenate([b_j] * ti, axis=0)                                     # (M, Hp)
    mi_rep = jnp.concatenate(
        [jnp.broadcast_to(mi_ref[0, i:i + 1, :], (sj, 1)) for i in range(ti)], axis=0)  # (M, 1)
    mj_rep = jnp.concatenate([mj_ref[0]] * ti, axis=0)                                  # (M, 1)

    prod = gi_rep * gj_rep                                       # (M, Dp) f32 (VPU)
    c_ij = jnp.dot(prod.astype(jnp.bfloat16), w1c_ref[...],
                   preferred_element_type=jnp.float32)           # (M, Hp)

    h1 = jnp.maximum(c_ij + a_rep + b_rep + b1_ref[...], 0.0)    # (M, Hp)
    # TODO(synk): Dropout(p=0.2) is identity at inference; training-mode dropout not implemented.
    h2 = jnp.maximum(
        jnp.dot(h1.astype(jnp.bfloat16), w2_ref[...],
                preferred_element_type=jnp.float32) + b2_ref[...], 0.0)   # (M, Hp)

    # ---- final Linear(H, 1) as VPU multiply + lane reduction (no N=1 MXU pass)
    s = jnp.sum(h2 * w3_ref[...], axis=-1, keepdims=True) + b3_ref[...]   # (M, 1)

    # ---- extended pairwise score = mean(mention_i, mention_j, pair_ij)
    out_ref[0, 0] = (mi_rep + mj_rep + s) * (1.0 / 3.0)


# ----------------------------------------------------------------------------
# Wrapper: host-side zero-padding to TPU-friendly shapes + pallas_call.
# ----------------------------------------------------------------------------
def pairwise_score(span_embeds, mention_scores, params, *, block_i=8):
    """
    span_embeds    : (B, S, E) f32  -- batch_document_span_embeds
    mention_scores : (B, S, 1) f32
    params         : w1 (3E, H), b1 (H,), w2 (H, H), b2 (H,), w3 (H, 1), b3 (1,)
                     (weights stored input-major; applied as x @ W + b)
    returns        : (B, S, S, 1) f32 pairwise extended scores
    """
    B, S, E = span_embeds.shape
    H = params["w2"].shape[0]
    f32 = jnp.float32

    TI = block_i
    assert TI % 8 == 0
    SI = _round_up(S, TI)        # row axis, tiled by TI
    SJ = _round_up(S, 128)       # column axis, processed whole per step
    Ep = _round_up(E, 128)       # MXU K dim
    Hp = _round_up(H, 128)       # 150 -> 256: no masked MXU lanes on the hidden matmuls
    M = TI * SJ                  # pairs per grid step

    def pad_to(a, shape):
        return jnp.pad(a, [(0, t - s) for s, t in zip(a.shape, shape)])

    g = span_embeds.astype(f32)
    gi = pad_to(g, (B, SI, Ep))
    gj = pad_to(g, (B, SJ, Ep))

    m = mention_scores.astype(f32).reshape(B, S)
    mi = pad_to(m, (B, SI)).reshape(B, SI, 1)
    mj = pad_to(m, (B, SJ)).reshape(B, SJ, 1)

    # Pre-pad weights once on the host; zero padding is numerically exact.
    w1 = params["w1"].astype(f32)
    w1a = pad_to(w1[:E], (Ep, Hp)).astype(jnp.bfloat16)
    w1b = pad_to(w1[E:2 * E], (Ep, Hp)).astype(jnp.bfloat16)
    w1c = pad_to(w1[2 * E:], (Ep, Hp)).astype(jnp.bfloat16)
    b1 = pad_to(params["b1"].astype(f32).reshape(1, H), (1, Hp))
    w2 = pad_to(params["w2"].astype(f32), (Hp, Hp)).astype(jnp.bfloat16)
    b2 = pad_to(params["b2"].astype(f32).reshape(1, H), (1, Hp))
    w3 = pad_to(params["w3"].astype(f32).reshape(1, H), (1, Hp))   # stays f32 (VPU reduce)
    b3 = params["b3"].astype(f32).reshape(1, 1)

    n_tiles = SI // TI
    grid = (B, n_tiles)

    in_specs = [
        pl.BlockSpec((1, TI, Ep), lambda b, i: (b, i, 0)),      # gi: row block
        pl.BlockSpec((1, SJ, Ep), lambda b, i: (b, 0, 0)),      # gj: all columns
        pl.BlockSpec((1, TI, 1), lambda b, i: (b, i, 0)),       # mention scores, rows
        pl.BlockSpec((1, SJ, 1), lambda b, i: (b, 0, 0)),       # mention scores, cols
        pl.BlockSpec((Ep, Hp), lambda b, i: (0, 0)),            # w1a
        pl.BlockSpec((Ep, Hp), lambda b, i: (0, 0)),            # w1b
        pl.BlockSpec((Ep, Hp), lambda b, i: (0, 0)),            # w1c
        pl.BlockSpec((1, Hp), lambda b, i: (0, 0)),             # b1
        pl.BlockSpec((Hp, Hp), lambda b, i: (0, 0)),            # w2
        pl.BlockSpec((1, Hp), lambda b, i: (0, 0)),             # b2
        pl.BlockSpec((1, Hp), lambda b, i: (0, 0)),             # w3 (row)
        pl.BlockSpec((1, 1), lambda b, i: (0, 0)),              # b3
    ]
    out_specs = pl.BlockSpec((1, 1, M, 1), lambda b, i: (b, i, 0, 0))
    out_shape = jax.ShapeDtypeStruct((B, n_tiles, M, 1), jnp.float32)

    fn = pl.pallas_call(
        pairwise_score_kernel,
        grid=grid,
        in_specs=in_specs,
        out_specs=out_specs,
        out_shape=out_shape,
        compiler_params=pltpu.CompilerParams(
            dimension_semantics=("parallel", "parallel")),
    )
    out_flat = fn(gi, gj, mi, mj, w1a, w1b, w1c, b1, w2, b2, w3, b3)

    # (B, n_tiles, TI*SJ, 1) -> (B, SI, SJ, 1) -> strip padding
    out = out_flat.reshape(B, SI, SJ, 1)
    return out[:, :S, :S, :]


# ----------------------------------------------------------------------------
# Pure-JAX f32 reference (mirrors the PyTorch forward, eval mode).
# ----------------------------------------------------------------------------
def reference_pairwise_score(span_embeds, mention_scores, params):
    B, S, E = span_embeds.shape
    g1 = span_embeds[:, :, None, :]                              # (B,S,1,E)  span_i (row)
    g2 = span_embeds[:, None, :, :]                              # (B,1,S,E)  span_j (col)
    pairs = jnp.concatenate([jnp.broadcast_to(g1, (B, S, S, E)),
                             jnp.broadcast_to(g2, (B, S, S, E)),
                             g1 * g2], axis=-1)                  # (B,S,S,3E)
    h = jax.nn.relu(pairs @ params["w1"] + params["b1"])
    h = jax.nn.relu(h @ params["w2"] + params["b2"])
    sc = h @ params["w3"] + params["b3"]                         # (B,S,S,1)
    ext = (mention_scores[:, :, None, :] + mention_scores[:, None, :, :] + sc) / 3.0
    return ext


# ----------------------------------------------------------------------------
if __name__ == "__main__":
    B, S, E = 2, 8, 64           # batch, spans per document, span-embedding dim
    H = 150                      # Score hidden_dim (module default)

    key = jax.random.PRNGKey(0)
    ks = jax.random.split(key, 8)

    def init(k, shape, scale=0.1):
        return (scale * jax.random.normal(k, shape)).astype(jnp.float32)

    params = {
        "w1": init(ks[0], (3 * E, H)), "b1": init(ks[1], (H,)),
        "w2": init(ks[2], (H, H)),     "b2": init(ks[3], (H,)),
        "w3": init(ks[4], (H, 1)),     "b3": init(ks[5], (1,)),
    }
    span_embeds = jax.random.normal(ks[6], (B, S, E), dtype=jnp.float32)
    mention_scores = 0.1 * jax.random.normal(ks[7], (B, S, 1), dtype=jnp.float32)

    out = pairwise_score(span_embeds, mention_scores, params)
    jax.block_until_ready(out)
    assert out.shape == (B, S, S, 1)

    ref = reference_pairwise_score(span_embeds, mention_scores, params)
    # bf16 MXU operands with f32 accumulation -> relaxed tolerance vs. the f32 reference.
    np.testing.assert_allclose(np.asarray(out), np.asarray(ref), rtol=3e-2, atol=3e-2)

    print("KERNEL_OK")
</pallas_src>

<mosaic_0001>
module attributes {stable_mosaic.version = 11 : i64} {
  func.func @pairwise_score_kernel(%arg0: i32, %arg1: i32, %arg2: memref<1x8x128xf32, #tpu.memory_space<vmem>>, %arg3: memref<1x128x128xf32, #tpu.memory_space<vmem>>, %arg4: memref<1x8x1xf32, #tpu.memory_space<vmem>>, %arg5: memref<1x128x1xf32, #tpu.memory_space<vmem>>, %arg6: memref<128x256xbf16, #tpu.memory_space<vmem>>, %arg7: memref<128x256xbf16, #tpu.memory_space<vmem>>, %arg8: memref<128x256xbf16, #tpu.memory_space<vmem>>, %arg9: memref<1x256xf32, #tpu.memory_space<vmem>>, %arg10: memref<256x256xbf16, #tpu.memory_space<vmem>>, %arg11: memref<1x256xf32, #tpu.memory_space<vmem>>, %arg12: memref<1x256xf32, #tpu.memory_space<vmem>>, %arg13: memref<1x1xf32, #tpu.memory_space<vmem>>, %arg14: memref<1x1x1024x1xf32, #tpu.memory_space<vmem>>) attributes {dimension_semantics = [#tpu.dimension_semantics<parallel>, #tpu.dimension_semantics<parallel>], iteration_bounds = array<i64: 2, 1>, scalar_prefetch = 0 : i64, scratch_operands = 0 : i64, tpu.core_type = #tpu.core_type<tc>, window_params = [{transform_indices = @transform_0, window_bounds = array<i64: 1, 8, 128>}, {transform_indices = @transform_1, window_bounds = array<i64: 1, 128, 128>}, {transform_indices = @transform_2, window_bounds = array<i64: 1, 8, 1>}, {transform_indices = @transform_3, window_bounds = array<i64: 1, 128, 1>}, {pipeline_mode = #tpu.pipeline_mode<synchronous>, transform_indices = @transform_4, window_bounds = array<i64: 128, 256>}, {pipeline_mode = #tpu.pipeline_mode<synchronous>, transform_indices = @transform_5, window_bounds = array<i64: 128, 256>}, {pipeline_mode = #tpu.pipeline_mode<synchronous>, transform_indices = @transform_6, window_bounds = array<i64: 128, 256>}, {pipeline_mode = #tpu.pipeline_mode<synchronous>, transform_indices = @transform_7, window_bounds = array<i64: 1, 256>}, {pipeline_mode = #tpu.pipeline_mode<synchronous>, transform_indices = @transform_8, window_bounds = array<i64: 256, 256>}, {pipeline_mode = #tpu.pipeline_mode<synchronous>, transform_indices = @transform_9, window_bounds = array<i64: 1, 256>}, {pipeline_mode = #tpu.pipeline_mode<synchronous>, transform_indices = @transform_10, window_bounds = array<i64: 1, 256>}, {pipeline_mode = #tpu.pipeline_mode<synchronous>, transform_indices = @transform_11, window_bounds = array<i64: 1, 1>}, {transform_indices = @transform_12, window_bounds = array<i64: 1, 1, 1024, 1>}]} {
    %c0 = arith.constant 0 : index
    %c0_0 = arith.constant 0 : index
    %c0_1 = arith.constant 0 : index
    %0 = vector.load %arg2[%c0, %c0_0, %c0_1] : memref<1x8x128xf32, #tpu.memory_space<vmem>>, vector<1x8x128xf32>
    %1 = vector.shape_cast %0 : vector<1x8x128xf32> to vector<8x128xf32>
    %c0_2 = arith.constant 0 : index
    %c0_3 = arith.constant 0 : index
    %c0_4 = arith.constant 0 : index
    %2 = vector.load %arg3[%c0_2, %c0_3, %c0_4] : memref<1x128x128xf32, #tpu.memory_space<vmem>>, vector<1x128x128xf32>
    %3 = vector.shape_cast %2 : vector<1x128x128xf32> to vector<128x128xf32>
    %4 = arith.truncf %1 : vector<8x128xf32> to vector<8x128xbf16>
    %c0_5 = arith.constant 0 : index
    %c0_6 = arith.constant 0 : index
    %5 = vector.load %arg6[%c0_5, %c0_6] : memref<128x256xbf16, #tpu.memory_space<vmem>>, vector<128x256xbf16>
    %cst = arith.constant dense<0.000000e+00> : vector<8x256xf32>
    %6 = tpu.matmul %4, %5, %cst {dimension_numbers = #tpu.dot_dimension_numbers<[1], [0], [0], [1], [0, 0, 1, 1], [], []>} : vector<8x128xbf16>, vector<128x256xbf16>, vector<8x256xf32> -> vector<8x256xf32>
    %7 = arith.truncf %3 : vector<128x128xf32> to vector<128x128xbf16>
    %c0_7 = arith.constant 0 : index
    %c0_8 = arith.constant 0 : index
    %8 = vector.load %arg7[%c0_7, %c0_8] : memref<128x256xbf16, #tpu.memory_space<vmem>>, vector<128x256xbf16>
    %cst_9 = arith.constant dense<0.000000e+00> : vector<128x256xf32>
    %9 = tpu.matmul %7, %8, %cst_9 {dimension_numbers = #tpu.dot_dimension_numbers<[1], [0], [0], [1], [0, 0, 1, 1], [], []>} : vector<128x128xbf16>, vector<128x256xbf16>, vector<128x256xf32> -> vector<128x256xf32>
    %10 = vector.extract_strided_slice %1 {offsets = [0, 0], sizes = [1, 128], strides = [1, 1]} : vector<8x128xf32> to vector<1x128xf32>
    %11 = vector.shape_cast %10 : vector<1x128xf32> to vector<1x128xf32>
    %12 = vector.broadcast %11 : vector<1x128xf32> to vector<128x128xf32>
    %13 = vector.extract_strided_slice %1 {offsets = [1, 0], sizes = [1, 128], strides = [1, 1]} : vector<8x128xf32> to vector<1x128xf32>
    %14 = vector.shape_cast %13 : vector<1x128xf32> to vector<1x128xf32>
    %15 = vector.broadcast %14 : vector<1x128xf32> to vector<128x128xf32>
    %16 = vector.extract_strided_slice %1 {offsets = [2, 0], sizes = [1, 128], strides = [1, 1]} : vector<8x128xf32> to vector<1x128xf32>
    %17 = vector.shape_cast %16 : vector<1x128xf32> to vector<1x128xf32>
    %18 = vector.broadcast %17 : vector<1x128xf32> to vector<128x128xf32>
    %19 = vector.extract_strided_slice %1 {offsets = [3, 0], sizes = [1, 128], strides = [1, 1]} : vector<8x128xf32> to vector<1x128xf32>
    %20 = vector.shape_cast %19 : vector<1x128xf32> to vector<1x128xf32>
    %21 = vector.broadcast %20 : vector<1x128xf32> to vector<128x128xf32>
    %22 = vector.extract_strided_slice %1 {offsets = [4, 0], sizes = [1, 128], strides = [1, 1]} : vector<8x128xf32> to vector<1x128xf32>
    %23 = vector.shape_cast %22 : vector<1x128xf32> to vector<1x128xf32>
    %24 = vector.broadcast %23 : vector<1x128xf32> to vector<128x128xf32>
    %25 = vector.extract_strided_slice %1 {offsets = [5, 0], sizes = [1, 128], strides = [1, 1]} : vector<8x128xf32> to vector<1x128xf32>
    %26 = vector.shape_cast %25 : vector<1x128xf32> to vector<1x128xf32>
    %27 = vector.broadcast %26 : vector<1x128xf32> to vector<128x128xf32>
    %28 = vector.extract_strided_slice %1 {offsets = [6, 0], sizes = [1, 128], strides = [1, 1]} : vector<8x128xf32> to vector<1x128xf32>
    %29 = vector.shape_cast %28 : vector<1x128xf32> to vector<1x128xf32>
    %30 = vector.broadcast %29 : vector<1x128xf32> to vector<128x128xf32>
    %31 = vector.extract_strided_slice %1 {offsets = [7, 0], sizes = [1, 128], strides = [1, 1]} : vector<8x128xf32> to vector<1x128xf32>
    %32 = vector.shape_cast %31 : vector<1x128xf32> to vector<1x128xf32>
    %33 = vector.broadcast %32 : vector<1x128xf32> to vector<128x128xf32>
    %34 = tpu.concatenate %12, %15, %18, %21, %24, %27, %30, %33 in 0 : vector<128x128xf32>, vector<128x128xf32>, vector<128x128xf32>, vector<128x128xf32>, vector<128x128xf32>, vector<128x128xf32>, vector<128x128xf32>, vector<128x128xf32> -> vector<1024x128xf32>
    %35 = tpu.concatenate %3, %3, %3, %3, %3, %3, %3, %3 in 0 : vector<128x128xf32>, vector<128x128xf32>, vector<128x128xf32>, vector<128x128xf32>, vector<128x128xf32>, vector<128x128xf32>, vector<128x128xf32>, vector<128x128xf32> -> vector<1024x128xf32>
    %36 = vector.extract_strided_slice %6 {offsets = [0, 0], sizes = [1, 256], strides = [1, 1]} : vector<8x256xf32> to vector<1x256xf32>
    %37 = vector.shape_cast %36 : vector<1x256xf32> to vector<1x256xf32>
    %38 = vector.broadcast %37 : vector<1x256xf32> to vector<128x256xf32>
    %39 = vector.extract_strided_slice %6 {offsets = [1, 0], sizes = [1, 256], strides = [1, 1]} : vector<8x256xf32> to vector<1x256xf32>
    %40 = vector.shape_cast %39 : vector<1x256xf32> to vector<1x256xf32>
    %41 = vector.broadcast %40 : vector<1x256xf32> to vector<128x256xf32>
    %42 = vector.extract_strided_slice %6 {offsets = [2, 0], sizes = [1, 256], strides = [1, 1]} : vector<8x256xf32> to vector<1x256xf32>
    %43 = vector.shape_cast %42 : vector<1x256xf32> to vector<1x256xf32>
    %44 = vector.broadcast %43 : vector<1x256xf32> to vector<128x256xf32>
    %45 = vector.extract_strided_slice %6 {offsets = [3, 0], sizes = [1, 256], strides = [1, 1]} : vector<8x256xf32> to vector<1x256xf32>
    %46 = vector.shape_cast %45 : vector<1x256xf32> to vector<1x256xf32>
    %47 = vector.broadcast %46 : vector<1x256xf32> to vector<128x256xf32>
    %48 = vector.extract_strided_slice %6 {offsets = [4, 0], sizes = [1, 256], strides = [1, 1]} : vector<8x256xf32> to vector<1x256xf32>
    %49 = vector.shape_cast %48 : vector<1x256xf32> to vector<1x256xf32>
    %50 = vector.broadcast %49 : vector<1x256xf32> to vector<128x256xf32>
    %51 = vector.extract_strided_slice %6 {offsets = [5, 0], sizes = [1, 256], strides = [1, 1]} : vector<8x256xf32> to vector<1x256xf32>
    %52 = vector.shape_cast %51 : vector<1x256xf32> to vector<1x256xf32>
    %53 = vector.broadcast %52 : vector<1x256xf32> to vector<128x256xf32>
    %54 = vector.extract_strided_slice %6 {offsets = [6, 0], sizes = [1, 256], strides = [1, 1]} : vector<8x256xf32> to vector<1x256xf32>
    %55 = vector.shape_cast %54 : vector<1x256xf32> to vector<1x256xf32>
    %56 = vector.broadcast %55 : vector<1x256xf32> to vector<128x256xf32>
    %57 = vector.extract_strided_slice %6 {offsets = [7, 0], sizes = [1, 256], strides = [1, 1]} : vector<8x256xf32> to vector<1x256xf32>
    %58 = vector.shape_cast %57 : vector<1x256xf32> to vector<1x256xf32>
    %59 = vector.broadcast %58 : vector<1x256xf32> to vector<128x256xf32>
    %60 = tpu.concatenate %38, %41, %44, %47, %50, %53, %56, %59 in 0 : vector<128x256xf32>, vector<128x256xf32>, vector<128x256xf32>, vector<128x256xf32>, vector<128x256xf32>, vector<128x256xf32>, vector<128x256xf32>, vector<128x256xf32> -> vector<1024x256xf32>
    %61 = tpu.concatenate %9, %9, %9, %9, %9, %9, %9, %9 in 0 : vector<128x256xf32>, vector<128x256xf32>, vector<128x256xf32>, vector<128x256xf32>, vector<128x256xf32>, vector<128x256xf32>, vector<128x256xf32>, vector<128x256xf32> -> vector<1024x256xf32>
    %c0_10 = arith.constant 0 : index
    %c0_11 = arith.constant 0 : index
    %c0_12 = arith.constant 0 : index
    %62 = vector.load %arg4[%c0_10, %c0_11, %c0_12] : memref<1x8x1xf32, #tpu.memory_space<vmem>>, vector<1x1x1xf32>
    %63 = vector.shape_cast %62 : vector<1x1x1xf32> to vector<1x1xf32>
    %64 = vector.shape_cast %63 : vector<1x1xf32> to vector<1x1xf32>
    %65 = vector.broadcast %64 : vector<1x1xf32> to vector<128x1xf32>
    %c0_13 = arith.constant 0 : index
    %c1 = arith.constant 1 : index
    %c0_14 = arith.constant 0 : index
    %66 = vector.load %arg4[%c0_13, %c1, %c0_14] : memref<1x8x1xf32, #tpu.memory_space<vmem>>, vector<1x1x1xf32>
    %67 = vector.shape_cast %66 : vector<1x1x1xf32> to vector<1x1xf32>
    %68 = vector.shape_cast %67 : vector<1x1xf32> to vector<1x1xf32>
    %69 = vector.broadcast %68 : vector<1x1xf32> to vector<128x1xf32>
    %c0_15 = arith.constant 0 : index
    %c2 = arith.constant 2 : index
    %c0_16 = arith.constant 0 : index
    %70 = vector.load %arg4[%c0_15, %c2, %c0_16] : memref<1x8x1xf32, #tpu.memory_space<vmem>>, vector<1x1x1xf32>
    %71 = vector.shape_cast %70 : vector<1x1x1xf32> to vector<1x1xf32>
    %72 = vector.shape_cast %71 : vector<1x1xf32> to vector<1x1xf32>
    %73 = vector.broadcast %72 : vector<1x1xf32> to vector<128x1xf32>
    %c0_17 = arith.constant 0 : index
    %c3 = arith.constant 3 : index
    %c0_18 = arith.constant 0 : index
    %74 = vector.load %arg4[%c0_17, %c3, %c0_18] : memref<1x8x1xf32, #tpu.memory_space<vmem>>, vector<1x1x1xf32>
    %75 = vector.shape_cast %74 : vector<1x1x1xf32> to vector<1x1xf32>
    %76 = vector.shape_cast %75 : vector<1x1xf32> to vector<1x1xf32>
    %77 = vector.broadcast %76 : vector<1x1xf32> to vector<128x1xf32>
    %c0_19 = arith.constant 0 : index
    %c4 = arith.constant 4 : index
    %c0_20 = arith.constant 0 : index
    %78 = vector.load %arg4[%c0_19, %c4, %c0_20] : memref<1x8x1xf32, #tpu.memory_space<vmem>>, vector<1x1x1xf32>
    %79 = vector.shape_cast %78 : vector<1x1x1xf32> to vector<1x1xf32>
    %80 = vector.shape_cast %79 : vector<1x1xf32> to vector<1x1xf32>
    %81 = vector.broadcast %80 : vector<1x1xf32> to vector<128x1xf32>
    %c0_21 = arith.constant 0 : index
    %c5 = arith.constant 5 : index
    %c0_22 = arith.constant 0 : index
    %82 = vector.load %arg4[%c0_21, %c5, %c0_22] : memref<1x8x1xf32, #tpu.memory_space<vmem>>, vector<1x1x1xf32>
    %83 = vector.shape_cast %82 : vector<1x1x1xf32> to vector<1x1xf32>
    %84 = vector.shape_cast %83 : vector<1x1xf32> to vector<1x1xf32>
    %85 = vector.broadcast %84 : vector<1x1xf32> to vector<128x1xf32>
    %c0_23 = arith.constant 0 : index
    %c6 = arith.constant 6 : index
    %c0_24 = arith.constant 0 : index
    %86 = vector.load %arg4[%c0_23, %c6, %c0_24] : memref<1x8x1xf32, #tpu.memory_space<vmem>>, vector<1x1x1xf32>
    %87 = vector.shape_cast %86 : vector<1x1x1xf32> to vector<1x1xf32>
    %88 = vector.shape_cast %87 : vector<1x1xf32> to vector<1x1xf32>
    %89 = vector.broadcast %88 : vector<1x1xf32> to vector<128x1xf32>
    %c0_25 = arith.constant 0 : index
    %c7 = arith.constant 7 : index
    %c0_26 = arith.constant 0 : index
    %90 = vector.load %arg4[%c0_25, %c7, %c0_26] : memref<1x8x1xf32, #tpu.memory_space<vmem>>, vector<1x1x1xf32>
    %91 = vector.shape_cast %90 : vector<1x1x1xf32> to vector<1x1xf32>
    %92 = vector.shape_cast %91 : vector<1x1xf32> to vector<1x1xf32>
    %93 = vector.broadcast %92 : vector<1x1xf32> to vector<128x1xf32>
    %94 = tpu.concatenate %65, %69, %73, %77, %81, %85, %89, %93 in 0 : vector<128x1xf32>, vector<128x1xf32>, vector<128x1xf32>, vector<128x1xf32>, vector<128x1xf32>, vector<128x1xf32>, vector<128x1xf32>, vector<128x1xf32> -> vector<1024x1xf32>
    %c0_27 = arith.constant 0 : index
    %c0_28 = arith.constant 0 : index
    %c0_29 = arith.constant 0 : index
    %95 = vector.load %arg5[%c0_27, %c0_28, %c0_29] : memref<1x128x1xf32, #tpu.memory_space<vmem>>, vector<1x128x1xf32>
    %96 = vector.shape_cast %95 : vector<1x128x1xf32> to vector<128x1xf32>
    %97 = tpu.concatenate %96, %96, %96, %96, %96, %96, %96, %96 in 0 : vector<128x1xf32>, vector<128x1xf32>, vector<128x1xf32>, vector<128x1xf32>, vector<128x1xf32>, vector<128x1xf32>, vector<128x1xf32>, vector<128x1xf32> -> vector<1024x1xf32>
    %98 = arith.mulf %34, %35 : vector<1024x128xf32>
    %99 = arith.truncf %98 : vector<1024x128xf32> to vector<1024x128xbf16>
    %c0_30 = arith.constant 0 : index
    %c0_31 = arith.constant 0 : index
    %100 = vector.load %arg8[%c0_30, %c0_31] : memref<128x256xbf16, #tpu.memory_space<vmem>>, vector<128x256xbf16>
    %cst_32 = arith.constant dense<0.000000e+00> : vector<1024x256xf32>
    %101 = tpu.matmul %99, %100, %cst_32 {dimension_numbers = #tpu.dot_dimension_numbers<[1], [0], [0], [1], [0, 0, 1, 1], [], []>} : vector<1024x128xbf16>, vector<128x256xbf16>, vector<1024x256xf32> -> vector<1024x256xf32>
    %102 = arith.addf %101, %60 : vector<1024x256xf32>
    %103 = arith.addf %102, %61 : vector<1024x256xf32>
    %c0_33 = arith.constant 0 : index
    %c0_34 = arith.constant 0 : index
    %104 = vector.load %arg9[%c0_33, %c0_34] : memref<1x256xf32, #tpu.memory_space<vmem>>, vector<1x256xf32>
    %105 = vector.broadcast %104 : vector<1x256xf32> to vector<1024x256xf32>
    %106 = arith.addf %103, %105 : vector<1024x256xf32>
    %cst_35 = arith.constant 0.000000e+00 : f32
    %107 = vector.broadcast %cst_35 : f32 to vector<1024x256xf32>
    %108 = arith.maximumf %106, %107 : vector<1024x256xf32>
    %109 = arith.truncf %108 : vector<1024x256xf32> to vector<1024x256xbf16>
    %c0_36 = arith.constant 0 : index
    %c0_37 = arith.constant 0 : index
    %110 = vector.load %arg10[%c0_36, %c0_37] : memref<256x256xbf16, #tpu.memory_space<vmem>>, vector<256x256xbf16>
    %cst_38 = arith.constant dense<0.000000e+00> : vector<1024x256xf32>
    %111 = tpu.matmul %109, %110, %cst_38 {dimension_numbers = #tpu.dot_dimension_numbers<[1], [0], [0], [1], [0, 0, 1, 1], [], []>} : vector<1024x256xbf16>, vector<256x256xbf16>, vector<1024x256xf32> -> vector<1024x256xf32>
    %c0_39 = arith.constant 0 : index
    %c0_40 = arith.constant 0 : index
    %112 = vector.load %arg11[%c0_39, %c0_40] : memref<1x256xf32, #tpu.memory_space<vmem>>, vector<1x256xf32>
    %113 = vector.broadcast %112 : vector<1x256xf32> to vector<1024x256xf32>
    %114 = arith.addf %111, %113 : vector<1024x256xf32>
    %cst_41 = arith.constant 0.000000e+00 : f32
    %115 = vector.broadcast %cst_41 : f32 to vector<1024x256xf32>
    %116 = arith.maximumf %114, %115 : vector<1024x256xf32>
    %c0_42 = arith.constant 0 : index
    %c0_43 = arith.constant 0 : index
    %117 = vector.load %arg12[%c0_42, %c0_43] : memref<1x256xf32, #tpu.memory_space<vmem>>, vector<1x256xf32>
    %118 = vector.broadcast %117 : vector<1x256xf32> to vector<1024x256xf32>
    %119 = arith.mulf %116, %118 : vector<1024x256xf32>
    %cst_44 = arith.constant dense<0.000000e+00> : vector<1024xf32>
    %120 = vector.multi_reduction <add>, %119, %cst_44 [1] : vector<1024x256xf32> to vector<1024xf32>
    %121 = vector.shape_cast %120 : vector<1024xf32> to vector<1024x1xf32>
    %c0_45 = arith.constant 0 : index
    %c0_46 = arith.constant 0 : index
    %122 = vector.load %arg13[%c0_45, %c0_46] : memref<1x1xf32, #tpu.memory_space<vmem>>, vector<1x1xf32>
    %123 = vector.broadcast %122 : vector<1x1xf32> to vector<1024x1xf32>
    %124 = arith.addf %121, %123 : vector<1024x1xf32>
    %125 = arith.addf %94, %97 : vector<1024x1xf32>
    %126 = arith.addf %125, %124 : vector<1024x1xf32>
    %cst_47 = arith.constant 0.333333343 : f32
    %127 = vector.broadcast %cst_47 : f32 to vector<1024x1xf32>
    %128 = arith.mulf %126, %127 : vector<1024x1xf32>
    %c0_48 = arith.constant 0 : index
    %c0_49 = arith.constant 0 : index
    %c0_50 = arith.constant 0 : index
    %c0_51 = arith.constant 0 : index
    %129 = vector.load %arg14[%c0_48, %c0_49, %c0_50, %c0_51] : memref<1x1x1024x1xf32, #tpu.memory_space<vmem>>, vector<1x1x1024x1xf32>
    %130 = vector.shape_cast %129 : vector<1x1x1024x1xf32> to vector<1024x1xf32>
    %131 = vector.shape_cast %128 : vector<1024x1xf32> to vector<1x1x1024x1xf32>
    tpu.vector_store %arg14[%c0_48, %c0_49, %c0_50, %c0_51], %131 {strides = array<i32>} : memref<1x1x1024x1xf32, #tpu.memory_space<vmem>>, vector<1x1x1024x1xf32>,
    return
  }
  func.func @transform_0(%arg0: i32, %arg1: i32) -> (i32, i32, i32) {
    %c0_i32 = arith.constant 0 : i32
    %c0_i32_0 = arith.constant 0 : i32
    return %arg0, %arg1, %c0_i32 : i32, i32, i32
  }
  func.func @transform_1(%arg0: i32, %arg1: i32) -> (i32, i32, i32) {
    %c0_i32 = arith.constant 0 : i32
    %c0_i32_0 = arith.constant 0 : i32
    %c0_i32_1 = arith.constant 0 : i32
    return %arg0, %c0_i32, %c0_i32_0 : i32, i32, i32
  }
  func.func @transform_2(%arg0: i32, %arg1: i32) -> (i32, i32, i32) {
    %c0_i32 = arith.constant 0 : i32
    %c0_i32_0 = arith.constant 0 : i32
    return %arg0, %arg1, %c0_i32 : i32, i32, i32
  }
  func.func @transform_3(%arg0: i32, %arg1: i32) -> (i32, i32, i32) {
    %c0_i32 = arith.constant 0 : i32
    %c0_i32_0 = arith.constant 0 : i32
    %c0_i32_1 = arith.constant 0 : i32
    return %arg0, %c0_i32, %c0_i32_0 : i32, i32, i32
  }
  func.func @transform_4(%arg0: i32, %arg1: i32) -> (i32, i32) {
    %c0_i32 = arith.constant 0 : i32
    %c0_i32_0 = arith.constant 0 : i32
    %c0_i32_1 = arith.constant 0 : i32
    return %c0_i32, %c0_i32_0 : i32, i32
  }
  func.func @transform_5(%arg0: i32, %arg1: i32) -> (i32, i32) {
    %c0_i32 = arith.constant 0 : i32
    %c0_i32_0 = arith.constant 0 : i32
    %c0_i32_1 = arith.constant 0 : i32
    return %c0_i32, %c0_i32_0 : i32, i32
  }
  func.func @transform_6(%arg0: i32, %arg1: i32) -> (i32, i32) {
    %c0_i32 = arith.constant 0 : i32
    %c0_i32_0 = arith.constant 0 : i32
    %c0_i32_1 = arith.constant 0 : i32
    return %c0_i32, %c0_i32_0 : i32, i32
  }
  func.func @transform_7(%arg0: i32, %arg1: i32) -> (i32, i32) {
    %c0_i32 = arith.constant 0 : i32
    %c0_i32_0 = arith.constant 0 : i32
    %c0_i32_1 = arith.constant 0 : i32
    return %c0_i32, %c0_i32_0 : i32, i32
  }
  func.func @transform_8(%arg0: i32, %arg1: i32) -> (i32, i32) {
    %c0_i32 = arith.constant 0 : i32
    %c0_i32_0 = arith.constant 0 : i32
    %c0_i32_1 = arith.constant 0 : i32
    return %c0_i32, %c0_i32_0 : i32, i32
  }
  func.func @transform_9(%arg0: i32, %arg1: i32) -> (i32, i32) {
    %c0_i32 = arith.constant 0 : i32
    %c0_i32_0 = arith.constant 0 : i32
    %c0_i32_1 = arith.constant 0 : i32
    return %c0_i32, %c0_i32_0 : i32, i32
  }
  func.func @transform_10(%arg0: i32, %arg1: i32) -> (i32, i32) {
    %c0_i32 = arith.constant 0 : i32
    %c0_i32_0 = arith.constant 0 : i32
    %c0_i32_1 = arith.constant 0 : i32
    return %c0_i32, %c0_i32_0 : i32, i32
  }
  func.func @transform_11(%arg0: i32, %arg1: i32) -> (i32, i32) {
    %c0_i32 = arith.constant 0 : i32
    %c0_i32_0 = arith.constant 0 : i32
    %c0_i32_1 = arith.constant 0 : i32
    return %c0_i32, %c0_i32_0 : i32, i32
  }
  func.func @transform_12(%arg0: i32, %arg1: i32) -> (i32, i32, i32, i32) {
    %c0_i32 = arith.constant 0 : i32
    %c0_i32_0 = arith.constant 0 : i32
    %c0_i32_1 = arith.constant 0 : i32
    return %arg0, %arg1, %c0_i32, %c0_i32_0 : i32, i32, i32, i32
  }
}

</mosaic_0001>

<llo_original>
// kernel: tpu_custom_call.1
$region0: #{tpu_custom_call.1}
  #allocation0 [shape = 'u32[]', space=smem, size = 0x4, offset = 0x4, fixed_abs, tag = 'smem constant byte address 0x4 - core index']
  #allocation1 [shape = 'u32[144,128]{1,0:T(1,128)}', space=vmem, size = 0x12000, scoped, tag = 'internal scratch']
  #allocation2 [shape = 'f32[1,1]{1,0:T(1,128)S(1)}', space=vmem, size = 0x200, scoped, tag = 'scoped memory for tpu_custom_call.1']
  %s0 = inlined_call_operand.vmem [shape: f32[2,8,128], index: 0, kind: input, shape index: {}]
  %s1 = inlined_call_operand.vmem [shape: f32[2,128,128], index: 1, kind: input, shape index: {}]
  %s2 = inlined_call_operand.vmem [shape: f32[2,8,1], index: 2, kind: input, shape index: {}]
  %s3 = inlined_call_operand.vmem [shape: f32[2,128,1], index: 3, kind: input, shape index: {}]
  %s4 = inlined_call_operand.hbm [shape: bf16[128,256], index: 4, kind: input, shape index: {}]
  %s5 = inlined_call_operand.hbm [shape: bf16[128,256], index: 5, kind: input, shape index: {}]
  %s6 = inlined_call_operand.hbm [shape: bf16[128,256], index: 6, kind: input, shape index: {}]
  %s7 = inlined_call_operand.vmem [shape: f32[1,256], index: 7, kind: input, shape index: {}]
  %s8 = inlined_call_operand.hbm [shape: bf16[256,256], index: 8, kind: input, shape index: {}]
  %s9 = inlined_call_operand.vmem [shape: f32[1,256], index: 9, kind: input, shape index: {}]
  %s10 = inlined_call_operand.vmem [shape: f32[1,256], index: 10, kind: input, shape index: {}]
  %s11 = inlined_call_operand.<no memory space> [shape: f32[1,1], index: 11, kind: input, shape index: {}]
  %s12 = inlined_call_operand.vmem [shape: f32[2,1,1024,1], index: 12, kind: output, shape index: {}]
  %s13 = sld [smem:[#allocation0]]
  $region97: #{tpu_custom_call.1} parent=0
    _
  %s15 = ssub.s32 1, %s13
  %s16 = scalar_select 0, %s15, %s13
  %v17 = vstv %s11
  %18 = vst [vmem:[#allocation2] sm:$0x1] %v17
  $region1: #{tpu_custom_call.1} parent=0
    #allocation3 [shape = 'u8[65536]{0}', space=vmem, size = 0x10000, scoped, tag = 'input window, operand 4, single buffered']
    #allocation4 [shape = 's32[2]{0}', space=sflag, size = 0x8, scoped, tag = 'scoped memory for tpu_custom_call.1']
    #allocation5 [shape = 'u8[65536]{0}', space=vmem, size = 0x10000, scoped, tag = 'input window, operand 5, single buffered']
    #allocation6 [shape = 's32[1]{0}', space=sflag, size = 0x4, scoped, tag = 'scoped memory for tpu_custom_call.1']
    #allocation7 [shape = 'u8[65536]{0}', space=vmem, size = 0x10000, scoped, tag = 'input window, operand 6, single buffered']
    #allocation8 [shape = 'u8[131072]{0}', space=vmem, size = 0x20000, scoped, tag = 'input window, operand 8, single buffered']
    #allocation9 [shape = 's32[1]{0}', space=sflag, size = 0x4, scoped, tag = 'scoped memory for tpu_custom_call.1']
    %19 = vsyncpa [#allocation4], 0
    %20 = vsyncpa [#allocation6], 0
    %21 = vsyncpa [#allocation9], 0
    loop: start=0, step=1, limit=4
    $region2: #{tpu_custom_call.1} parent=1 // loop_pre_header
      _
    $region3: #{tpu_custom_call.1} parent=1 // loop_header
      %s23 = sphi 0, %s27
      %p24 = scmp.ge.s32.totalorder %s23, 4
      %s30 = sphi 0, %s42
      %s31 = sphi 0, %s38
      %s32 = sphi 0, %s30
      %s33 = sphi 0, %s31
      %s34 = sphi 0, %s32
      %s35 = sphi 0, %s33
      %s47 = sphi 0, %s49
      %s50 = sphi 0, %s47
      %s51 = sphi 0, %s50
      %s67 = sphi 0, %s51
      %s73 = sphi 0, %s75
      %s76 = sphi 0, %s73
      %s77 = sphi 0, %s76
      %s93 = sphi 0, %s77
      %s101 = sphi 0, %s103
      %s104 = sphi 0, %s101
      %s105 = sphi 0, %s104
      %s121 = sphi 0, %s105
      %s127 = sphi 0, %s129
      %s130 = sphi 0, %s127
      %s131 = sphi 0, %s130
      %s147 = sphi 0, %s131
      %s151 = sphi 0, %s151
      %s153 = sphi 0, %s151
      %s154 = sphi 0, %s153
      %s168 = sphi 0, %s154
      %s172 = sphi 0, %s172
      %s174 = sphi 0, %s172
      %s175 = sphi 0, %s174
      %s189 = sphi 0, %s175
      %s193 = sphi 0, %s193
      %s195 = sphi 0, %s193
      %s196 = sphi 0, %s195
      %s210 = sphi 0, %s196
      %s214 = sphi 0, %s214
      %s216 = sphi 0, %s214
      %s217 = sphi 0, %s216
      %s231 = sphi 0, %s217
      %s235 = sphi 0, %s235
      %s237 = sphi 0, %s235
      %s238 = sphi 0, %s237
      %s252 = sphi 0, %s238
      %s256 = sphi 0, %s256
      %s258 = sphi 0, %s256
      %s259 = sphi 0, %s258
      %s273 = sphi 0, %s259
      %s277 = sphi 0, %s277
      %s279 = sphi 0, %s277
      %s280 = sphi 0, %s279
      %s294 = sphi 0, %s280
      %s298 = sphi 0, %s298
      %s300 = sphi 0, %s298
      %s301 = sphi 0, %s300
      %s315 = sphi 0, %s301
      %s323 = sphi 0, %s325
      %s326 = sphi 0, %s323
      %s327 = sphi 0, %s326
      %s343 = sphi 0, %s327
    $region4: #{tpu_custom_call.1} parent=1 // loop_header_branch
      %26 = sbr.rel (%p24) target = $region8
    $region5: #{tpu_custom_call.1} parent=1 // loop_body
      %s28 = ssub.s32 %s23, 1
      %s29 = ssub.s32 %s23, 2
      %s36 = sadd.s32 1, %s31
      %p37 = scmp.ge.s32.totalorder %s36, 1
      %s38 = scalar_select %p37, 0, %s36
      %s39 = sadd.s32 1, %s30
      %s40 = scalar_select %p37, %s39, %s30
      %p41 = scmp.ge.s32.totalorder %s40, 2
      %s42 = scalar_select %p41, 0, %s40
      %s43 = ssub.s32 %s30, %s42
      %s44 = ssub.s32 %s31, %s38
      %s45 = sor.u32 %s43, %s44
      %p46 = scmp.eq.s32.totalorder %s45, 0
      %s48 = sadd.s32 %s47, 1
      %s49 = scalar_select %p46, %s47, %s48
      %p52 = pneg %p46
      %p53 = scmp.eq.s32.totalorder %s23, 1
      %p54 = por %p52, %p53
      %p55 = scmp.ne.s32.totalorder %s47, %s50
      %p56 = scmp.eq.s32.totalorder %s23, 0
      %p57 = por %p55, %p56
      %p58 = scmp.ne.s32.totalorder %s47, %s50
      %p59 = scmp.eq.s32.totalorder %s28, 1
      %p60 = por %p58, %p59
      %p61 = scmp.ne.s32.totalorder %s50, %s51
      %p62 = scmp.eq.s32.totalorder %s28, 0
      %p63 = por %p61, %p62
      %p64 = scmp.ne.s32.totalorder %s50, %s51
      %p65 = scmp.eq.s32.totalorder %s29, 1
      %p66 = por %p64, %p65
      %p68 = scmp.ne.s32.totalorder %s51, %s67
      %p69 = scmp.eq.s32.totalorder %s29, 0
      %p70 = por %p68, %p69
      %s71 = ssub.s32 %s30, %s42
      %p72 = scmp.eq.s32.totalorder %s71, 0
      %s74 = sadd.s32 %s73, 1
      %s75 = scalar_select %p72, %s73, %s74
      %p78 = pneg %p72
      %p79 = scmp.eq.s32.totalorder %s23, 1
      %p80 = por %p78, %p79
      %p81 = scmp.ne.s32.totalorder %s73, %s76
      %p82 = scmp.eq.s32.totalorder %s23, 0
      %p83 = por %p81, %p82
      %p84 = scmp.ne.s32.totalorder %s73, %s76
      %p85 = scmp.eq.s32.totalorder %s28, 1
      %p86 = por %p84, %p85
      %p87 = scmp.ne.s32.totalorder %s76, %s77
      %p88 = scmp.eq.s32.totalorder %s28, 0
      %p89 = por %p87, %p88
      %p90 = scmp.ne.s32.totalorder %s76, %s77
      %p91 = scmp.eq.s32.totalorder %s29, 1
      %p92 = por %p90, %p91
      %p94 = scmp.ne.s32.totalorder %s77, %s93
      %p95 = scmp.eq.s32.totalorder %s29, 0
      %p96 = por %p94, %p95
      %s97 = ssub.s32 %s30, %s42
      %s98 = ssub.s32 %s31, %s38
      %s99 = sor.u32 %s97, %s98
      %p100 = scmp.eq.s32.totalorder %s99, 0
      %s102 = sadd.s32 %s101, 1
      %s103 = scalar_select %p100, %s101, %s102
      %p106 = pneg %p100
      %p107 = scmp.eq.s32.totalorder %s23, 1
      %p108 = por %p106, %p107
      %p109 = scmp.ne.s32.totalorder %s101, %s104
      %p110 = scmp.eq.s32.totalorder %s23, 0
      %p111 = por %p109, %p110
      %p112 = scmp.ne.s32.totalorder %s101, %s104
      %p113 = scmp.eq.s32.totalorder %s28, 1
      %p114 = por %p112, %p113
      %p115 = scmp.ne.s32.totalorder %s104, %s105
      %p116 = scmp.eq.s32.totalorder %s28, 0
      %p117 = por %p115, %p116
      %p118 = scmp.ne.s32.totalorder %s104, %s105
      %p119 = scmp.eq.s32.totalorder %s29, 1
      %p120 = por %p118, %p119
      %p122 = scmp.ne.s32.totalorder %s105, %s121
      %p123 = scmp.eq.s32.totalorder %s29, 0
      %p124 = por %p122, %p123
      %s125 = ssub.s32 %s30, %s42
      %p126 = scmp.eq.s32.totalorder %s125, 0
      %s128 = sadd.s32 %s127, 1
      %s129 = scalar_select %p126, %s127, %s128
      %p132 = pneg %p126
      %p133 = scmp.eq.s32.totalorder %s23, 1
      %p134 = por %p132, %p133
      %p135 = scmp.ne.s32.totalorder %s127, %s130
      %p136 = scmp.eq.s32.totalorder %s23, 0
      %p137 = por %p135, %p136
      %p138 = scmp.ne.s32.totalorder %s127, %s130
      %p139 = scmp.eq.s32.totalorder %s28, 1
      %p140 = por %p138, %p139
      %p141 = scmp.ne.s32.totalorder %s130, %s131
      %p142 = scmp.eq.s32.totalorder %s28, 0
      %p143 = por %p141, %p142
      %p144 = scmp.ne.s32.totalorder %s130, %s131
      %p145 = scmp.eq.s32.totalorder %s29, 1
      %p146 = por %p144, %p145
      %p148 = scmp.ne.s32.totalorder %s131, %s147
      %p149 = scmp.eq.s32.totalorder %s29, 0
      %p150 = por %p148, %p149
      %s152 = sadd.s32 %s151, 1
      %p155 = scmp.eq.s32.totalorder %s23, 1
      %p156 = scmp.ne.s32.totalorder %s151, %s153
      %p157 = scmp.eq.s32.totalorder %s23, 0
      %p158 = por %p156, %p157
      %p159 = scmp.ne.s32.totalorder %s151, %s153
      %p160 = scmp.eq.s32.totalorder %s28, 1
      %p161 = por %p159, %p160
      %p162 = scmp.ne.s32.totalorder %s153, %s154
      %p163 = scmp.eq.s32.totalorder %s28, 0
      %p164 = por %p162, %p163
      %p165 = scmp.ne.s32.totalorder %s153, %s154
      %p166 = scmp.eq.s32.totalorder %s29, 1
      %p167 = por %p165, %p166
      %p169 = scmp.ne.s32.totalorder %s154, %s168
      %p170 = scmp.eq.s32.totalorder %s29, 0
      %p171 = por %p169, %p170
      %s173 = sadd.s32 %s172, 1
      %p176 = scmp.eq.s32.totalorder %s23, 1
      %p177 = scmp.ne.s32.totalorder %s172, %s174
      %p178 = scmp.eq.s32.totalorder %s23, 0
      %p179 = por %p177, %p178
      %p180 = scmp.ne.s32.totalorder %s172, %s174
      %p181 = scmp.eq.s32.totalorder %s28, 1
      %p182 = por %p180, %p181
      %p183 = scmp.ne.s32.totalorder %s174, %s175
      %p184 = scmp.eq.s32.totalorder %s28, 0
      %p185 = por %p183, %p184
      %p186 = scmp.ne.s32.totalorder %s174, %s175
      %p187 = scmp.eq.s32.totalorder %s29, 1
      %p188 = por %p186, %p187
      %p190 = scmp.ne.s32.totalorder %s175, %s189
      %p191 = scmp.eq.s32.totalorder %s29, 0
      %p192 = por %p190, %p191
      %s194 = sadd.s32 %s193, 1
      %p197 = scmp.eq.s32.totalorder %s23, 1
      %p198 = scmp.ne.s32.totalorder %s193, %s195
      %p199 = scmp.eq.s32.totalorder %s23, 0
      %p200 = por %p198, %p199
      %p201 = scmp.ne.s32.totalorder %s193, %s195
      %p202 = scmp.eq.s32.totalorder %s28, 1
      %p203 = por %p201, %p202
      %p204 = scmp.ne.s32.totalorder %s195, %s196
      %p205 = scmp.eq.s32.totalorder %s28, 0
      %p206 = por %p204, %p205
      %p207 = scmp.ne.s32.totalorder %s195, %s196
      %p208 = scmp.eq.s32.totalorder %s29, 1
      %p209 = por %p207, %p208
      %p211 = scmp.ne.s32.totalorder %s196, %s210
      %p212 = scmp.eq.s32.totalorder %s29, 0
      %p213 = por %p211, %p212
      %s215 = sadd.s32 %s214, 1
      %p218 = scmp.eq.s32.totalorder %s23, 1
      %p219 = scmp.ne.s32.totalorder %s214, %s216
      %p220 = scmp.eq.s32.totalorder %s23, 0
      %p221 = por %p219, %p220
      %p222 = scmp.ne.s32.totalorder %s214, %s216
      %p223 = scmp.eq.s32.totalorder %s28, 1
      %p224 = por %p222, %p223
      %p225 = scmp.ne.s32.totalorder %s216, %s217
      %p226 = scmp.eq.s32.totalorder %s28, 0
      %p227 = por %p225, %p226
      %p228 = scmp.ne.s32.totalorder %s216, %s217
      %p229 = scmp.eq.s32.totalorder %s29, 1
      %p230 = por %p228, %p229
      %p232 = scmp.ne.s32.totalorder %s217, %s231
      %p233 = scmp.eq.s32.totalorder %s29, 0
      %p234 = por %p232, %p233
      %s236 = sadd.s32 %s235, 1
      %p239 = scmp.eq.s32.totalorder %s23, 1
      %p240 = scmp.ne.s32.totalorder %s235, %s237
      %p241 = scmp.eq.s32.totalorder %s23, 0
      %p242 = por %p240, %p241
      %p243 = scmp.ne.s32.totalorder %s235, %s237
      %p244 = scmp.eq.s32.totalorder %s28, 1
      %p245 = por %p243, %p244
      %p246 = scmp.ne.s32.totalorder %s237, %s238
      %p247 = scmp.eq.s32.totalorder %s28, 0
      %p248 = por %p246, %p247
      %p249 = scmp.ne.s32.totalorder %s237, %s238
      %p250 = scmp.eq.s32.totalorder %s29, 1
      %p251 = por %p249, %p250
      %p253 = scmp.ne.s32.totalorder %s238, %s252
      %p254 = scmp.eq.s32.totalorder %s29, 0
      %p255 = por %p253, %p254
      %s257 = sadd.s32 %s256, 1
      %p260 = scmp.eq.s32.totalorder %s23, 1
      %p261 = scmp.ne.s32.totalorder %s256, %s258
      %p262 = scmp.eq.s32.totalorder %s23, 0
      %p263 = por %p261, %p262
      %p264 = scmp.ne.s32.totalorder %s256, %s258
      %p265 = scmp.eq.s32.totalorder %s28, 1
      %p266 = por %p264, %p265
      %p267 = scmp.ne.s32.totalorder %s258, %s259
      %p268 = scmp.eq.s32.totalorder %s28, 0
      %p269 = por %p267, %p268
      %p270 = scmp.ne.s32.totalorder %s258, %s259
      %p271 = scmp.eq.s32.totalorder %s29, 1
      %p272 = por %p270, %p271
      %p274 = scmp.ne.s32.totalorder %s259, %s273
      %p275 = scmp.eq.s32.totalorder %s29, 0
      %p276 = por %p274, %p275
      %s278 = sadd.s32 %s277, 1
      %p281 = scmp.eq.s32.totalorder %s23, 1
      %p282 = scmp.ne.s32.totalorder %s277, %s279
      %p283 = scmp.eq.s32.totalorder %s23, 0
      %p284 = por %p282, %p283
      %p285 = scmp.ne.s32.totalorder %s277, %s279
      %p286 = scmp.eq.s32.totalorder %s28, 1
      %p287 = por %p285, %p286
      %p288 = scmp.ne.s32.totalorder %s279, %s280
      %p289 = scmp.eq.s32.totalorder %s28, 0
      %p290 = por %p288, %p289
      %p291 = scmp.ne.s32.totalorder %s279, %s280
      %p292 = scmp.eq.s32.totalorder %s29, 1
      %p293 = por %p291, %p292
      %p295 = scmp.ne.s32.totalorder %s280, %s294
      %p296 = scmp.eq.s32.totalorder %s29, 0
      %p297 = por %p295, %p296
      %s299 = sadd.s32 %s298, 1
      %p302 = scmp.eq.s32.totalorder %s23, 1
      %p303 = scmp.ne.s32.totalorder %s298, %s300
      %p304 = scmp.eq.s32.totalorder %s23, 0
      %p305 = por %p303, %p304
      %p306 = scmp.ne.s32.totalorder %s298, %s300
      %p307 = scmp.eq.s32.totalorder %s28, 1
      %p308 = por %p306, %p307
      %p309 = scmp.ne.s32.totalorder %s300, %s301
      %p310 = scmp.eq.s32.totalorder %s28, 0
      %p311 = por %p309, %p310
      %p312 = scmp.ne.s32.totalorder %s300, %s301
      %p313 = scmp.eq.s32.totalorder %s29, 1
      %p314 = por %p312, %p313
      %p316 = scmp.ne.s32.totalorder %s301, %s315
      %p317 = scmp.eq.s32.totalorder %s29, 0
      %p318 = por %p316, %p317
      %s319 = ssub.s32 %s30, %s42
      %s320 = ssub.s32 %s31, %s38
      %s321 = sor.u32 %s319, %s320
      %p322 = scmp.eq.s32.totalorder %s321, 0
      %s324 = sadd.s32 %s323, 1
      %s325 = scalar_select %p322, %s323, %s324
      %p328 = pneg %p322
      %p329 = scmp.eq.s32.totalorder %s23, 1
      %p330 = por %p328, %p329
      %p331 = scmp.ne.s32.totalorder %s323, %s326
      %p332 = scmp.eq.s32.totalorder %s23, 0
      %p333 = por %p331, %p332
      %p334 = scmp.ne.s32.totalorder %s323, %s326
      %p335 = scmp.eq.s32.totalorder %s28, 1
      %p336 = por %p334, %p335
      %p337 = scmp.ne.s32.totalorder %s326, %s327
      %p338 = scmp.eq.s32.totalorder %s28, 0
      %p339 = por %p337, %p338
      %p340 = scmp.ne.s32.totalorder %s326, %s327
      %p341 = scmp.eq.s32.totalorder %s29, 1
      %p342 = por %p340, %p341
      %p344 = scmp.ne.s32.totalorder %s327, %s343
      %p345 = scmp.eq.s32.totalorder %s29, 0
      %p346 = por %p344, %p345
      %p347 = scmp.le.s32.totalorder 1, %s23
      %p348 = scmp.lt.s32.totalorder %s23, 3
      %p349 = pnand %p347, %p348
      %p350 = pneg %p349
      // Predicated region
      $region9: #{tpu_custom_call.1} parent=5 // pred_check
        _
      $region10: #{tpu_custom_call.1} parent=5 // pred_check_branch
        %352 = sbr.rel (%p349) target = $region12
      $region11: #{tpu_custom_call.1} parent=5 // pred_region
        %s353 = ssub.s32 %s23, 1
        // Predicated region
        $region13: #{tpu_custom_call.1} parent=11 // pred_check
          %p354 = pneg %p164
        $region14: #{tpu_custom_call.1} parent=11 // pred_check_branch
          %356 = sbr.rel (%p354) target = $region16
        $region15: #{tpu_custom_call.1} parent=11 // pred_region
          %s358 = ssub.s32 2048, 2048
          %359 = vsyncadd [#allocation4], %s358
          %s360 = sshll.u32 [#allocation3], 4
          %s361 = int_to_ptr.vmem [resolvable:$true] %s360
          %366 = dma.hbm_to_vmem [thread:$0]  %s4, 2048, %s361, [#allocation4], 128, 128, 8
        $region16: #{tpu_custom_call.1} parent=11 // pred_fallthru
          _
        // Predicated region
        $region17: #{tpu_custom_call.1} parent=11 // pred_check
          %p367 = pneg %p185
        $region18: #{tpu_custom_call.1} parent=11 // pred_check_branch
          %369 = sbr.rel (%p367) target = $region20
        $region19: #{tpu_custom_call.1} parent=11 // pred_region
          %s371 = ssub.s32 2048, 2048
          %372 = vsyncadd [#allocation6], %s371
          %s373 = sshll.u32 [#allocation5], 4
          %s374 = int_to_ptr.vmem [resolvable:$true] %s373
          %379 = dma.hbm_to_vmem [thread:$0]  %s5, 2048, %s374, [#allocation6], 128, 128, 8
        $region20: #{tpu_custom_call.1} parent=11 // pred_fallthru
          _
        // Predicated region
        $region21: #{tpu_custom_call.1} parent=11 // pred_check
          %p380 = pneg %p206
        $region22: #{tpu_custom_call.1} parent=11 // pred_check_branch
          %382 = sbr.rel (%p380) target = $region24
        $region23: #{tpu_custom_call.1} parent=11 // pred_region
          %s384 = ssub.s32 2048, 2048
          %385 = vsyncadd [#allocation6], %s384
          %s386 = sshll.u32 [#allocation7], 4
          %s387 = int_to_ptr.vmem [resolvable:$true] %s386
          %392 = dma.hbm_to_vmem [thread:$0]  %s6, 2048, %s387, [#allocation6], 128, 128, 8
        $region24: #{tpu_custom_call.1} parent=11 // pred_fallthru
          _
        // Predicated region
        $region25: #{tpu_custom_call.1} parent=11 // pred_check
          %p393 = pneg %p227
        $region26: #{tpu_custom_call.1} parent=11 // pred_check_branch
          %395 = sbr.rel (%p393) target = $region28
        $region27: #{tpu_custom_call.1} parent=11 // pred_region
          _
        $region28: #{tpu_custom_call.1} parent=11 // pred_fallthru
          _
        // Predicated region
        $region29: #{tpu_custom_call.1} parent=11 // pred_check
          %p396 = pneg %p248
        $region30: #{tpu_custom_call.1} parent=11 // pred_check_branch
          %398 = sbr.rel (%p396) target = $region32
        $region31: #{tpu_custom_call.1} parent=11 // pred_region
          %s400 = ssub.s32 4096, 4096
          %401 = vsyncadd [#allocation9], %s400
          %s402 = sshll.u32 [#allocation8], 4
          %s403 = int_to_ptr.vmem [resolvable:$true] %s402
          %408 = dma.hbm_to_vmem [thread:$0]  %s8, 4096, %s403, [#allocation9], 128, 128, 8
        $region32: #{tpu_custom_call.1} parent=11 // pred_fallthru
          _
        // Predicated region
        $region33: #{tpu_custom_call.1} parent=11 // pred_check
          %p409 = pneg %p269
        $region34: #{tpu_custom_call.1} parent=11 // pred_check_branch
          %411 = sbr.rel (%p409) target = $region36
        $region35: #{tpu_custom_call.1} parent=11 // pred_region
          _
        $region36: #{tpu_custom_call.1} parent=11 // pred_fallthru
          _
        // Predicated region
        $region37: #{tpu_custom_call.1} parent=11 // pred_check
          %p412 = pneg %p290
        $region38: #{tpu_custom_call.1} parent=11 // pred_check_branch
          %414 = sbr.rel (%p412) target = $region40
        $region39: #{tpu_custom_call.1} parent=11 // pred_region
          _
        $region40: #{tpu_custom_call.1} parent=11 // pred_fallthru
          _
        // Predicated region
        $region41: #{tpu_custom_call.1} parent=11 // pred_check
          %p415 = pneg %p311
        $region42: #{tpu_custom_call.1} parent=11 // pred_check_branch
          %417 = sbr.rel (%p415) target = $region44
        $region43: #{tpu_custom_call.1} parent=11 // pred_region
          _
        $region44: #{tpu_custom_call.1} parent=11 // pred_fallthru
          _
      $region12: #{tpu_custom_call.1} parent=5 // pred_fallthru
        _
      %p418 = scmp.lt.s32.totalorder %s23, 2
      // Predicated region
      $region45: #{tpu_custom_call.1} parent=5 // pred_check
        %p419 = pneg %p418
      $region46: #{tpu_custom_call.1} parent=5 // pred_check_branch
        %421 = sbr.rel (%p419) target = $region48
      $region47: #{tpu_custom_call.1} parent=5 // pred_region
        // Predicated region
        $region49: #{tpu_custom_call.1} parent=47 // pred_check
          %p422 = pneg %p57
        $region50: #{tpu_custom_call.1} parent=47 // pred_check_branch
          %424 = sbr.rel (%p422) target = $region52
        $region51: #{tpu_custom_call.1} parent=47 // pred_region
          %p425 = scmp.lt.s32.totalorder %s30, 1
          %s426 = scalar_select %p425, %s30, 1
          %p427 = scmp.lt.s32.totalorder %s31, 0
          %s428 = scalar_select %p427, %s31, 0
          %s429 = sadd.s32 %s428, %s426
          %s430 = smul.addr %s429, 8
          %s431 = scalar_lea.vmem %s0, %s430
        $region52: #{tpu_custom_call.1} parent=47 // pred_fallthru
          _
        // Predicated region
        $region53: #{tpu_custom_call.1} parent=47 // pred_check
          %p432 = pneg %p83
        $region54: #{tpu_custom_call.1} parent=47 // pred_check_branch
          %434 = sbr.rel (%p432) target = $region56
        $region55: #{tpu_custom_call.1} parent=47 // pred_region
          %p435 = scmp.lt.s32.totalorder %s30, 1
          %s436 = scalar_select %p435, %s30, 1
          %s437 = smul.addr %s436, 16
          %s438 = smul.addr %s437, 8
          %s439 = scalar_lea.vmem %s1, %s438
        $region56: #{tpu_custom_call.1} parent=47 // pred_fallthru
          _
        // Predicated region
        $region57: #{tpu_custom_call.1} parent=47 // pred_check
          %p440 = pneg %p111
        $region58: #{tpu_custom_call.1} parent=47 // pred_check_branch
          %442 = sbr.rel (%p440) target = $region60
        $region59: #{tpu_custom_call.1} parent=47 // pred_region
          %p443 = scmp.lt.s32.totalorder %s30, 1
          %s444 = scalar_select %p443, %s30, 1
          %p445 = scmp.lt.s32.totalorder %s31, 0
          %s446 = scalar_select %p445, %s31, 0
          %s447 = sadd.s32 %s446, %s444
          %s448 = smul.addr %s447, 8
          %s449 = scalar_lea.vmem %s2, %s448
        $region60: #{tpu_custom_call.1} parent=47 // pred_fallthru
          _
        // Predicated region
        $region61: #{tpu_custom_call.1} parent=47 // pred_check
          %p450 = pneg %p137
        $region62: #{tpu_custom_call.1} parent=47 // pred_check_branch
          %452 = sbr.rel (%p450) target = $region64
        $region63: #{tpu_custom_call.1} parent=47 // pred_region
          %p453 = scmp.lt.s32.totalorder %s30, 1
          %s454 = scalar_select %p453, %s30, 1
          %s455 = smul.addr %s454, 16
          %s456 = smul.addr %s455, 8
          %s457 = scalar_lea.vmem %s3, %s456
        $region64: #{tpu_custom_call.1} parent=47 // pred_fallthru
          _
      $region48: #{tpu_custom_call.1} parent=5 // pred_fallthru
        _
      %p458 = scmp.le.s32.totalorder 1, %s23
      %p459 = scmp.lt.s32.totalorder %s23, 3
      %p460 = pnand %p458, %p459
      %p461 = pneg %p460
      // Predicated region
      $region65: #{tpu_custom_call.1} parent=5 // pred_check
        _
      $region66: #{tpu_custom_call.1} parent=5 // pred_check_branch
        %463 = sbr.rel (%p460) target = $region68
      $region67: #{tpu_custom_call.1} parent=5 // pred_region
        %s464 = ssub.s32 %s23, 1
        // Predicated region
        $region69: #{tpu_custom_call.1} parent=67 // pred_check
          %p465 = pneg %p164
        $region70: #{tpu_custom_call.1} parent=67 // pred_check_branch
          %467 = sbr.rel (%p465) target = $region72
        $region71: #{tpu_custom_call.1} parent=67 // pred_region
          %468 = dma.done [#allocation4], 2048
        $region72: #{tpu_custom_call.1} parent=67 // pred_fallthru
          _
        // Predicated region
        $region73: #{tpu_custom_call.1} parent=67 // pred_check
          %p469 = pneg %p185
        $region74: #{tpu_custom_call.1} parent=67 // pred_check_branch
          %471 = sbr.rel (%p469) target = $region76
        $region75: #{tpu_custom_call.1} parent=67 // pred_region
          %472 = dma.done [#allocation6], 2048
        $region76: #{tpu_custom_call.1} parent=67 // pred_fallthru
          _
        // Predicated region
        $region77: #{tpu_custom_call.1} parent=67 // pred_check
          %p473 = pneg %p206
        $region78: #{tpu_custom_call.1} parent=67 // pred_check_branch
          %475 = sbr.rel (%p473) target = $region80
        $region79: #{tpu_custom_call.1} parent=67 // pred_region
          %476 = dma.done [#allocation6], 2048
        $region80: #{tpu_custom_call.1} parent=67 // pred_fallthru
          _
        // Predicated region
        $region81: #{tpu_custom_call.1} parent=67 // pred_check
          %p477 = pneg %p248
        $region82: #{tpu_custom_call.1} parent=67 // pred_check_branch
          %479 = sbr.rel (%p477) target = $region84
        $region83: #{tpu_custom_call.1} parent=67 // pred_region
          %480 = dma.done [#allocation9], 4096
        $region84: #{tpu_custom_call.1} parent=67 // pred_fallthru
          _
        %p481 = scmp.lt.s32.totalorder %s32, 1
        %s482 = scalar_select %p481, %s32, 1
        %p483 = scmp.lt.s32.totalorder %s33, 0
        %s484 = scalar_select %p483, %s33, 0
        %s485 = sadd.s32 %s484, %s482
        %s486 = smul.addr %s485, 8
        %s487 = scalar_lea.vmem %s0, %s486
        %p488 = pneg %p63
        %p489 = pneg %p60
        %p490 = scmp.lt.s32.totalorder %s32, 1
        %s491 = scalar_select %p490, %s32, 1
        %s492 = smul.addr %s491, 16
        %s493 = smul.addr %s492, 8
        %s494 = scalar_lea.vmem %s1, %s493
        %p495 = pneg %p89
        %p496 = pneg %p86
        %p497 = scmp.lt.s32.totalorder %s32, 1
        %s498 = scalar_select %p497, %s32, 1
        %p499 = scmp.lt.s32.totalorder %s33, 0
        %s500 = scalar_select %p499, %s33, 0
        %s501 = sadd.s32 %s500, %s498
        %s502 = smul.addr %s501, 8
        %s503 = scalar_lea.vmem %s2, %s502
        %p504 = pneg %p117
        %p505 = pneg %p114
        %p506 = scmp.lt.s32.totalorder %s32, 1
        %s507 = scalar_select %p506, %s32, 1
        %s508 = smul.addr %s507, 16
        %s509 = smul.addr %s508, 8
        %s510 = scalar_lea.vmem %s3, %s509
        %p511 = pneg %p143
        %p512 = pneg %p140
        %p513 = pneg %p164
        %p514 = pneg %p161
        %p515 = pneg %p185
        %p516 = pneg %p182
        %p517 = pneg %p206
        %p518 = pneg %p203
        %p519 = pneg %p227
        %p520 = pneg %p224
        %p521 = pneg %p248
        %p522 = pneg %p245
        %p523 = pneg %p269
        %p524 = pneg %p266
        %p525 = pneg %p290
        %p526 = pneg %p287
        %p527 = pneg %p311
        %p528 = pneg %p308
        %p529 = pneg %p339
        %p530 = pneg %p336
        %p531 = scmp.lt.s32.totalorder %s32, 1
        %s532 = scalar_select %p531, %s32, 1
        %p533 = scmp.lt.s32.totalorder %s33, 0
        %s534 = scalar_select %p533, %s33, 0
        %s535 = smul.addr %s534, 128
        %s536 = smul.addr %s532, 128
        %s537 = sadd.s32 %s535, %s536
        %s538 = smul.addr %s537, 8
        %s539 = scalar_lea.vmem %s12, %s538
        %p540 = scmp.lt.s32.totalorder %s32, 1
        %s541 = scalar_select %p540, %s32, 1
        %p542 = scmp.lt.s32.totalorder %s33, 0
        %s543 = scalar_select %p542, %s33, 0
        %s544 = sadd.s32 %s543, %s541
        %s545 = smul.addr %s544, 8
        %s546 = scalar_lea.vmem %s0, %s545
        %p547 = scmp.lt.s32.totalorder %s32, 1
        %s548 = scalar_select %p547, %s32, 1
        %s549 = smul.addr %s548, 16
        %s550 = smul.addr %s549, 8
        %s551 = scalar_lea.vmem %s1, %s550
        %p552 = scmp.lt.s32.totalorder %s32, 1
        %s553 = scalar_select %p552, %s32, 1
        %p554 = scmp.lt.s32.totalorder %s33, 0
        %s555 = scalar_select %p554, %s33, 0
        %s556 = sadd.s32 %s555, %s553
        %s557 = smul.addr %s556, 8
        %s558 = scalar_lea.vmem %s2, %s557
        %p559 = scmp.lt.s32.totalorder %s32, 1
        %s560 = scalar_select %p559, %s32, 1
        %s561 = smul.addr %s560, 16
        %s562 = smul.addr %s561, 8
        %s563 = scalar_lea.vmem %s3, %s562
        %p564 = scmp.lt.s32.totalorder %s32, 1
        %s565 = scalar_select %p564, %s32, 1
        %p566 = scmp.lt.s32.totalorder %s33, 0
        %s567 = scalar_select %p566, %s33, 0
        %s568 = smul.addr %s567, 128
        %s569 = smul.addr %s565, 128
        %s570 = sadd.s32 %s568, %s569
        %s571 = smul.addr %s570, 8
        %s572 = scalar_lea.vmem %s12, %s571
        %v574 = vld [vmem:[%s546] sm:$0xff]
        %v575 = vld [vmem:[%s551] sm:$0xff]
        %v576 = vld [vmem:[%s551 + $0x8] sm:$0xff]
        %v577 = vld [vmem:[%s551 + $0x10] sm:$0xff]
        %v578 = vld [vmem:[%s551 + $0x18] sm:$0xff]
        %v579 = vld [vmem:[%s551 + $0x20] sm:$0xff]
        %v580 = vld [vmem:[%s551 + $0x28] sm:$0xff]
        %v581 = vld [vmem:[%s551 + $0x30] sm:$0xff]
        %v582 = vld [vmem:[%s551 + $0x38] sm:$0xff]
        %v583 = vld [vmem:[%s551 + $0x40] sm:$0xff]
        %v584 = vld [vmem:[%s551 + $0x48] sm:$0xff]
        %v585 = vld [vmem:[%s551 + $0x50] sm:$0xff]
        %v586 = vld [vmem:[%s551 + $0x58] sm:$0xff]
        %v587 = vld [vmem:[%s551 + $0x60] sm:$0xff]
        %v588 = vld [vmem:[%s551 + $0x68] sm:$0xff]
        %v589 = vld [vmem:[%s551 + $0x70] sm:$0xff]
        %v590 = vld [vmem:[%s551 + $0x78] sm:$0xff]
        %v591 = vpack.c.bf16 %v574, %v574
        %v592 = vld [vmem:[#allocation3] sm:$0xff]
        %v593 = vld [vmem:[#allocation3 + $0x8] sm:$0xff]
        %v594 = vld [vmem:[#allocation3 + $0x10] sm:$0xff]
        %v595 = vld [vmem:[#allocation3 + $0x18] sm:$0xff]
        %v596 = vld [vmem:[#allocation3 + $0x20] sm:$0xff]
        %v597 = vld [vmem:[#allocation3 + $0x28] sm:$0xff]
        %v598 = vld [vmem:[#allocation3 + $0x30] sm:$0xff]
        %v599 = vld [vmem:[#allocation3 + $0x38] sm:$0xff]
        %v600 = vld [vmem:[#allocation3 + $0x40] sm:$0xff]
        %v601 = vld [vmem:[#allocation3 + $0x48] sm:$0xff]
        %v602 = vld [vmem:[#allocation3 + $0x50] sm:$0xff]
        %v603 = vld [vmem:[#allocation3 + $0x58] sm:$0xff]
        %v604 = vld [vmem:[#allocation3 + $0x60] sm:$0xff]
        %v605 = vld [vmem:[#allocation3 + $0x68] sm:$0xff]
        %v606 = vld [vmem:[#allocation3 + $0x70] sm:$0xff]
        %v607 = vld [vmem:[#allocation3 + $0x78] sm:$0xff]
        %v624 = vunpack.c.l.b16 %v592
        %v625 = vunpack.c.h.b16 %v592
        %v626 = vunpack.c.l.b16 %v593
        %v627 = vunpack.c.h.b16 %v593
        %v628 = vunpack.c.l.b16 %v594
        %v629 = vunpack.c.h.b16 %v594
        %v630 = vunpack.c.l.b16 %v595
        %v631 = vunpack.c.h.b16 %v595
        %v632 = vunpack.c.l.b16 %v596
        %v633 = vunpack.c.h.b16 %v596
        %v634 = vunpack.c.l.b16 %v597
        %v635 = vunpack.c.h.b16 %v597
        %v636 = vunpack.c.l.b16 %v598
        %v637 = vunpack.c.h.b16 %v598
        %v638 = vunpack.c.l.b16 %v599
        %v639 = vunpack.c.h.b16 %v599
        %v640 = vunpack.c.l.b16 %v600
        %v641 = vunpack.c.h.b16 %v600
        %v642 = vunpack.c.l.b16 %v601
        %v643 = vunpack.c.h.b16 %v601
        %v644 = vunpack.c.l.b16 %v602
        %v645 = vunpack.c.h.b16 %v602
        %v646 = vunpack.c.l.b16 %v603
        %v647 = vunpack.c.h.b16 %v603
        %v648 = vunpack.c.l.b16 %v604
        %v649 = vunpack.c.h.b16 %v604
        %v650 = vunpack.c.l.b16 %v605
        %v651 = vunpack.c.h.b16 %v605
        %v652 = vunpack.c.l.b16 %v606
        %v653 = vunpack.c.h.b16 %v606
        %v654 = vunpack.c.l.b16 %v607
        %v655 = vunpack.c.h.b16 %v607
        %v656 = vpack.c.b16 %v626, %v624
        %v657 = vpack.c.b16 %v627, %v625
        %v658 = vpack.c.b16 %v630, %v628
        %v659 = vpack.c.b16 %v631, %v629
        %v660 = vpack.c.b16 %v634, %v632
        %v661 = vpack.c.b16 %v635, %v633
        %v662 = vpack.c.b16 %v638, %v636
        %v663 = vpack.c.b16 %v639, %v637
        %v664 = vpack.c.b16 %v642, %v640
        %v665 = vpack.c.b16 %v643, %v641
        %v666 = vpack.c.b16 %v646, %v644
        %v667 = vpack.c.b16 %v647, %v645
        %v668 = vpack.c.b16 %v650, %v648
        %v669 = vpack.c.b16 %v651, %v649
        %v670 = vpack.c.b16 %v654, %v652
        %v671 = vpack.c.b16 %v655, %v653
        %688 = vmatprep.subr.bf16.mxu0 %v657
        %689 = vmatpush1.bf16.msra.mxu0 %v656
        %690 = vmatprep.subr.bf16.mxu0 %v659
        %691 = vmatpush1.bf16.msra.mxu0 %v658
        %692 = vmatprep.subr.bf16.mxu0 %v661
        %693 = vmatpush1.bf16.msra.mxu0 %v660
        %694 = vmatprep.subr.bf16.mxu0 %v663
        %695 = vmatpush1.bf16.msra.mxu0 %v662
        %696 = vmatprep.subr.bf16.mxu0 %v665
        %697 = vmatpush1.bf16.msra.mxu0 %v664
        %698 = vmatprep.subr.bf16.mxu0 %v667
        %699 = vmatpush1.bf16.msra.mxu0 %v666
        %700 = vmatprep.subr.bf16.mxu0 %v669
        %701 = vmatpush1.bf16.msra.mxu0 %v668
        %702 = vmatprep.subr.bf16.mxu0 %v671
        %703 = vmatpush1.bf16.msra.mxu0 %v670
        %704 = vmatprep.subr.bf16.mxu0 0
        %705 = vmatpush1.bf16.msra.mxu0 0
        %706 = vmatprep.subr.bf16.mxu0 0
        %707 = vmatpush1.bf16.msra.mxu0 0
        %708 = vmatprep.subr.bf16.mxu0 0
        %709 = vmatpush1.bf16.msra.mxu0 0
        %710 = vmatprep.subr.bf16.mxu0 0
        %711 = vmatpush1.bf16.msra.mxu0 0
        %712 = vmatprep.subr.bf16.mxu0 0
        %713 = vmatpush1.bf16.msra.mxu0 0
        %714 = vmatprep.subr.bf16.mxu0 0
        %715 = vmatpush1.bf16.msra.mxu0 0
        %716 = vmatprep.subr.bf16.mxu0 0
        %717 = vmatpush1.bf16.msra.mxu0 0
        %718 = vmatprep.subr.bf16.mxu0 0
        %719 = vmatpush1.bf16.msra.mxu0 0
        %720 = vmatprep.mubr.bf16.mxu0 0
        %721 = vmatmul.mubr.bf16.gmra.mrb[0].mxu0 %v591
        %v722 = vpop.f32.mrb[0].mxu0
        %v723 = vadd.f32 0.0, %v722
        %v724 = vpop.f32.mrb[0].mxu0
        %v725 = vadd.f32 0.0, %v724
        %v726 = vpop.f32.mrb[0].mxu0
        %v727 = vpop.f32.mrb[0].mxu0
        %728 = vdwg.mxu0
        %v729 = vpack.c.bf16 %v576, %v575
        %v730 = vpack.c.bf16 %v578, %v577
        %v731 = vpack.c.bf16 %v580, %v579
        %v732 = vpack.c.bf16 %v582, %v581
        %v733 = vpack.c.bf16 %v584, %v583
        %v734 = vpack.c.bf16 %v586, %v585
        %v735 = vpack.c.bf16 %v588, %v587
        %v736 = vpack.c.bf16 %v590, %v589
        %v737 = vld [vmem:[#allocation5] sm:$0xff]
        %v738 = vld [vmem:[#allocation5 + $0x8] sm:$0xff]
        %v739 = vld [vmem:[#allocation5 + $0x10] sm:$0xff]
        %v740 = vld [vmem:[#allocation5 + $0x18] sm:$0xff]
        %v741 = vld [vmem:[#allocation5 + $0x20] sm:$0xff]
        %v742 = vld [vmem:[#allocation5 + $0x28] sm:$0xff]
        %v743 = vld [vmem:[#allocation5 + $0x30] sm:$0xff]
        %v744 = vld [vmem:[#allocation5 + $0x38] sm:$0xff]
        %v745 = vld [vmem:[#allocation5 + $0x40] sm:$0xff]
        %v746 = vld [vmem:[#allocation5 + $0x48] sm:$0xff]
        %v747 = vld [vmem:[#allocation5 + $0x50] sm:$0xff]
        %v748 = vld [vmem:[#allocation5 + $0x58] sm:$0xff]
        %v749 = vld [vmem:[#allocation5 + $0x60] sm:$0xff]
        %v750 = vld [vmem:[#allocation5 + $0x68] sm:$0xff]
        %v751 = vld [vmem:[#allocation5 + $0x70] sm:$0xff]
        %v752 = vld [vmem:[#allocation5 + $0x78] sm:$0xff]
        %v769 = vunpack.c.l.b16 %v737
        %v770 = vunpack.c.h.b16 %v737
        %v771 = vunpack.c.l.b16 %v738
        %v772 = vunpack.c.h.b16 %v738
        %v773 = vunpack.c.l.b16 %v739
        %v774 = vunpack.c.h.b16 %v739
        %v775 = vunpack.c.l.b16 %v740
        %v776 = vunpack.c.h.b16 %v740
        %v777 = vunpack.c.l.b16 %v741
        %v778 = vunpack.c.h.b16 %v741
        %v779 = vunpack.c.l.b16 %v742
        %v780 = vunpack.c.h.b16 %v742
        %v781 = vunpack.c.l.b16 %v743
        %v782 = vunpack.c.h.b16 %v743
        %v783 = vunpack.c.l.b16 %v744
        %v784 = vunpack.c.h.b16 %v744
        %v785 = vunpack.c.l.b16 %v745
        %v786 = vunpack.c.h.b16 %v745
        %v787 = vunpack.c.l.b16 %v746
        %v788 = vunpack.c.h.b16 %v746
        %v789 = vunpack.c.l.b16 %v747
        %v790 = vunpack.c.h.b16 %v747
        %v791 = vunpack.c.l.b16 %v748
        %v792 = vunpack.c.h.b16 %v748
        %v793 = vunpack.c.l.b16 %v749
        %v794 = vunpack.c.h.b16 %v749
        %v795 = vunpack.c.l.b16 %v750
        %v796 = vunpack.c.h.b16 %v750
        %v797 = vunpack.c.l.b16 %v751
        %v798 = vunpack.c.h.b16 %v751
        %v799 = vunpack.c.l.b16 %v752
        %v800 = vunpack.c.h.b16 %v752
        %v801 = vpack.c.b16 %v771, %v769
        %v802 = vpack.c.b16 %v772, %v770
        %v803 = vpack.c.b16 %v775, %v773
        %v804 = vpack.c.b16 %v776, %v774
        %v805 = vpack.c.b16 %v779, %v777
        %v806 = vpack.c.b16 %v780, %v778
        %v807 = vpack.c.b16 %v783, %v781
        %v808 = vpack.c.b16 %v784, %v782
        %v809 = vpack.c.b16 %v787, %v785
        %v810 = vpack.c.b16 %v788, %v786
        %v811 = vpack.c.b16 %v791, %v789
        %v812 = vpack.c.b16 %v792, %v790
        %v813 = vpack.c.b16 %v795, %v793
        %v814 = vpack.c.b16 %v796, %v794
        %v815 = vpack.c.b16 %v799, %v797
        %v816 = vpack.c.b16 %v800, %v798
        %833 = vmatprep.subr.bf16.mxu0 %v802
        %834 = vmatpush1.bf16.msra.mxu0 %v801
        %835 = vmatprep.subr.bf16.mxu0 %v804
        %836 = vmatpush1.bf16.msra.mxu0 %v803
        %837 = vmatprep.subr.bf16.mxu0 %v806
        %838 = vmatpush1.bf16.msra.mxu0 %v805
        %839 = vmatprep.subr.bf16.mxu0 %v808
        %840 = vmatpush1.bf16.msra.mxu0 %v807
        %841 = vmatprep.subr.bf16.mxu0 %v810
        %842 = vmatpush1.bf16.msra.mxu0 %v809
        %843 = vmatprep.subr.bf16.mxu0 %v812
        %844 = vmatpush1.bf16.msra.mxu0 %v811
        %845 = vmatprep.subr.bf16.mxu0 %v814
        %846 = vmatpush1.bf16.msra.mxu0 %v813
        %847 = vmatprep.subr.bf16.mxu0 %v816
        %848 = vmatpush1.bf16.msra.mxu0 %v815
        %849 = vmatprep.subr.bf16.mxu0 0
        %850 = vmatpush1.bf16.msra.mxu0 0
        %851 = vmatprep.subr.bf16.mxu0 0
        %852 = vmatpush1.bf16.msra.mxu0 0
        %853 = vmatprep.subr.bf16.mxu0 0
        %854 = vmatpush1.bf16.msra.mxu0 0
        %855 = vmatprep.subr.bf16.mxu0 0
        %856 = vmatpush1.bf16.msra.mxu0 0
        %857 = vmatprep.subr.bf16.mxu0 0
        %858 = vmatpush1.bf16.msra.mxu0 0
        %859 = vmatprep.subr.bf16.mxu0 0
        %860 = vmatpush1.bf16.msra.mxu0 0
        %861 = vmatprep.subr.bf16.mxu0 0
        %862 = vmatpush1.bf16.msra.mxu0 0
        %863 = vmatprep.subr.bf16.mxu0 0
        %864 = vmatpush1.bf16.msra.mxu0 0
        %865 = vmatprep.mubr.bf16.mxu0 0
        %866 = vmatmul.mubr.bf16.gmra.mrb[0].mxu0 %v729
        %v867 = vpop.f32.mrb[0].mxu0
        %v868 = vadd.f32 0.0, %v867
        %v869 = vpop.f32.mrb[0].mxu0
        %v870 = vadd.f32 0.0, %v869
        %v871 = vpop.f32.mrb[0].mxu0
        %v872 = vadd.f32 0.0, %v871
        %v873 = vpop.f32.mrb[0].mxu0
        %v874 = vadd.f32 0.0, %v873
        %875 = vmatprep.mubr.bf16.mxu0 0
        %876 = vmatmul.mubr.bf16.gmra.mrb[0].mxu0 %v730
        %v877 = vpop.f32.mrb[0].mxu0
        %v878 = vadd.f32 0.0, %v877
        %v879 = vpop.f32.mrb[0].mxu0
        %v880 = vadd.f32 0.0, %v879
        %v881 = vpop.f32.mrb[0].mxu0
        %v882 = vadd.f32 0.0, %v881
        %v883 = vpop.f32.mrb[0].mxu0
        %v884 = vadd.f32 0.0, %v883
        %885 = vmatprep.mubr.bf16.mxu0 0
        %886 = vmatmul.mubr.bf16.gmra.mrb[0].mxu0 %v731
        %v887 = vpop.f32.mrb[0].mxu0
        %v888 = vadd.f32 0.0, %v887
        %v889 = vpop.f32.mrb[0].mxu0
        %v890 = vadd.f32 0.0, %v889
        %v891 = vpop.f32.mrb[0].mxu0
        %v892 = vadd.f32 0.0, %v891
        %v893 = vpop.f32.mrb[0].mxu0
        %v894 = vadd.f32 0.0, %v893
        %895 = vmatprep.mubr.bf16.mxu0 0
        %896 = vmatmul.mubr.bf16.gmra.mrb[0].mxu0 %v732
        %v897 = vpop.f32.mrb[0].mxu0
        %v898 = vadd.f32 0.0, %v897
        %v899 = vpop.f32.mrb[0].mxu0
        %v900 = vadd.f32 0.0, %v899
        %v901 = vpop.f32.mrb[0].mxu0
        %v902 = vadd.f32 0.0, %v901
        %v903 = vpop.f32.mrb[0].mxu0
        %v904 = vadd.f32 0.0, %v903
        %905 = vmatprep.mubr.bf16.mxu0 0
        %906 = vmatmul.mubr.bf16.gmra.mrb[0].mxu0 %v733
        %v907 = vpop.f32.mrb[0].mxu0
        %v908 = vadd.f32 0.0, %v907
        %v909 = vpop.f32.mrb[0].mxu0
        %v910 = vadd.f32 0.0, %v909
        %v911 = vpop.f32.mrb[0].mxu0
        %v912 = vadd.f32 0.0, %v911
        %v913 = vpop.f32.mrb[0].mxu0
        %v914 = vadd.f32 0.0, %v913
        %915 = vmatprep.mubr.bf16.mxu0 0
        %916 = vmatmul.mubr.bf16.gmra.mrb[0].mxu0 %v734
        %v917 = vpop.f32.mrb[0].mxu0
        %v918 = vadd.f32 0.0, %v917
        %v919 = vpop.f32.mrb[0].mxu0
        %v920 = vadd.f32 0.0, %v919
        %v921 = vpop.f32.mrb[0].mxu0
        %v922 = vadd.f32 0.0, %v921
        %v923 = vpop.f32.mrb[0].mxu0
        %v924 = vadd.f32 0.0, %v923
        %925 = vmatprep.mubr.bf16.mxu0 0
        %926 = vmatmul.mubr.bf16.gmra.mrb[0].mxu0 %v735
        %v927 = vpop.f32.mrb[0].mxu0
        %v928 = vadd.f32 0.0, %v927
        %v929 = vpop.f32.mrb[0].mxu0
        %v930 = vadd.f32 0.0, %v929
        %v931 = vpop.f32.mrb[0].mxu0
        %v932 = vadd.f32 0.0, %v931
        %v933 = vpop.f32.mrb[0].mxu0
        %v934 = vadd.f32 0.0, %v933
        %935 = vmatprep.mubr.bf16.mxu0 0
        %936 = vmatmul.mubr.bf16.gmra.mrb[0].mxu0 %v736
        %v937 = vpop.f32.mrb[0].mxu0
        %v938 = vadd.f32 0.0, %v937
        %v939 = vpop.f32.mrb[0].mxu0
        %v940 = vadd.f32 0.0, %v939
        %v941 = vpop.f32.mrb[0].mxu0
        %v942 = vadd.f32 0.0, %v941
        %v943 = vpop.f32.mrb[0].mxu0
        %v944 = vadd.f32 0.0, %v943
        %945 = vdwg.mxu0
        %v946 = vlaneseq
        %v947 = vshrl.u32 %v946, 7
        %v948 = vsub.s32 0, %v947
        %v949 = vrot.slane %v574, %v948
        %v950 = vlaneseq
        %v951 = vshrl.u32 %v950, 7
        %v952 = vsub.s32 1, %v951
        %v953 = vrot.slane %v574, %v952
        %v954 = vlaneseq
        %v955 = vshrl.u32 %v954, 7
        %v956 = vsub.s32 2, %v955
        %v957 = vrot.slane %v574, %v956
        %v958 = vlaneseq
        %v959 = vshrl.u32 %v958, 7
        %v960 = vsub.s32 3, %v959
        %v961 = vrot.slane %v574, %v960
        %v962 = vlaneseq
        %v963 = vshrl.u32 %v962, 7
        %v964 = vsub.s32 4, %v963
        %v965 = vrot.slane %v574, %v964
        %v966 = vlaneseq
        %v967 = vshrl.u32 %v966, 7
        %v968 = vsub.s32 5, %v967
        %v969 = vrot.slane %v574, %v968
        %v970 = vlaneseq
        %v971 = vshrl.u32 %v970, 7
        %v972 = vsub.s32 6, %v971
        %v973 = vrot.slane %v574, %v972
        %v974 = vlaneseq
        %v975 = vshrl.u32 %v974, 7
        %v976 = vsub.s32 7, %v975
        %v977 = vrot.slane %v574, %v976
        %v978 = vlaneseq
        %v979 = vshrl.u32 %v978, 7
        %v980 = vsub.s32 0, %v979
        %v981 = vrot.slane %v723, %v980
        %v982 = vlaneseq
        %v983 = vshrl.u32 %v982, 7
        %v984 = vsub.s32 0, %v983
        %v985 = vrot.slane %v725, %v984
        %v986 = vlaneseq
        %v987 = vshrl.u32 %v986, 7
        %v988 = vsub.s32 1, %v987
        %v989 = vrot.slane %v723, %v988
        %v990 = vlaneseq
        %v991 = vshrl.u32 %v990, 7
        %v992 = vsub.s32 1, %v991
        %v993 = vrot.slane %v725, %v992
        %v994 = vlaneseq
        %v995 = vshrl.u32 %v994, 7
        %v996 = vsub.s32 2, %v995
        %v997 = vrot.slane %v723, %v996
        %v998 = vlaneseq
        %v999 = vshrl.u32 %v998, 7
        %v1000 = vsub.s32 2, %v999
        %v1001 = vrot.slane %v725, %v1000
        %v1002 = vlaneseq
        %v1003 = vshrl.u32 %v1002, 7
        %v1004 = vsub.s32 3, %v1003
        %v1005 = vrot.slane %v723, %v1004
        %v1006 = vlaneseq
        %v1007 = vshrl.u32 %v1006, 7
        %v1008 = vsub.s32 3, %v1007
        %v1009 = vrot.slane %v725, %v1008
        %v1010 = vlaneseq
        %v1011 = vshrl.u32 %v1010, 7
        %v1012 = vsub.s32 4, %v1011
        %v1013 = vrot.slane %v723, %v1012
        %v1014 = vlaneseq
        %v1015 = vshrl.u32 %v1014, 7
        %v1016 = vsub.s32 4, %v1015
        %v1017 = vrot.slane %v725, %v1016
        %v1018 = vlaneseq
        %v1019 = vshrl.u32 %v1018, 7
        %v1020 = vsub.s32 5, %v1019
        %v1021 = vrot.slane %v723, %v1020
        %v1022 = vlaneseq
        %v1023 = vshrl.u32 %v1022, 7
        %v1024 = vsub.s32 5, %v1023
        %v1025 = vrot.slane %v725, %v1024
        %v1026 = vlaneseq
        %v1027 = vshrl.u32 %v1026, 7
        %v1028 = vsub.s32 6, %v1027
        %v1029 = vrot.slane %v723, %v1028
        %v1030 = vlaneseq
        %v1031 = vshrl.u32 %v1030, 7
        %v1032 = vsub.s32 6, %v1031
        %v1033 = vrot.slane %v725, %v1032
        %v1034 = vlaneseq
        %v1035 = vshrl.u32 %v1034, 7
        %v1036 = vsub.s32 7, %v1035
        %v1037 = vrot.slane %v723, %v1036
        %v1038 = vlaneseq
        %v1039 = vshrl.u32 %v1038, 7
        %v1040 = vsub.s32 7, %v1039
        %v1041 = vrot.slane %v725, %v1040
        %v1042 = vld [vmem:[%s558] sm:$0x1]
        %v1043 = vlaneseq
        %v1044 = vshrl.u32 %v1043, 7
        %v1045 = vsub.s32 0, %v1044
        %v1046 = vrot.slane %v1042, %v1045
        %v1047 = vld [vmem:[%s558 + $0x1] sm:$0x1]
        %v1048 = vlaneseq
        %v1049 = vshrl.u32 %v1048, 7
        %v1050 = vsub.s32 0, %v1049
        %v1051 = vrot.slane %v1047, %v1050
        %v1052 = vld [vmem:[%s558 + $0x2] sm:$0x1]
        %v1053 = vlaneseq
        %v1054 = vshrl.u32 %v1053, 7
        %v1055 = vsub.s32 0, %v1054
        %v1056 = vrot.slane %v1052, %v1055
        %v1057 = vld [vmem:[%s558 + $0x3] sm:$0x1]
        %v1058 = vlaneseq
        %v1059 = vshrl.u32 %v1058, 7
        %v1060 = vsub.s32 0, %v1059
        %v1061 = vrot.slane %v1057, %v1060
        %v1062 = vld [vmem:[%s558 + $0x4] sm:$0x1]
        %v1063 = vlaneseq
        %v1064 = vshrl.u32 %v1063, 7
        %v1065 = vsub.s32 0, %v1064
        %v1066 = vrot.slane %v1062, %v1065
        %v1067 = vld [vmem:[%s558 + $0x5] sm:$0x1]
        %v1068 = vlaneseq
        %v1069 = vshrl.u32 %v1068, 7
        %v1070 = vsub.s32 0, %v1069
        %v1071 = vrot.slane %v1067, %v1070
        %v1072 = vld [vmem:[%s558 + $0x6] sm:$0x1]
        %v1073 = vlaneseq
        %v1074 = vshrl.u32 %v1073, 7
        %v1075 = vsub.s32 0, %v1074
        %v1076 = vrot.slane %v1072, %v1075
        %v1077 = vld [vmem:[%s558 + $0x7] sm:$0x1]
        %v1078 = vlaneseq
        %v1079 = vshrl.u32 %v1078, 7
        %v1080 = vsub.s32 0, %v1079
        %v1081 = vrot.slane %v1077, %v1080
        %v1082 = vld [vmem:[%s563] sm:$0xff]
        %v1083 = vld [vmem:[%s563 + $0x8] sm:$0xff]
        %v1084 = vld [vmem:[%s563 + $0x10] sm:$0xff]
        %v1085 = vld [vmem:[%s563 + $0x18] sm:$0xff]
        %v1086 = vld [vmem:[%s563 + $0x20] sm:$0xff]
        %v1087 = vld [vmem:[%s563 + $0x28] sm:$0xff]
        %v1088 = vld [vmem:[%s563 + $0x30] sm:$0xff]
        %v1089 = vld [vmem:[%s563 + $0x38] sm:$0xff]
        %v1090 = vld [vmem:[%s563 + $0x40] sm:$0xff]
        %v1091 = vld [vmem:[%s563 + $0x48] sm:$0xff]
        %v1092 = vld [vmem:[%s563 + $0x50] sm:$0xff]
        %v1093 = vld [vmem:[%s563 + $0x58] sm:$0xff]
        %v1094 = vld [vmem:[%s563 + $0x60] sm:$0xff]
        %v1095 = vld [vmem:[%s563 + $0x68] sm:$0xff]
        %v1096 = vld [vmem:[%s563 + $0x70] sm:$0xff]
        %v1097 = vld [vmem:[%s563 + $0x78] sm:$0xff]
        %v1098 = vmul.f32 %v949, %v575
        %v1099 = vmul.f32 %v949, %v576
        %v1100 = vmul.f32 %v949, %v577
        %v1101 = vmul.f32 %v949, %v578
        %v1102 = vmul.f32 %v949, %v579
        %v1103 = vmul.f32 %v949, %v580
        %v1104 = vmul.f32 %v949, %v581
        %v1105 = vmul.f32 %v949, %v582
        %v1106 = vmul.f32 %v949, %v583
        %v1107 = vmul.f32 %v949, %v584
        %v1108 = vmul.f32 %v949, %v585
        %v1109 = vmul.f32 %v949, %v586
        %v1110 = vmul.f32 %v949, %v587
        %v1111 = vmul.f32 %v949, %v588
        %v1112 = vmul.f32 %v949, %v589
        %v1113 = vmul.f32 %v949, %v590
        %v1114 = vmul.f32 %v953, %v575
        %v1115 = vmul.f32 %v953, %v576
        %v1116 = vmul.f32 %v953, %v577
        %v1117 = vmul.f32 %v953, %v578
        %v1118 = vmul.f32 %v953, %v579
        %v1119 = vmul.f32 %v953, %v580
        %v1120 = vmul.f32 %v953, %v581
        %v1121 = vmul.f32 %v953, %v582
        %v1122 = vmul.f32 %v953, %v583
        %v1123 = vmul.f32 %v953, %v584
        %v1124 = vmul.f32 %v953, %v585
        %v1125 = vmul.f32 %v953, %v586
        %v1126 = vmul.f32 %v953, %v587
        %v1127 = vmul.f32 %v953, %v588
        %v1128 = vmul.f32 %v953, %v589
        %v1129 = vmul.f32 %v953, %v590
        %v1130 = vmul.f32 %v957, %v575
        %v1131 = vmul.f32 %v957, %v576
        %v1132 = vmul.f32 %v957, %v577
        %v1133 = vmul.f32 %v957, %v578
        %v1134 = vmul.f32 %v957, %v579
        %v1135 = vmul.f32 %v957, %v580
        %v1136 = vmul.f32 %v957, %v581
        %v1137 = vmul.f32 %v957, %v582
        %v1138 = vmul.f32 %v957, %v583
        %v1139 = vmul.f32 %v957, %v584
        %v1140 = vmul.f32 %v957, %v585
        %v1141 = vmul.f32 %v957, %v586
        %v1142 = vmul.f32 %v957, %v587
        %v1143 = vmul.f32 %v957, %v588
        %v1144 = vmul.f32 %v957, %v589
        %v1145 = vmul.f32 %v957, %v590
        %v1146 = vmul.f32 %v961, %v575
        %v1147 = vmul.f32 %v961, %v576
        %v1148 = vmul.f32 %v961, %v577
        %v1149 = vmul.f32 %v961, %v578
        %v1150 = vmul.f32 %v961, %v579
        %v1151 = vmul.f32 %v961, %v580
        %v1152 = vmul.f32 %v961, %v581
        %v1153 = vmul.f32 %v961, %v582
        %v1154 = vmul.f32 %v961, %v583
        %v1155 = vmul.f32 %v961, %v584
        %v1156 = vmul.f32 %v961, %v585
        %v1157 = vmul.f32 %v961, %v586
        %v1158 = vmul.f32 %v961, %v587
        %v1159 = vmul.f32 %v961, %v588
        %v1160 = vmul.f32 %v961, %v589
        %v1161 = vmul.f32 %v961, %v590
        %v1162 = vmul.f32 %v965, %v575
        %v1163 = vmul.f32 %v965, %v576
        %v1164 = vmul.f32 %v965, %v577
        %v1165 = vmul.f32 %v965, %v578
        %v1166 = vmul.f32 %v965, %v579
        %v1167 = vmul.f32 %v965, %v580
        %v1168 = vmul.f32 %v965, %v581
        %v1169 = vmul.f32 %v965, %v582
        %v1170 = vmul.f32 %v965, %v583
        %v1171 = vmul.f32 %v965, %v584
        %v1172 = vmul.f32 %v965, %v585
        %v1173 = vmul.f32 %v965, %v586
        %v1174 = vmul.f32 %v965, %v587
        %v1175 = vmul.f32 %v965, %v588
        %v1176 = vmul.f32 %v965, %v589
        %v1177 = vmul.f32 %v965, %v590
        %v1178 = vmul.f32 %v969, %v575
        %v1179 = vmul.f32 %v969, %v576
        %v1180 = vmul.f32 %v969, %v577
        %v1181 = vmul.f32 %v969, %v578
        %v1182 = vmul.f32 %v969, %v579
        %v1183 = vmul.f32 %v969, %v580
        %v1184 = vmul.f32 %v969, %v581
        %v1185 = vmul.f32 %v969, %v582
        %v1186 = vmul.f32 %v969, %v583
        %v1187 = vmul.f32 %v969, %v584
        %v1188 = vmul.f32 %v969, %v585
        %v1189 = vmul.f32 %v969, %v586
        %v1190 = vmul.f32 %v969, %v587
        %v1191 = vmul.f32 %v969, %v588
        %v1192 = vmul.f32 %v969, %v589
        %v1193 = vmul.f32 %v969, %v590
        %v1194 = vmul.f32 %v973, %v575
        %v1195 = vmul.f32 %v973, %v576
        %v1196 = vmul.f32 %v973, %v577
        %v1197 = vmul.f32 %v973, %v578
        %v1198 = vmul.f32 %v973, %v579
        %v1199 = vmul.f32 %v973, %v580
        %v1200 = vmul.f32 %v973, %v581
        %v1201 = vmul.f32 %v973, %v582
        %v1202 = vmul.f32 %v973, %v583
        %v1203 = vmul.f32 %v973, %v584
        %v1204 = vmul.f32 %v973, %v585
        %v1205 = vmul.f32 %v973, %v586
        %v1206 = vmul.f32 %v973, %v587
        %v1207 = vmul.f32 %v973, %v588
        %v1208 = vmul.f32 %v973, %v589
        %v1209 = vmul.f32 %v973, %v590
        %v1210 = vmul.f32 %v977, %v575
        %v1211 = vmul.f32 %v977, %v576
        %v1212 = vmul.f32 %v977, %v577
        %v1213 = vmul.f32 %v977, %v578
        %v1214 = vmul.f32 %v977, %v579
        %v1215 = vmul.f32 %v977, %v580
        %v1216 = vmul.f32 %v977, %v581
        %v1217 = vmul.f32 %v977, %v582
        %v1218 = vmul.f32 %v977, %v583
        %v1219 = vmul.f32 %v977, %v584
        %v1220 = vmul.f32 %v977, %v585
        %v1221 = vmul.f32 %v977, %v586
        %v1222 = vmul.f32 %v977, %v587
        %v1223 = vmul.f32 %v977, %v588
        %v1224 = vmul.f32 %v977, %v589
        %v1225 = vmul.f32 %v977, %v590
        %v1226 = vpack.c.bf16 %v1099, %v1098
        %v1227 = vpack.c.bf16 %v1101, %v1100
        %v1228 = vpack.c.bf16 %v1103, %v1102
        %v1229 = vpack.c.bf16 %v1105, %v1104
        %v1230 = vpack.c.bf16 %v1107, %v1106
        %v1231 = vpack.c.bf16 %v1109, %v1108
        %v1232 = vpack.c.bf16 %v1111, %v1110
        %v1233 = vpack.c.bf16 %v1113, %v1112
        %v1234 = vpack.c.bf16 %v1115, %v1114
        %v1235 = vpack.c.bf16 %v1117, %v1116
        %v1236 = vpack.c.bf16 %v1119, %v1118
        %v1237 = vpack.c.bf16 %v1121, %v1120
        %v1238 = vpack.c.bf16 %v1123, %v1122
        %v1239 = vpack.c.bf16 %v1125, %v1124
        %v1240 = vpack.c.bf16 %v1127, %v1126
        %v1241 = vpack.c.bf16 %v1129, %v1128
        %v1242 = vpack.c.bf16 %v1131, %v1130
        %v1243 = vpack.c.bf16 %v1133, %v1132
        %v1244 = vpack.c.bf16 %v1135, %v1134
        %v1245 = vpack.c.bf16 %v1137, %v1136
        %v1246 = vpack.c.bf16 %v1139, %v1138
        %v1247 = vpack.c.bf16 %v1141, %v1140
        %v1248 = vpack.c.bf16 %v1143, %v1142
        %v1249 = vpack.c.bf16 %v1145, %v1144
        %v1250 = vpack.c.bf16 %v1147, %v1146
        %v1251 = vpack.c.bf16 %v1149, %v1148
        %v1252 = vpack.c.bf16 %v1151, %v1150
        %v1253 = vpack.c.bf16 %v1153, %v1152
        %v1254 = vpack.c.bf16 %v1155, %v1154
        %v1255 = vpack.c.bf16 %v1157, %v1156
        %v1256 = vpack.c.bf16 %v1159, %v1158
        %v1257 = vpack.c.bf16 %v1161, %v1160
        %v1258 = vpack.c.bf16 %v1163, %v1162
        %v1259 = vpack.c.bf16 %v1165, %v1164
        %v1260 = vpack.c.bf16 %v1167, %v1166
        %v1261 = vpack.c.bf16 %v1169, %v1168
        %v1262 = vpack.c.bf16 %v1171, %v1170
        %v1263 = vpack.c.bf16 %v1173, %v1172
        %v1264 = vpack.c.bf16 %v1175, %v1174
        %v1265 = vpack.c.bf16 %v1177, %v1176
        %v1266 = vpack.c.bf16 %v1179, %v1178
        %v1267 = vpack.c.bf16 %v1181, %v1180
        %v1268 = vpack.c.bf16 %v1183, %v1182
        %v1269 = vpack.c.bf16 %v1185, %v1184
        %v1270 = vpack.c.bf16 %v1187, %v1186
        %v1271 = vpack.c.bf16 %v1189, %v1188
        %v1272 = vpack.c.bf16 %v1191, %v1190
        %v1273 = vpack.c.bf16 %v1193, %v1192
        %v1274 = vpack.c.bf16 %v1195, %v1194
        %v1275 = vpack.c.bf16 %v1197, %v1196
        %v1276 = vpack.c.bf16 %v1199, %v1198
        %v1277 = vpack.c.bf16 %v1201, %v1200
        %v1278 = vpack.c.bf16 %v1203, %v1202
        %v1279 = vpack.c.bf16 %v1205, %v1204
        %v1280 = vpack.c.bf16 %v1207, %v1206
        %v1281 = vpack.c.bf16 %v1209, %v1208
        %v1282 = vpack.c.bf16 %v1211, %v1210
        %v1283 = vpack.c.bf16 %v1213, %v1212
        %v1284 = vpack.c.bf16 %v1215, %v1214
        %v1285 = vpack.c.bf16 %v1217, %v1216
        %v1286 = vpack.c.bf16 %v1219, %v1218
        %v1287 = vpack.c.bf16 %v1221, %v1220
        %v1288 = vpack.c.bf16 %v1223, %v1222
        %v1289 = vpack.c.bf16 %v1225, %v1224
        %v1290 = vld [vmem:[#allocation7] sm:$0xff]
        %v1291 = vld [vmem:[#allocation7 + $0x8] sm:$0xff]
        %v1292 = vld [vmem:[#allocation7 + $0x10] sm:$0xff]
        %v1293 = vld [vmem:[#allocation7 + $0x18] sm:$0xff]
        %v1294 = vld [vmem:[#allocation7 + $0x20] sm:$0xff]
        %v1295 = vld [vmem:[#allocation7 + $0x28] sm:$0xff]
        %v1296 = vld [vmem:[#allocation7 + $0x30] sm:$0xff]
        %v1297 = vld [vmem:[#allocation7 + $0x38] sm:$0xff]
        %v1298 = vld [vmem:[#allocation7 + $0x40] sm:$0xff]
        %v1299 = vld [vmem:[#allocation7 + $0x48] sm:$0xff]
        %v1300 = vld [vmem:[#allocation7 + $0x50] sm:$0xff]
        %v1301 = vld [vmem:[#allocation7 + $0x58] sm:$0xff]
        %v1302 = vld [vmem:[#allocation7 + $0x60] sm:$0xff]
        %v1303 = vld [vmem:[#allocation7 + $0x68] sm:$0xff]
        %v1304 = vld [vmem:[#allocation7 + $0x70] sm:$0xff]
        %v1305 = vld [vmem:[#allocation7 + $0x78] sm:$0xff]
        %v1322 = vunpack.c.l.b16 %v1290
        %v1323 = vunpack.c.h.b16 %v1290
        %v1324 = vunpack.c.l.b16 %v1291
        %v1325 = vunpack.c.h.b16 %v1291
        %v1326 = vunpack.c.l.b16 %v1292
        %v1327 = vunpack.c.h.b16 %v1292
        %v1328 = vunpack.c.l.b16 %v1293
        %v1329 = vunpack.c.h.b16 %v1293
        %v1330 = vunpack.c.l.b16 %v1294
        %v1331 = vunpack.c.h.b16 %v1294
        %v1332 = vunpack.c.l.b16 %v1295
        %v1333 = vunpack.c.h.b16 %v1295
        %v1334 = vunpack.c.l.b16 %v1296
        %v1335 = vunpack.c.h.b16 %v1296
        %v1336 = vunpack.c.l.b16 %v1297
        %v1337 = vunpack.c.h.b16 %v1297
        %v1338 = vunpack.c.l.b16 %v1298
        %v1339 = vunpack.c.h.b16 %v1298
        %v1340 = vunpack.c.l.b16 %v1299
        %v1341 = vunpack.c.h.b16 %v1299
        %v1342 = vunpack.c.l.b16 %v1300
        %v1343 = vunpack.c.h.b16 %v1300
        %v1344 = vunpack.c.l.b16 %v1301
        %v1345 = vunpack.c.h.b16 %v1301
        %v1346 = vunpack.c.l.b16 %v1302
        %v1347 = vunpack.c.h.b16 %v1302
        %v1348 = vunpack.c.l.b16 %v1303
        %v1349 = vunpack.c.h.b16 %v1303
        %v1350 = vunpack.c.l.b16 %v1304
        %v1351 = vunpack.c.h.b16 %v1304
        %v1352 = vunpack.c.l.b16 %v1305
        %v1353 = vunpack.c.h.b16 %v1305
        %v1354 = vpack.c.b16 %v1324, %v1322
        %v1355 = vpack.c.b16 %v1325, %v1323
        %v1356 = vpack.c.b16 %v1328, %v1326
        %v1357 = vpack.c.b16 %v1329, %v1327
        %v1358 = vpack.c.b16 %v1332, %v1330
        %v1359 = vpack.c.b16 %v1333, %v1331
        %v1360 = vpack.c.b16 %v1336, %v1334
        %v1361 = vpack.c.b16 %v1337, %v1335
        %v1362 = vpack.c.b16 %v1340, %v1338
        %v1363 = vpack.c.b16 %v1341, %v1339
        %v1364 = vpack.c.b16 %v1344, %v1342
        %v1365 = vpack.c.b16 %v1345, %v1343
        %v1366 = vpack.c.b16 %v1348, %v1346
        %v1367 = vpack.c.b16 %v1349, %v1347
        %v1368 = vpack.c.b16 %v1352, %v1350
        %v1369 = vpack.c.b16 %v1353, %v1351
        %1386 = vmatprep.subr.bf16.mxu0 %v1355
        %1387 = vmatpush1.bf16.msra.mxu0 %v1354
        %1388 = vmatprep.subr.bf16.mxu0 %v1357
        %1389 = vmatpush1.bf16.msra.mxu0 %v1356
        %1390 = vmatprep.subr.bf16.mxu0 %v1359
        %1391 = vmatpush1.bf16.msra.mxu0 %v1358
        %1392 = vmatprep.subr.bf16.mxu0 %v1361
        %1393 = vmatpush1.bf16.msra.mxu0 %v1360
        %1394 = vmatprep.subr.bf16.mxu0 %v1363
        %1395 = vmatpush1.bf16.msra.mxu0 %v1362
        %1396 = vmatprep.subr.bf16.mxu0 %v1365
        %1397 = vmatpush1.bf16.msra.mxu0 %v1364
        %1398 = vmatprep.subr.bf16.mxu0 %v1367
        %1399 = vmatpush1.bf16.msra.mxu0 %v1366
        %1400 = vmatprep.subr.bf16.mxu0 %v1369
        %1401 = vmatpush1.bf16.msra.mxu0 %v1368
        %1402 = vmatprep.subr.bf16.mxu0 0
        %1403 = vmatpush1.bf16.msra.mxu0 0
        %1404 = vmatprep.subr.bf16.mxu0 0
        %1405 = vmatpush1.bf16.msra.mxu0 0
        %1406 = vmatprep.subr.bf16.mxu0 0
        %1407 = vmatpush1.bf16.msra.mxu0 0
        %1408 = vmatprep.subr.bf16.mxu0 0
        %1409 = vmatpush1.bf16.msra.mxu0 0
        %1410 = vmatprep.subr.bf16.mxu0 0
        %1411 = vmatpush1.bf16.msra.mxu0 0
        %1412 = vmatprep.subr.bf16.mxu0 0
        %1413 = vmatpush1.bf16.msra.mxu0 0
        %1414 = vmatprep.subr.bf16.mxu0 0
        %1415 = vmatpush1.bf16.msra.mxu0 0
        %1416 = vmatprep.subr.bf16.mxu0 0
        %1417 = vmatpush1.bf16.msra.mxu0 0
        %1418 = vmatprep.mubr.bf16.mxu0 0
        %1419 = vmatmul.mubr.bf16.gmra.mrb[0].mxu0 %v1226
        %v1420 = vpop.f32.mrb[0].mxu0
        %v1421 = vadd.f32 %v981, %v1420
        %v1422 = vpop.f32.mrb[0].mxu0
        %v1423 = vadd.f32 %v985, %v1422
        %v1424 = vpop.f32.mrb[0].mxu0
        %v1425 = vadd.f32 %v981, %v1424
        %v1426 = vpop.f32.mrb[0].mxu0
        %v1427 = vadd.f32 %v985, %v1426
        %1428 = vmatprep.mubr.bf16.mxu0 0
        %1429 = vmatmul.mubr.bf16.gmra.mrb[0].mxu0 %v1227
        %v1430 = vpop.f32.mrb[0].mxu0
        %v1431 = vadd.f32 %v981, %v1430
        %v1432 = vpop.f32.mrb[0].mxu0
        %v1433 = vadd.f32 %v985, %v1432
        %v1434 = vpop.f32.mrb[0].mxu0
        %v1435 = vadd.f32 %v981, %v1434
        %v1436 = vpop.f32.mrb[0].mxu0
        %v1437 = vadd.f32 %v985, %v1436
        %1438 = vmatprep.mubr.bf16.mxu0 0
        %1439 = vmatmul.mubr.bf16.gmra.mrb[0].mxu0 %v1228
        %v1440 = vpop.f32.mrb[0].mxu0
        %v1441 = vadd.f32 %v981, %v1440
        %v1442 = vpop.f32.mrb[0].mxu0
        %v1443 = vadd.f32 %v985, %v1442
        %v1444 = vpop.f32.mrb[0].mxu0
        %v1445 = vadd.f32 %v981, %v1444
        %v1446 = vpop.f32.mrb[0].mxu0
        %v1447 = vadd.f32 %v985, %v1446
        %1448 = vmatprep.mubr.bf16.mxu0 0
        %1449 = vmatmul.mubr.bf16.gmra.mrb[0].mxu0 %v1229
        %v1450 = vpop.f32.mrb[0].mxu0
        %v1451 = vadd.f32 %v981, %v1450
        %v1452 = vpop.f32.mrb[0].mxu0
        %v1453 = vadd.f32 %v985, %v1452
        %v1454 = vpop.f32.mrb[0].mxu0
        %v1455 = vadd.f32 %v981, %v1454
        %v1456 = vpop.f32.mrb[0].mxu0
        %v1457 = vadd.f32 %v985, %v1456
        %1458 = vmatprep.mubr.bf16.mxu0 0
        %1459 = vmatmul.mubr.bf16.gmra.mrb[0].mxu0 %v1230
        %v1460 = vpop.f32.mrb[0].mxu0
        %v1461 = vadd.f32 %v981, %v1460
        %v1462 = vpop.f32.mrb[0].mxu0
        %v1463 = vadd.f32 %v985, %v1462
        %v1464 = vpop.f32.mrb[0].mxu0
        %v1465 = vadd.f32 %v981, %v1464
        %v1466 = vpop.f32.mrb[0].mxu0
        %v1467 = vadd.f32 %v985, %v1466
        %1468 = vmatprep.mubr.bf16.mxu0 0
        %1469 = vmatmul.mubr.bf16.gmra.mrb[0].mxu0 %v1231
        %v1470 = vpop.f32.mrb[0].mxu0
        %v1471 = vadd.f32 %v981, %v1470
        %v1472 = vpop.f32.mrb[0].mxu0
        %v1473 = vadd.f32 %v985, %v1472
        %v1474 = vpop.f32.mrb[0].mxu0
        %v1475 = vadd.f32 %v981, %v1474
        %v1476 = vpop.f32.mrb[0].mxu0
        %v1477 = vadd.f32 %v985, %v1476
        %1478 = vmatprep.mubr.bf16.mxu0 0
        %1479 = vmatmul.mubr.bf16.gmra.mrb[0].mxu0 %v1232
        %v1480 = vpop.f32.mrb[0].mxu0
        %v1481 = vadd.f32 %v981, %v1480
        %v1482 = vpop.f32.mrb[0].mxu0
        %v1483 = vadd.f32 %v985, %v1482
        %v1484 = vpop.f32.mrb[0].mxu0
        %v1485 = vadd.f32 %v981, %v1484
        %v1486 = vpop.f32.mrb[0].mxu0
        %v1487 = vadd.f32 %v985, %v1486
        %1488 = vmatprep.mubr.bf16.mxu0 0
        %1489 = vmatmul.mubr.bf16.gmra.mrb[0].mxu0 %v1233
        %v1490 = vpop.f32.mrb[0].mxu0
        %v1491 = vadd.f32 %v981, %v1490
        %v1492 = vpop.f32.mrb[0].mxu0
        %v1493 = vadd.f32 %v985, %v1492
        %v1494 = vpop.f32.mrb[0].mxu0
        %v1495 = vadd.f32 %v981, %v1494
        %v1496 = vpop.f32.mrb[0].mxu0
        %v1497 = vadd.f32 %v985, %v1496
        %1498 = vmatprep.mubr.bf16.mxu0 0
        %1499 = vmatmul.mubr.bf16.gmra.mrb[0].mxu0 %v1234
        %v1500 = vpop.f32.mrb[0].mxu0
        %v1501 = vadd.f32 %v989, %v1500
        %v1502 = vpop.f32.mrb[0].mxu0
        %v1503 = vadd.f32 %v993, %v1502
        %v1504 = vpop.f32.mrb[0].mxu0
        %v1505 = vadd.f32 %v989, %v1504
        %v1506 = vpop.f32.mrb[0].mxu0
        %v1507 = vadd.f32 %v993, %v1506
        %1508 = vmatprep.mubr.bf16.mxu0 0
        %1509 = vmatmul.mubr.bf16.gmra.mrb[0].mxu0 %v1235
        %v1510 = vpop.f32.mrb[0].mxu0
        %v1511 = vadd.f32 %v989, %v1510
        %v1512 = vpop.f32.mrb[0].mxu0
        %v1513 = vadd.f32 %v993, %v1512
        %v1514 = vpop.f32.mrb[0].mxu0
        %v1515 = vadd.f32 %v989, %v1514
        %v1516 = vpop.f32.mrb[0].mxu0
        %v1517 = vadd.f32 %v993, %v1516
        %1518 = vmatprep.mubr.bf16.mxu0 0
        %1519 = vmatmul.mubr.bf16.gmra.mrb[0].mxu0 %v1236
        %v1520 = vpop.f32.mrb[0].mxu0
        %v1521 = vadd.f32 %v989, %v1520
        %v1522 = vpop.f32.mrb[0].mxu0
        %v1523 = vadd.f32 %v993, %v1522
        %v1524 = vpop.f32.mrb[0].mxu0
        %v1525 = vadd.f32 %v989, %v1524
        %v1526 = vpop.f32.mrb[0].mxu0
        %v1527 = vadd.f32 %v993, %v1526
        %1528 = vmatprep.mubr.bf16.mxu0 0
        %1529 = vmatmul.mubr.bf16.gmra.mrb[0].mxu0 %v1237
        %v1530 = vpop.f32.mrb[0].mxu0
        %v1531 = vadd.f32 %v989, %v1530
        %v1532 = vpop.f32.mrb[0].mxu0
        %v1533 = vadd.f32 %v993, %v1532
        %v1534 = vpop.f32.mrb[0].mxu0
        %v1535 = vadd.f32 %v989, %v1534
        %v1536 = vpop.f32.mrb[0].mxu0
        %v1537 = vadd.f32 %v993, %v1536
        %1538 = vmatprep.mubr.bf16.mxu0 0
        %1539 = vmatmul.mubr.bf16.gmra.mrb[0].mxu0 %v1238
        %v1540 = vpop.f32.mrb[0].mxu0
        %v1541 = vadd.f32 %v989, %v1540
        %v1542 = vpop.f32.mrb[0].mxu0
        %v1543 = vadd.f32 %v993, %v1542
        %v1544 = vpop.f32.mrb[0].mxu0
        %v1545 = vadd.f32 %v989, %v1544
        %v1546 = vpop.f32.mrb[0].mxu0
        %v1547 = vadd.f32 %v993, %v1546
        %1548 = vmatprep.mubr.bf16.mxu0 0
        %1549 = vmatmul.mubr.bf16.gmra.mrb[0].mxu0 %v1239
        %v1550 = vpop.f32.mrb[0].mxu0
        %v1551 = vadd.f32 %v989, %v1550
        %v1552 = vpop.f32.mrb[0].mxu0
        %v1553 = vadd.f32 %v993, %v1552
        %v1554 = vpop.f32.mrb[0].mxu0
        %v1555 = vadd.f32 %v989, %v1554
        %v1556 = vpop.f32.mrb[0].mxu0
        %v1557 = vadd.f32 %v993, %v1556
        %1558 = vmatprep.mubr.bf16.mxu0 0
        %1559 = vmatmul.mubr.bf16.gmra.mrb[0].mxu0 %v1240
        %v1560 = vpop.f32.mrb[0].mxu0
        %v1561 = vadd.f32 %v989, %v1560
        %v1562 = vpop.f32.mrb[0].mxu0
        %v1563 = vadd.f32 %v993, %v1562
        %v1564 = vpop.f32.mrb[0].mxu0
        %v1565 = vadd.f32 %v989, %v1564
        %v1566 = vpop.f32.mrb[0].mxu0
        %v1567 = vadd.f32 %v993, %v1566
        %1568 = vmatprep.mubr.bf16.mxu0 0
        %1569 = vmatmul.mubr.bf16.gmra.mrb[0].mxu0 %v1241
        %v1570 = vpop.f32.mrb[0].mxu0
        %v1571 = vadd.f32 %v989, %v1570
        %v1572 = vpop.f32.mrb[0].mxu0
        %v1573 = vadd.f32 %v993, %v1572
        %v1574 = vpop.f32.mrb[0].mxu0
        %v1575 = vadd.f32 %v989, %v1574
        %v1576 = vpop.f32.mrb[0].mxu0
        %v1577 = vadd.f32 %v993, %v1576
        %1578 = vmatprep.mubr.bf16.mxu0 0
        %1579 = vmatmul.mubr.bf16.gmra.mrb[0].mxu0 %v1242
        %v1580 = vpop.f32.mrb[0].mxu0
        %v1581 = vadd.f32 %v997, %v1580
        %v1582 = vpop.f32.mrb[0].mxu0
        %v1583 = vadd.f32 %v1001, %v1582
        %v1584 = vpop.f32.mrb[0].mxu0
        %v1585 = vadd.f32 %v997, %v1584
        %v1586 = vpop.f32.mrb[0].mxu0
        %v1587 = vadd.f32 %v1001, %v1586
        %1588 = vmatprep.mubr.bf16.mxu0 0
        %1589 = vmatmul.mubr.bf16.gmra.mrb[0].mxu0 %v1243
        %v1590 = vpop.f32.mrb[0].mxu0
        %v1591 = vadd.f32 %v997, %v1590
        %v1592 = vpop.f32.mrb[0].mxu0
        %v1593 = vadd.f32 %v1001, %v1592
        %v1594 = vpop.f32.mrb[0].mxu0
        %v1595 = vadd.f32 %v997, %v1594
        %v1596 = vpop.f32.mrb[0].mxu0
        %v1597 = vadd.f32 %v1001, %v1596
        %1598 = vmatprep.mubr.bf16.mxu0 0
        %1599 = vmatmul.mubr.bf16.gmra.mrb[0].mxu0 %v1244
        %v1600 = vpop.f32.mrb[0].mxu0
        %v1601 = vadd.f32 %v997, %v1600
        %v1602 = vpop.f32.mrb[0].mxu0
        %v1603 = vadd.f32 %v1001, %v1602
        %v1604 = vpop.f32.mrb[0].mxu0
        %v1605 = vadd.f32 %v997, %v1604
        %v1606 = vpop.f32.mrb[0].mxu0
        %v1607 = vadd.f32 %v1001, %v1606
        %1608 = vmatprep.mubr.bf16.mxu0 0
        %1609 = vmatmul.mubr.bf16.gmra.mrb[0].mxu0 %v1245
        %v1610 = vpop.f32.mrb[0].mxu0
        %v1611 = vadd.f32 %v997, %v1610
        %v1612 = vpop.f32.mrb[0].mxu0
        %v1613 = vadd.f32 %v1001, %v1612
        %v1614 = vpop.f32.mrb[0].mxu0
        %v1615 = vadd.f32 %v997, %v1614
        %v1616 = vpop.f32.mrb[0].mxu0
        %v1617 = vadd.f32 %v1001, %v1616
        %1618 = vmatprep.mubr.bf16.mxu0 0
        %1619 = vmatmul.mubr.bf16.gmra.mrb[0].mxu0 %v1246
        %v1620 = vpop.f32.mrb[0].mxu0
        %v1621 = vadd.f32 %v997, %v1620
        %v1622 = vpop.f32.mrb[0].mxu0
        %v1623 = vadd.f32 %v1001, %v1622
        %v1624 = vpop.f32.mrb[0].mxu0
        %v1625 = vadd.f32 %v997, %v1624
        %v1626 = vpop.f32.mrb[0].mxu0
        %v1627 = vadd.f32 %v1001, %v1626
        %1628 = vmatprep.mubr.bf16.mxu0 0
        %1629 = vmatmul.mubr.bf16.gmra.mrb[0].mxu0 %v1247
        %v1630 = vpop.f32.mrb[0].mxu0
        %v1631 = vadd.f32 %v997, %v1630
        %v1632 = vpop.f32.mrb[0].mxu0
        %v1633 = vadd.f32 %v1001, %v1632
        %v1634 = vpop.f32.mrb[0].mxu0
        %v1635 = vadd.f32 %v997, %v1634
        %v1636 = vpop.f32.mrb[0].mxu0
        %v1637 = vadd.f32 %v1001, %v1636
        %1638 = vmatprep.mubr.bf16.mxu0 0
        %1639 = vmatmul.mubr.bf16.gmra.mrb[0].mxu0 %v1248
        %v1640 = vpop.f32.mrb[0].mxu0
        %v1641 = vadd.f32 %v997, %v1640
        %v1642 = vpop.f32.mrb[0].mxu0
        %v1643 = vadd.f32 %v1001, %v1642
        %v1644 = vpop.f32.mrb[0].mxu0
        %v1645 = vadd.f32 %v997, %v1644
        %v1646 = vpop.f32.mrb[0].mxu0
        %v1647 = vadd.f32 %v1001, %v1646
        %1648 = vmatprep.mubr.bf16.mxu0 0
        %1649 = vmatmul.mubr.bf16.gmra.mrb[0].mxu0 %v1249
        %v1650 = vpop.f32.mrb[0].mxu0
        %v1651 = vadd.f32 %v997, %v1650
        %v1652 = vpop.f32.mrb[0].mxu0
        %v1653 = vadd.f32 %v1001, %v1652
        %v1654 = vpop.f32.mrb[0].mxu0
        %v1655 = vadd.f32 %v997, %v1654
        %v1656 = vpop.f32.mrb[0].mxu0
        %v1657 = vadd.f32 %v1001, %v1656
        %1658 = vmatprep.mubr.bf16.mxu0 0
        %1659 = vmatmul.mubr.bf16.gmra.mrb[0].mxu0 %v1250
        %v1660 = vpop.f32.mrb[0].mxu0
        %v1661 = vadd.f32 %v1005, %v1660
        %v1662 = vpop.f32.mrb[0].mxu0
        %v1663 = vadd.f32 %v1009, %v1662
        %v1664 = vpop.f32.mrb[0].mxu0
        %v1665 = vadd.f32 %v1005, %v1664
        %v1666 = vpop.f32.mrb[0].mxu0
        %v1667 = vadd.f32 %v1009, %v1666
        %1668 = vmatprep.mubr.bf16.mxu0 0
        %1669 = vmatmul.mubr.bf16.gmra.mrb[0].mxu0 %v1251
        %v1670 = vpop.f32.mrb[0].mxu0
        %v1671 = vadd.f32 %v1005, %v1670
        %v1672 = vpop.f32.mrb[0].mxu0
        %v1673 = vadd.f32 %v1009, %v1672
        %v1674 = vpop.f32.mrb[0].mxu0
        %v1675 = vadd.f32 %v1005, %v1674
        %v1676 = vpop.f32.mrb[0].mxu0
        %v1677 = vadd.f32 %v1009, %v1676
        %1678 = vmatprep.mubr.bf16.mxu0 0
        %1679 = vmatmul.mubr.bf16.gmra.mrb[0].mxu0 %v1252
        %v1680 = vpop.f32.mrb[0].mxu0
        %v1681 = vadd.f32 %v1005, %v1680
        %v1682 = vpop.f32.mrb[0].mxu0
        %v1683 = vadd.f32 %v1009, %v1682
        %v1684 = vpop.f32.mrb[0].mxu0
        %v1685 = vadd.f32 %v1005, %v1684
        %v1686 = vpop.f32.mrb[0].mxu0
        %v1687 = vadd.f32 %v1009, %v1686
        %1688 = vmatprep.mubr.bf16.mxu0 0
        %1689 = vmatmul.mubr.bf16.gmra.mrb[0].mxu0 %v1253
        %v1690 = vpop.f32.mrb[0].mxu0
        %v1691 = vadd.f32 %v1005, %v1690
        %v1692 = vpop.f32.mrb[0].mxu0
        %v1693 = vadd.f32 %v1009, %v1692
        %v1694 = vpop.f32.mrb[0].mxu0
        %v1695 = vadd.f32 %v1005, %v1694
        %v1696 = vpop.f32.mrb[0].mxu0
        %v1697 = vadd.f32 %v1009, %v1696
        %1698 = vmatprep.mubr.bf16.mxu0 0
        %1699 = vmatmul.mubr.bf16.gmra.mrb[0].mxu0 %v1254
        %v1700 = vpop.f32.mrb[0].mxu0
        %v1701 = vadd.f32 %v1005, %v1700
        %v1702 = vpop.f32.mrb[0].mxu0
        %v1703 = vadd.f32 %v1009, %v1702
        %v1704 = vpop.f32.mrb[0].mxu0
        %v1705 = vadd.f32 %v1005, %v1704
        %v1706 = vpop.f32.mrb[0].mxu0
        %v1707 = vadd.f32 %v1009, %v1706
        %1708 = vmatprep.mubr.bf16.mxu0 0
        %1709 = vmatmul.mubr.bf16.gmra.mrb[0].mxu0 %v1255
        %v1710 = vpop.f32.mrb[0].mxu0
        %v1711 = vadd.f32 %v1005, %v1710
        %v1712 = vpop.f32.mrb[0].mxu0
        %v1713 = vadd.f32 %v1009, %v1712
        %v1714 = vpop.f32.mrb[0].mxu0
        %v1715 = vadd.f32 %v1005, %v1714
        %v1716 = vpop.f32.mrb[0].mxu0
        %v1717 = vadd.f32 %v1009, %v1716
        %1718 = vmatprep.mubr.bf16.mxu0 0
        %1719 = vmatmul.mubr.bf16.gmra.mrb[0].mxu0 %v1256
        %v1720 = vpop.f32.mrb[0].mxu0
        %v1721 = vadd.f32 %v1005, %v1720
        %v1722 = vpop.f32.mrb[0].mxu0
        %v1723 = vadd.f32 %v1009, %v1722
        %v1724 = vpop.f32.mrb[0].mxu0
        %v1725 = vadd.f32 %v1005, %v1724
        %v1726 = vpop.f32.mrb[0].mxu0
        %v1727 = vadd.f32 %v1009, %v1726
        %1728 = vmatprep.mubr.bf16.mxu0 0
        %1729 = vmatmul.mubr.bf16.gmra.mrb[0].mxu0 %v1257
        %v1730 = vpop.f32.mrb[0].mxu0
        %v1731 = vadd.f32 %v1005, %v1730
        %v1732 = vpop.f32.mrb[0].mxu0
        %v1733 = vadd.f32 %v1009, %v1732
        %v1734 = vpop.f32.mrb[0].mxu0
        %v1735 = vadd.f32 %v1005, %v1734
        %v1736 = vpop.f32.mrb[0].mxu0
        %v1737 = vadd.f32 %v1009, %v1736
        %1738 = vmatprep.mubr.bf16.mxu0 0
        %1739 = vmatmul.mubr.bf16.gmra.mrb[0].mxu0 %v1258
        %v1740 = vpop.f32.mrb[0].mxu0
        %v1741 = vadd.f32 %v1013, %v1740
        %v1742 = vpop.f32.mrb[0].mxu0
        %v1743 = vadd.f32 %v1017, %v1742
        %v1744 = vpop.f32.mrb[0].mxu0
        %v1745 = vadd.f32 %v1013, %v1744
        %v1746 = vpop.f32.mrb[0].mxu0
        %v1747 = vadd.f32 %v1017, %v1746
        %1748 = vmatprep.mubr.bf16.mxu0 0
        %1749 = vmatmul.mubr.bf16.gmra.mrb[0].mxu0 %v1259
        %v1750 = vpop.f32.mrb[0].mxu0
        %v1751 = vadd.f32 %v1013, %v1750
        %v1752 = vpop.f32.mrb[0].mxu0
        %v1753 = vadd.f32 %v1017, %v1752
        %v1754 = vpop.f32.mrb[0].mxu0
        %v1755 = vadd.f32 %v1013, %v1754
        %v1756 = vpop.f32.mrb[0].mxu0
        %v1757 = vadd.f32 %v1017, %v1756
        %1758 = vmatprep.mubr.bf16.mxu0 0
        %1759 = vmatmul.mubr.bf16.gmra.mrb[0].mxu0 %v1260
        %v1760 = vpop.f32.mrb[0].mxu0
        %v1761 = vadd.f32 %v1013, %v1760
        %v1762 = vpop.f32.mrb[0].mxu0
        %v1763 = vadd.f32 %v1017, %v1762
        %v1764 = vpop.f32.mrb[0].mxu0
        %v1765 = vadd.f32 %v1013, %v1764
        %v1766 = vpop.f32.mrb[0].mxu0
        %v1767 = vadd.f32 %v1017, %v1766
        %1768 = vmatprep.mubr.bf16.mxu0 0
        %1769 = vmatmul.mubr.bf16.gmra.mrb[0].mxu0 %v1261
        %v1770 = vpop.f32.mrb[0].mxu0
        %v1771 = vadd.f32 %v1013, %v1770
        %v1772 = vpop.f32.mrb[0].mxu0
        %v1773 = vadd.f32 %v1017, %v1772
        %v1774 = vpop.f32.mrb[0].mxu0
        %v1775 = vadd.f32 %v1013, %v1774
        %v1776 = vpop.f32.mrb[0].mxu0
        %v1777 = vadd.f32 %v1017, %v1776
        %1778 = vmatprep.mubr.bf16.mxu0 0
        %1779 = vmatmul.mubr.bf16.gmra.mrb[0].mxu0 %v1262
        %v1780 = vpop.f32.mrb[0].mxu0
        %v1781 = vadd.f32 %v1013, %v1780
        %v1782 = vpop.f32.mrb[0].mxu0
        %v1783 = vadd.f32 %v1017, %v1782
        %v1784 = vpop.f32.mrb[0].mxu0
        %v1785 = vadd.f32 %v1013, %v1784
        %v1786 = vpop.f32.mrb[0].mxu0
        %v1787 = vadd.f32 %v1017, %v1786
        %1788 = vmatprep.mubr.bf16.mxu0 0
        %1789 = vmatmul.mubr.bf16.gmra.mrb[0].mxu0 %v1263
        %v1790 = vpop.f32.mrb[0].mxu0
        %v1791 = vadd.f32 %v1013, %v1790
        %v1792 = vpop.f32.mrb[0].mxu0
        %v1793 = vadd.f32 %v1017, %v1792
        %v1794 = vpop.f32.mrb[0].mxu0
        %v1795 = vadd.f32 %v1013, %v1794
        %v1796 = vpop.f32.mrb[0].mxu0
        %v1797 = vadd.f32 %v1017, %v1796
        %1798 = vmatprep.mubr.bf16.mxu0 0
        %1799 = vmatmul.mubr.bf16.gmra.mrb[0].mxu0 %v1264
        %v1800 = vpop.f32.mrb[0].mxu0
        %v1801 = vadd.f32 %v1013, %v1800
        %v1802 = vpop.f32.mrb[0].mxu0
        %v1803 = vadd.f32 %v1017, %v1802
        %v1804 = vpop.f32.mrb[0].mxu0
        %v1805 = vadd.f32 %v1013, %v1804
        %v1806 = vpop.f32.mrb[0].mxu0
        %v1807 = vadd.f32 %v1017, %v1806
        %1808 = vmatprep.mubr.bf16.mxu0 0
        %1809 = vmatmul.mubr.bf16.gmra.mrb[0].mxu0 %v1265
        %v1810 = vpop.f32.mrb[0].mxu0
        %v1811 = vadd.f32 %v1013, %v1810
        %v1812 = vpop.f32.mrb[0].mxu0
        %v1813 = vadd.f32 %v1017, %v1812
        %v1814 = vpop.f32.mrb[0].mxu0
        %v1815 = vadd.f32 %v1013, %v1814
        %v1816 = vpop.f32.mrb[0].mxu0
        %v1817 = vadd.f32 %v1017, %v1816
        %1818 = vmatprep.mubr.bf16.mxu0 0
        %1819 = vmatmul.mubr.bf16.gmra.mrb[0].mxu0 %v1266
        %v1820 = vpop.f32.mrb[0].mxu0
        %v1821 = vadd.f32 %v1021, %v1820
        %v1822 = vpop.f32.mrb[0].mxu0
        %v1823 = vadd.f32 %v1025, %v1822
        %v1824 = vpop.f32.mrb[0].mxu0
        %v1825 = vadd.f32 %v1021, %v1824
        %v1826 = vpop.f32.mrb[0].mxu0
        %v1827 = vadd.f32 %v1025, %v1826
        %1828 = vmatprep.mubr.bf16.mxu0 0
        %1829 = vmatmul.mubr.bf16.gmra.mrb[0].mxu0 %v1267
        %v1830 = vpop.f32.mrb[0].mxu0
        %v1831 = vadd.f32 %v1021, %v1830
        %v1832 = vpop.f32.mrb[0].mxu0
        %v1833 = vadd.f32 %v1025, %v1832
        %v1834 = vpop.f32.mrb[0].mxu0
        %v1835 = vadd.f32 %v1021, %v1834
        %v1836 = vpop.f32.mrb[0].mxu0
        %v1837 = vadd.f32 %v1025, %v1836
        %1838 = vmatprep.mubr.bf16.mxu0 0
        %1839 = vmatmul.mubr.bf16.gmra.mrb[0].mxu0 %v1268
        %v1840 = vpop.f32.mrb[0].mxu0
        %v1841 = vadd.f32 %v1021, %v1840
        %v1842 = vpop.f32.mrb[0].mxu0
        %v1843 = vadd.f32 %v1025, %v1842
        %v1844 = vpop.f32.mrb[0].mxu0
        %v1845 = vadd.f32 %v1021, %v1844
        %v1846 = vpop.f32.mrb[0].mxu0
        %v1847 = vadd.f32 %v1025, %v1846
        %1848 = vmatprep.mubr.bf16.mxu0 0
        %1849 = vmatmul.mubr.bf16.gmra.mrb[0].mxu0 %v1269
        %v1850 = vpop.f32.mrb[0].mxu0
        %v1851 = vadd.f32 %v1021, %v1850
        %v1852 = vpop.f32.mrb[0].mxu0
        %v1853 = vadd.f32 %v1025, %v1852
        %v1854 = vpop.f32.mrb[0].mxu0
        %v1855 = vadd.f32 %v1021, %v1854
        %v1856 = vpop.f32.mrb[0].mxu0
        %v1857 = vadd.f32 %v1025, %v1856
        %1858 = vmatprep.mubr.bf16.mxu0 0
        %1859 = vmatmul.mubr.bf16.gmra.mrb[0].mxu0 %v1270
        %v1860 = vpop.f32.mrb[0].mxu0
        %v1861 = vadd.f32 %v1021, %v1860
        %v1862 = vpop.f32.mrb[0].mxu0
        %v1863 = vadd.f32 %v1025, %v1862
        %v1864 = vpop.f32.mrb[0].mxu0
        %v1865 = vadd.f32 %v1021, %v1864
        %v1866 = vpop.f32.mrb[0].mxu0
        %v1867 = vadd.f32 %v1025, %v1866
        %1868 = vmatprep.mubr.bf16.mxu0 0
        %1869 = vmatmul.mubr.bf16.gmra.mrb[0].mxu0 %v1271
        %v1870 = vpop.f32.mrb[0].mxu0
        %v1871 = vadd.f32 %v1021, %v1870
        %v1872 = vpop.f32.mrb[0].mxu0
        %v1873 = vadd.f32 %v1025, %v1872
        %v1874 = vpop.f32.mrb[0].mxu0
        %v1875 = vadd.f32 %v1021, %v1874
        %v1876 = vpop.f32.mrb[0].mxu0
        %v1877 = vadd.f32 %v1025, %v1876
        %1878 = vmatprep.mubr.bf16.mxu0 0
        %1879 = vmatmul.mubr.bf16.gmra.mrb[0].mxu0 %v1272
        %v1880 = vpop.f32.mrb[0].mxu0
        %v1881 = vadd.f32 %v1021, %v1880
        %v1882 = vpop.f32.mrb[0].mxu0
        %v1883 = vadd.f32 %v1025, %v1882
        %v1884 = vpop.f32.mrb[0].mxu0
        %v1885 = vadd.f32 %v1021, %v1884
        %v1886 = vpop.f32.mrb[0].mxu0
        %v1887 = vadd.f32 %v1025, %v1886
        %1888 = vmatprep.mubr.bf16.mxu0 0
        %1889 = vmatmul.mubr.bf16.gmra.mrb[0].mxu0 %v1273
        %v1890 = vpop.f32.mrb[0].mxu0
        %v1891 = vadd.f32 %v1021, %v1890
        %v1892 = vpop.f32.mrb[0].mxu0
        %v1893 = vadd.f32 %v1025, %v1892
        %v1894 = vpop.f32.mrb[0].mxu0
        %v1895 = vadd.f32 %v1021, %v1894
        %v1896 = vpop.f32.mrb[0].mxu0
        %v1897 = vadd.f32 %v1025, %v1896
        %1898 = vmatprep.mubr.bf16.mxu0 0
        %1899 = vmatmul.mubr.bf16.gmra.mrb[0].mxu0 %v1274
        %v1900 = vpop.f32.mrb[0].mxu0
        %v1901 = vadd.f32 %v1029, %v1900
        %v1902 = vpop.f32.mrb[0].mxu0
        %v1903 = vadd.f32 %v1033, %v1902
        %v1904 = vpop.f32.mrb[0].mxu0
        %v1905 = vadd.f32 %v1029, %v1904
        %v1906 = vpop.f32.mrb[0].mxu0
        %v1907 = vadd.f32 %v1033, %v1906
        %1908 = vmatprep.mubr.bf16.mxu0 0
        %1909 = vmatmul.mubr.bf16.gmra.mrb[0].mxu0 %v1275
        %v1910 = vpop.f32.mrb[0].mxu0
        %v1911 = vadd.f32 %v1029, %v1910
        %v1912 = vpop.f32.mrb[0].mxu0
        %v1913 = vadd.f32 %v1033, %v1912
        %v1914 = vpop.f32.mrb[0].mxu0
        %v1915 = vadd.f32 %v1029, %v1914
        %v1916 = vpop.f32.mrb[0].mxu0
        %v1917 = vadd.f32 %v1033, %v1916
        %1918 = vmatprep.mubr.bf16.mxu0 0
        %1919 = vmatmul.mubr.bf16.gmra.mrb[0].mxu0 %v1276
        %v1920 = vpop.f32.mrb[0].mxu0
        %v1921 = vadd.f32 %v1029, %v1920
        %v1922 = vpop.f32.mrb[0].mxu0
        %v1923 = vadd.f32 %v1033, %v1922
        %v1924 = vpop.f32.mrb[0].mxu0
        %v1925 = vadd.f32 %v1029, %v1924
        %v1926 = vpop.f32.mrb[0].mxu0
        %v1927 = vadd.f32 %v1033, %v1926
        %1928 = vmatprep.mubr.bf16.mxu0 0
        %1929 = vmatmul.mubr.bf16.gmra.mrb[0].mxu0 %v1277
        %v1930 = vpop.f32.mrb[0].mxu0
        %v1931 = vadd.f32 %v1029, %v1930
        %v1932 = vpop.f32.mrb[0].mxu0
        %v1933 = vadd.f32 %v1033, %v1932
        %v1934 = vpop.f32.mrb[0].mxu0
        %v1935 = vadd.f32 %v1029, %v1934
        %v1936 = vpop.f32.mrb[0].mxu0
        %v1937 = vadd.f32 %v1033, %v1936
        %1938 = vmatprep.mubr.bf16.mxu0 0
        %1939 = vmatmul.mubr.bf16.gmra.mrb[0].mxu0 %v1278
        %v1940 = vpop.f32.mrb[0].mxu0
        %v1941 = vadd.f32 %v1029, %v1940
        %v1942 = vpop.f32.mrb[0].mxu0
        %v1943 = vadd.f32 %v1033, %v1942
        %v1944 = vpop.f32.mrb[0].mxu0
        %v1945 = vadd.f32 %v1029, %v1944
        %v1946 = vpop.f32.mrb[0].mxu0
        %v1947 = vadd.f32 %v1033, %v1946
        %1948 = vmatprep.mubr.bf16.mxu0 0
        %1949 = vmatmul.mubr.bf16.gmra.mrb[0].mxu0 %v1279
        %v1950 = vpop.f32.mrb[0].mxu0
        %v1951 = vadd.f32 %v1029, %v1950
        %v1952 = vpop.f32.mrb[0].mxu0
        %v1953 = vadd.f32 %v1033, %v1952
        %v1954 = vpop.f32.mrb[0].mxu0
        %v1955 = vadd.f32 %v1029, %v1954
        %v1956 = vpop.f32.mrb[0].mxu0
        %v1957 = vadd.f32 %v1033, %v1956
        %1958 = vmatprep.mubr.bf16.mxu0 0
        %1959 = vmatmul.mubr.bf16.gmra.mrb[0].mxu0 %v1280
        %v1960 = vpop.f32.mrb[0].mxu0
        %v1961 = vadd.f32 %v1029, %v1960
        %v1962 = vpop.f32.mrb[0].mxu0
        %v1963 = vadd.f32 %v1033, %v1962
        %v1964 = vpop.f32.mrb[0].mxu0
        %v1965 = vadd.f32 %v1029, %v1964
        %v1966 = vpop.f32.mrb[0].mxu0
        %v1967 = vadd.f32 %v1033, %v1966
        %1968 = vmatprep.mubr.bf16.mxu0 0
        %1969 = vmatmul.mubr.bf16.gmra.mrb[0].mxu0 %v1281
        %v1970 = vpop.f32.mrb[0].mxu0
        %v1971 = vadd.f32 %v1029, %v1970
        %v1972 = vpop.f32.mrb[0].mxu0
        %v1973 = vadd.f32 %v1033, %v1972
        %v1974 = vpop.f32.mrb[0].mxu0
        %v1975 = vadd.f32 %v1029, %v1974
        %v1976 = vpop.f32.mrb[0].mxu0
        %v1977 = vadd.f32 %v1033, %v1976
        %1978 = vmatprep.mubr.bf16.mxu0 0
        %1979 = vmatmul.mubr.bf16.gmra.mrb[0].mxu0 %v1282
        %v1980 = vpop.f32.mrb[0].mxu0
        %v1981 = vadd.f32 %v1037, %v1980
        %v1982 = vpop.f32.mrb[0].mxu0
        %v1983 = vadd.f32 %v1041, %v1982
        %v1984 = vpop.f32.mrb[0].mxu0
        %v1985 = vadd.f32 %v1037, %v1984
        %v1986 = vpop.f32.mrb[0].mxu0
        %v1987 = vadd.f32 %v1041, %v1986
        %1988 = vmatprep.mubr.bf16.mxu0 0
        %1989 = vmatmul.mubr.bf16.gmra.mrb[0].mxu0 %v1283
        %v1990 = vpop.f32.mrb[0].mxu0
        %v1991 = vadd.f32 %v1037, %v1990
        %v1992 = vpop.f32.mrb[0].mxu0
        %v1993 = vadd.f32 %v1041, %v1992
        %v1994 = vpop.f32.mrb[0].mxu0
        %v1995 = vadd.f32 %v1037, %v1994
        %v1996 = vpop.f32.mrb[0].mxu0
        %v1997 = vadd.f32 %v1041, %v1996
        %1998 = vmatprep.mubr.bf16.mxu0 0
        %1999 = vmatmul.mubr.bf16.gmra.mrb[0].mxu0 %v1284
        %v2000 = vpop.f32.mrb[0].mxu0
        %v2001 = vadd.f32 %v1037, %v2000
        %v2002 = vpop.f32.mrb[0].mxu0
        %v2003 = vadd.f32 %v1041, %v2002
        %v2004 = vpop.f32.mrb[0].mxu0
        %v2005 = vadd.f32 %v1037, %v2004
        %v2006 = vpop.f32.mrb[0].mxu0
        %v2007 = vadd.f32 %v1041, %v2006
        %2008 = vmatprep.mubr.bf16.mxu0 0
        %2009 = vmatmul.mubr.bf16.gmra.mrb[0].mxu0 %v1285
        %v2010 = vpop.f32.mrb[0].mxu0
        %v2011 = vadd.f32 %v1037, %v2010
        %v2012 = vpop.f32.mrb[0].mxu0
        %v2013 = vadd.f32 %v1041, %v2012
        %v2014 = vpop.f32.mrb[0].mxu0
        %v2015 = vadd.f32 %v1037, %v2014
        %v2016 = vpop.f32.mrb[0].mxu0
        %v2017 = vadd.f32 %v1041, %v2016
        %2018 = vmatprep.mubr.bf16.mxu0 0
        %2019 = vmatmul.mubr.bf16.gmra.mrb[0].mxu0 %v1286
        %v2020 = vpop.f32.mrb[0].mxu0
        %v2021 = vadd.f32 %v1037, %v2020
        %v2022 = vpop.f32.mrb[0].mxu0
        %v2023 = vadd.f32 %v1041, %v2022
        %v2024 = vpop.f32.mrb[0].mxu0
        %v2025 = vadd.f32 %v1037, %v2024
        %v2026 = vpop.f32.mrb[0].mxu0
        %v2027 = vadd.f32 %v1041, %v2026
        %2028 = vmatprep.mubr.bf16.mxu0 0
        %2029 = vmatmul.mubr.bf16.gmra.mrb[0].mxu0 %v1287
        %v2030 = vpop.f32.mrb[0].mxu0
        %v2031 = vadd.f32 %v1037, %v2030
        %v2032 = vpop.f32.mrb[0].mxu0
        %v2033 = vadd.f32 %v1041, %v2032
        %v2034 = vpop.f32.mrb[0].mxu0
        %v2035 = vadd.f32 %v1037, %v2034
        %v2036 = vpop.f32.mrb[0].mxu0
        %v2037 = vadd.f32 %v1041, %v2036
        %2038 = vmatprep.mubr.bf16.mxu0 0
        %2039 = vmatmul.mubr.bf16.gmra.mrb[0].mxu0 %v1288
        %v2040 = vpop.f32.mrb[0].mxu0
        %v2041 = vadd.f32 %v1037, %v2040
        %v2042 = vpop.f32.mrb[0].mxu0
        %v2043 = vadd.f32 %v1041, %v2042
        %v2044 = vpop.f32.mrb[0].mxu0
        %v2045 = vadd.f32 %v1037, %v2044
        %v2046 = vpop.f32.mrb[0].mxu0
        %v2047 = vadd.f32 %v1041, %v2046
        %2048 = vmatprep.mubr.bf16.mxu0 0
        %2049 = vmatmul.mubr.bf16.gmra.mrb[0].mxu0 %v1289
        %v2050 = vpop.f32.mrb[0].mxu0
        %v2051 = vadd.f32 %v1037, %v2050
        %v2052 = vpop.f32.mrb[0].mxu0
        %v2053 = vadd.f32 %v1041, %v2052
        %v2054 = vpop.f32.mrb[0].mxu0
        %v2055 = vadd.f32 %v1037, %v2054
        %v2056 = vpop.f32.mrb[0].mxu0
        %v2057 = vadd.f32 %v1041, %v2056
        %2058 = vdwg.mxu0
        %v2059 = vadd.f32 %v1421, %v868
        %v2060 = vadd.f32 %v1423, %v870
        %v2061 = vadd.f32 %v1425, %v872
        %v2062 = vadd.f32 %v1427, %v874
        %v2063 = vadd.f32 %v1431, %v878
        %v2064 = vadd.f32 %v1433, %v880
        %v2065 = vadd.f32 %v1435, %v882
        %v2066 = vadd.f32 %v1437, %v884
        %v2067 = vadd.f32 %v1441, %v888
        %v2068 = vadd.f32 %v1443, %v890
        %v2069 = vadd.f32 %v1445, %v892
        %v2070 = vadd.f32 %v1447, %v894
        %v2071 = vadd.f32 %v1451, %v898
        %v2072 = vadd.f32 %v1453, %v900
        %v2073 = vadd.f32 %v1455, %v902
        %v2074 = vadd.f32 %v1457, %v904
        %v2075 = vadd.f32 %v1461, %v908
        %v2076 = vadd.f32 %v1463, %v910
        %v2077 = vadd.f32 %v1465, %v912
        %v2078 = vadd.f32 %v1467, %v914
        %v2079 = vadd.f32 %v1471, %v918
        %v2080 = vadd.f32 %v1473, %v920
        %v2081 = vadd.f32 %v1475, %v922
        %v2082 = vadd.f32 %v1477, %v924
        %v2083 = vadd.f32 %v1481, %v928
        %v2084 = vadd.f32 %v1483, %v930
        %v2085 = vadd.f32 %v1485, %v932
        %v2086 = vadd.f32 %v1487, %v934
        %v2087 = vadd.f32 %v1491, %v938
        %v2088 = vadd.f32 %v1493, %v940
        %v2089 = vadd.f32 %v1495, %v942
        %v2090 = vadd.f32 %v1497, %v944
        %v2091 = vadd.f32 %v1501, %v868
        %v2092 = vadd.f32 %v1503, %v870
        %v2093 = vadd.f32 %v1505, %v872
        %v2094 = vadd.f32 %v1507, %v874
        %v2095 = vadd.f32 %v1511, %v878
        %v2096 = vadd.f32 %v1513, %v880
        %v2097 = vadd.f32 %v1515, %v882
        %v2098 = vadd.f32 %v1517, %v884
        %v2099 = vadd.f32 %v1521, %v888
        %v2100 = vadd.f32 %v1523, %v890
        %v2101 = vadd.f32 %v1525, %v892
        %v2102 = vadd.f32 %v1527, %v894
        %v2103 = vadd.f32 %v1531, %v898
        %v2104 = vadd.f32 %v1533, %v900
        %v2105 = vadd.f32 %v1535, %v902
        %v2106 = vadd.f32 %v1537, %v904
        %v2107 = vadd.f32 %v1541, %v908
        %v2108 = vadd.f32 %v1543, %v910
        %v2109 = vadd.f32 %v1545, %v912
        %v2110 = vadd.f32 %v1547, %v914
        %v2111 = vadd.f32 %v1551, %v918
        %v2112 = vadd.f32 %v1553, %v920
        %v2113 = vadd.f32 %v1555, %v922
        %v2114 = vadd.f32 %v1557, %v924
        %v2115 = vadd.f32 %v1561, %v928
        %v2116 = vadd.f32 %v1563, %v930
        %v2117 = vadd.f32 %v1565, %v932
        %v2118 = vadd.f32 %v1567, %v934
        %v2119 = vadd.f32 %v1571, %v938
        %v2120 = vadd.f32 %v1573, %v940
        %v2121 = vadd.f32 %v1575, %v942
        %v2122 = vadd.f32 %v1577, %v944
        %v2123 = vadd.f32 %v1581, %v868
        %v2124 = vadd.f32 %v1583, %v870
        %v2125 = vadd.f32 %v1585, %v872
        %v2126 = vadd.f32 %v1587, %v874
        %v2127 = vadd.f32 %v1591, %v878
        %v2128 = vadd.f32 %v1593, %v880
        %v2129 = vadd.f32 %v1595, %v882
        %v2130 = vadd.f32 %v1597, %v884
        %v2131 = vadd.f32 %v1601, %v888
        %v2132 = vadd.f32 %v1603, %v890
        %v2133 = vadd.f32 %v1605, %v892
        %v2134 = vadd.f32 %v1607, %v894
        %v2135 = vadd.f32 %v1611, %v898
        %v2136 = vadd.f32 %v1613, %v900
        %v2137 = vadd.f32 %v1615, %v902
        %v2138 = vadd.f32 %v1617, %v904
        %v2139 = vadd.f32 %v1621, %v908
        %v2140 = vadd.f32 %v1623, %v910
        %v2141 = vadd.f32 %v1625, %v912
        %v2142 = vadd.f32 %v1627, %v914
        %v2143 = vadd.f32 %v1631, %v918
        %v2144 = vadd.f32 %v1633, %v920
        %v2145 = vadd.f32 %v1635, %v922
        %v2146 = vadd.f32 %v1637, %v924
        %v2147 = vadd.f32 %v1641, %v928
        %v2148 = vadd.f32 %v1643, %v930
        %v2149 = vadd.f32 %v1645, %v932
        %v2150 = vadd.f32 %v1647, %v934
        %v2151 = vadd.f32 %v1651, %v938
        %v2152 = vadd.f32 %v1653, %v940
        %v2153 = vadd.f32 %v1655, %v942
        %v2154 = vadd.f32 %v1657, %v944
        %v2155 = vadd.f32 %v1661, %v868
        %v2156 = vadd.f32 %v1663, %v870
        %v2157 = vadd.f32 %v1665, %v872
        %v2158 = vadd.f32 %v1667, %v874
        %v2159 = vadd.f32 %v1671, %v878
        %v2160 = vadd.f32 %v1673, %v880
        %v2161 = vadd.f32 %v1675, %v882
        %v2162 = vadd.f32 %v1677, %v884
        %v2163 = vadd.f32 %v1681, %v888
        %v2164 = vadd.f32 %v1683, %v890
        %v2165 = vadd.f32 %v1685, %v892
        %v2166 = vadd.f32 %v1687, %v894
        %v2167 = vadd.f32 %v1691, %v898
        %v2168 = vadd.f32 %v1693, %v900
        %v2169 = vadd.f32 %v1695, %v902
        %v2170 = vadd.f32 %v1697, %v904
        %v2171 = vadd.f32 %v1701, %v908
        %v2172 = vadd.f32 %v1703, %v910
        %v2173 = vadd.f32 %v1705, %v912
        %v2174 = vadd.f32 %v1707, %v914
        %v2175 = vadd.f32 %v1711, %v918
        %v2176 = vadd.f32 %v1713, %v920
        %v2177 = vadd.f32 %v1715, %v922
        %v2178 = vadd.f32 %v1717, %v924
        %v2179 = vadd.f32 %v1721, %v928
        %v2180 = vadd.f32 %v1723, %v930
        %v2181 = vadd.f32 %v1725, %v932
        %v2182 = vadd.f32 %v1727, %v934
        %v2183 = vadd.f32 %v1731, %v938
        %v2184 = vadd.f32 %v1733, %v940
        %v2185 = vadd.f32 %v1735, %v942
        %v2186 = vadd.f32 %v1737, %v944
        %v2187 = vadd.f32 %v1741, %v868
        %v2188 = vadd.f32 %v1743, %v870
        %v2189 = vadd.f32 %v1745, %v872
        %v2190 = vadd.f32 %v1747, %v874
        %v2191 = vadd.f32 %v1751, %v878
        %v2192 = vadd.f32 %v1753, %v880
        %v2193 = vadd.f32 %v1755, %v882
        %v2194 = vadd.f32 %v1757, %v884
        %v2195 = vadd.f32 %v1761, %v888
        %v2196 = vadd.f32 %v1763, %v890
        %v2197 = vadd.f32 %v1765, %v892
        %v2198 = vadd.f32 %v1767, %v894
        %v2199 = vadd.f32 %v1771, %v898
        %v2200 = vadd.f32 %v1773, %v900
        %v2201 = vadd.f32 %v1775, %v902
        %v2202 = vadd.f32 %v1777, %v904
        %v2203 = vadd.f32 %v1781, %v908
        %v2204 = vadd.f32 %v1783, %v910
        %v2205 = vadd.f32 %v1785, %v912
        %v2206 = vadd.f32 %v1787, %v914
        %v2207 = vadd.f32 %v1791, %v918
        %v2208 = vadd.f32 %v1793, %v920
        %v2209 = vadd.f32 %v1795, %v922
        %v2210 = vadd.f32 %v1797, %v924
        %v2211 = vadd.f32 %v1801, %v928
        %v2212 = vadd.f32 %v1803, %v930
        %v2213 = vadd.f32 %v1805, %v932
        %v2214 = vadd.f32 %v1807, %v934
        %v2215 = vadd.f32 %v1811, %v938
        %v2216 = vadd.f32 %v1813, %v940
        %v2217 = vadd.f32 %v1815, %v942
        %v2218 = vadd.f32 %v1817, %v944
        %v2219 = vadd.f32 %v1821, %v868
        %v2220 = vadd.f32 %v1823, %v870
        %v2221 = vadd.f32 %v1825, %v872
        %v2222 = vadd.f32 %v1827, %v874
        %v2223 = vadd.f32 %v1831, %v878
        %v2224 = vadd.f32 %v1833, %v880
        %v2225 = vadd.f32 %v1835, %v882
        %v2226 = vadd.f32 %v1837, %v884
        %v2227 = vadd.f32 %v1841, %v888
        %v2228 = vadd.f32 %v1843, %v890
        %v2229 = vadd.f32 %v1845, %v892
        %v2230 = vadd.f32 %v1847, %v894
        %v2231 = vadd.f32 %v1851, %v898
        %v2232 = vadd.f32 %v1853, %v900
        %v2233 = vadd.f32 %v1855, %v902
        %v2234 = vadd.f32 %v1857, %v904
        %v2235 = vadd.f32 %v1861, %v908
        %v2236 = vadd.f32 %v1863, %v910
        %v2237 = vadd.f32 %v1865, %v912
        %v2238 = vadd.f32 %v1867, %v914
        %v2239 = vadd.f32 %v1871, %v918
        %v2240 = vadd.f32 %v1873, %v920
        %v2241 = vadd.f32 %v1875, %v922
        %v2242 = vadd.f32 %v1877, %v924
        %v2243 = vadd.f32 %v1881, %v928
        %v2244 = vadd.f32 %v1883, %v930
        %v2245 = vadd.f32 %v1885, %v932
        %v2246 = vadd.f32 %v1887, %v934
        %v2247 = vadd.f32 %v1891, %v938
        %v2248 = vadd.f32 %v1893, %v940
        %v2249 = vadd.f32 %v1895, %v942
        %v2250 = vadd.f32 %v1897, %v944
        %v2251 = vadd.f32 %v1901, %v868
        %v2252 = vadd.f32 %v1903, %v870
        %v2253 = vadd.f32 %v1905, %v872
        %v2254 = vadd.f32 %v1907, %v874
        %v2255 = vadd.f32 %v1911, %v878
        %v2256 = vadd.f32 %v1913, %v880
        %v2257 = vadd.f32 %v1915, %v882
        %v2258 = vadd.f32 %v1917, %v884
        %v2259 = vadd.f32 %v1921, %v888
        %v2260 = vadd.f32 %v1923, %v890
        %v2261 = vadd.f32 %v1925, %v892
        %v2262 = vadd.f32 %v1927, %v894
        %v2263 = vadd.f32 %v1931, %v898
        %v2264 = vadd.f32 %v1933, %v900
        %v2265 = vadd.f32 %v1935, %v902
        %v2266 = vadd.f32 %v1937, %v904
        %v2267 = vadd.f32 %v1941, %v908
        %v2268 = vadd.f32 %v1943, %v910
        %v2269 = vadd.f32 %v1945, %v912
        %v2270 = vadd.f32 %v1947, %v914
        %v2271 = vadd.f32 %v1951, %v918
        %v2272 = vadd.f32 %v1953, %v920
        %v2273 = vadd.f32 %v1955, %v922
        %v2274 = vadd.f32 %v1957, %v924
        %v2275 = vadd.f32 %v1961, %v928
        %v2276 = vadd.f32 %v1963, %v930
        %v2277 = vadd.f32 %v1965, %v932
        %v2278 = vadd.f32 %v1967, %v934
        %v2279 = vadd.f32 %v1971, %v938
        %v2280 = vadd.f32 %v1973, %v940
        %v2281 = vadd.f32 %v1975, %v942
        %v2282 = vadd.f32 %v1977, %v944
        %v2283 = vadd.f32 %v1981, %v868
        %v2284 = vadd.f32 %v1983, %v870
        %v2285 = vadd.f32 %v1985, %v872
        %v2286 = vadd.f32 %v1987, %v874
        %v2287 = vadd.f32 %v1991, %v878
        %v2288 = vadd.f32 %v1993, %v880
        %v2289 = vadd.f32 %v1995, %v882
        %v2290 = vadd.f32 %v1997, %v884
        %v2291 = vadd.f32 %v2001, %v888
        %v2292 = vadd.f32 %v2003, %v890
        %v2293 = vadd.f32 %v2005, %v892
        %v2294 = vadd.f32 %v2007, %v894
        %v2295 = vadd.f32 %v2011, %v898
        %v2296 = vadd.f32 %v2013, %v900
        %v2297 = vadd.f32 %v2015, %v902
        %v2298 = vadd.f32 %v2017, %v904
        %v2299 = vadd.f32 %v2021, %v908
        %v2300 = vadd.f32 %v2023, %v910
        %v2301 = vadd.f32 %v2025, %v912
        %v2302 = vadd.f32 %v2027, %v914
        %v2303 = vadd.f32 %v2031, %v918
        %v2304 = vadd.f32 %v2033, %v920
        %v2305 = vadd.f32 %v2035, %v922
        %v2306 = vadd.f32 %v2037, %v924
        %v2307 = vadd.f32 %v2041, %v928
        %v2308 = vadd.f32 %v2043, %v930
        %v2309 = vadd.f32 %v2045, %v932
        %v2310 = vadd.f32 %v2047, %v934
        %v2311 = vadd.f32 %v2051, %v938
        %v2312 = vadd.f32 %v2053, %v940
        %v2313 = vadd.f32 %v2055, %v942
        %v2314 = vadd.f32 %v2057, %v944
        %v2315 = vld [vmem:[%s7] sm:$0x3]
        %v2317 = vlaneseq
        %v2318 = vshrl.u32 %v2317, 7
        %v2319 = vsub.s32 0, %v2318
        %v2320 = vrot.slane %v2315, %v2319
        %v2321 = vlaneseq
        %v2322 = vshrl.u32 %v2321, 7
        %v2323 = vsub.s32 1, %v2322
        %v2324 = vrot.slane %v2315, %v2323
        %v2327 = vadd.f32 %v2059, %v2320
        %v2328 = vadd.f32 %v2060, %v2324
        %v2329 = vadd.f32 %v2061, %v2320
        %v2330 = vadd.f32 %v2062, %v2324
        %v2331 = vadd.f32 %v2063, %v2320
        %v2332 = vadd.f32 %v2064, %v2324
        %v2333 = vadd.f32 %v2065, %v2320
        %v2334 = vadd.f32 %v2066, %v2324
        %v2335 = vadd.f32 %v2067, %v2320
        %v2336 = vadd.f32 %v2068, %v2324
        %v2337 = vadd.f32 %v2069, %v2320
        %v2338 = vadd.f32 %v2070, %v2324
        %v2339 = vadd.f32 %v2071, %v2320
        %v2340 = vadd.f32 %v2072, %v2324
        %v2341 = vadd.f32 %v2073, %v2320
        %v2342 = vadd.f32 %v2074, %v2324
        %v2343 = vadd.f32 %v2075, %v2320
        %v2344 = vadd.f32 %v2076, %v2324
        %v2345 = vadd.f32 %v2077, %v2320
        %v2346 = vadd.f32 %v2078, %v2324
        %v2347 = vadd.f32 %v2079, %v2320
        %v2348 = vadd.f32 %v2080, %v2324
        %v2349 = vadd.f32 %v2081, %v2320
        %v2350 = vadd.f32 %v2082, %v2324
        %v2351 = vadd.f32 %v2083, %v2320
        %v2352 = vadd.f32 %v2084, %v2324
        %v2353 = vadd.f32 %v2085, %v2320
        %v2354 = vadd.f32 %v2086, %v2324
        %v2355 = vadd.f32 %v2087, %v2320
        %v2356 = vadd.f32 %v2088, %v2324
        %v2357 = vadd.f32 %v2089, %v2320
        %v2358 = vadd.f32 %v2090, %v2324
        %v2359 = vadd.f32 %v2091, %v2320
        %v2360 = vadd.f32 %v2092, %v2324
        %v2361 = vadd.f32 %v2093, %v2320
        %v2362 = vadd.f32 %v2094, %v2324
        %v2363 = vadd.f32 %v2095, %v2320
        %v2364 = vadd.f32 %v2096, %v2324
        %v2365 = vadd.f32 %v2097, %v2320
        %v2366 = vadd.f32 %v2098, %v2324
        %v2367 = vadd.f32 %v2099, %v2320
        %v2368 = vadd.f32 %v2100, %v2324
        %v2369 = vadd.f32 %v2101, %v2320
        %v2370 = vadd.f32 %v2102, %v2324
        %v2371 = vadd.f32 %v2103, %v2320
        %v2372 = vadd.f32 %v2104, %v2324
        %v2373 = vadd.f32 %v2105, %v2320
        %v2374 = vadd.f32 %v2106, %v2324
        %v2375 = vadd.f32 %v2107, %v2320
        %v2376 = vadd.f32 %v2108, %v2324
        %v2377 = vadd.f32 %v2109, %v2320
        %v2378 = vadd.f32 %v2110, %v2324
        %v2379 = vadd.f32 %v2111, %v2320
        %v2380 = vadd.f32 %v2112, %v2324
        %v2381 = vadd.f32 %v2113, %v2320
        %v2382 = vadd.f32 %v2114, %v2324
        %v2383 = vadd.f32 %v2115, %v2320
        %v2384 = vadd.f32 %v2116, %v2324
        %v2385 = vadd.f32 %v2117, %v2320
        %v2386 = vadd.f32 %v2118, %v2324
        %v2387 = vadd.f32 %v2119, %v2320
        %v2388 = vadd.f32 %v2120, %v2324
        %v2389 = vadd.f32 %v2121, %v2320
        %v2390 = vadd.f32 %v2122, %v2324
        %v2391 = vadd.f32 %v2123, %v2320
        %v2392 = vadd.f32 %v2124, %v2324
        %v2393 = vadd.f32 %v2125, %v2320
        %v2394 = vadd.f32 %v2126, %v2324
        %v2395 = vadd.f32 %v2127, %v2320
        %v2396 = vadd.f32 %v2128, %v2324
        %v2397 = vadd.f32 %v2129, %v2320
        %v2398 = vadd.f32 %v2130, %v2324
        %v2399 = vadd.f32 %v2131, %v2320
        %v2400 = vadd.f32 %v2132, %v2324
        %v2401 = vadd.f32 %v2133, %v2320
        %v2402 = vadd.f32 %v2134, %v2324
        %v2403 = vadd.f32 %v2135, %v2320
        %v2404 = vadd.f32 %v2136, %v2324
        %v2405 = vadd.f32 %v2137, %v2320
        %v2406 = vadd.f32 %v2138, %v2324
        %v2407 = vadd.f32 %v2139, %v2320
        %v2408 = vadd.f32 %v2140, %v2324
        %v2409 = vadd.f32 %v2141, %v2320
        %v2410 = vadd.f32 %v2142, %v2324
        %v2411 = vadd.f32 %v2143, %v2320
        %v2412 = vadd.f32 %v2144, %v2324
        %v2413 = vadd.f32 %v2145, %v2320
        %v2414 = vadd.f32 %v2146, %v2324
        %v2415 = vadd.f32 %v2147, %v2320
        %v2416 = vadd.f32 %v2148, %v2324
        %v2417 = vadd.f32 %v2149, %v2320
        %v2418 = vadd.f32 %v2150, %v2324
        %v2419 = vadd.f32 %v2151, %v2320
        %v2420 = vadd.f32 %v2152, %v2324
        %v2421 = vadd.f32 %v2153, %v2320
        %v2422 = vadd.f32 %v2154, %v2324
        %v2423 = vadd.f32 %v2155, %v2320
        %v2424 = vadd.f32 %v2156, %v2324
        %v2425 = vadd.f32 %v2157, %v2320
        %v2426 = vadd.f32 %v2158, %v2324
        %v2427 = vadd.f32 %v2159, %v2320
        %v2428 = vadd.f32 %v2160, %v2324
        %v2429 = vadd.f32 %v2161, %v2320
        %v2430 = vadd.f32 %v2162, %v2324
        %v2431 = vadd.f32 %v2163, %v2320
        %v2432 = vadd.f32 %v2164, %v2324
        %v2433 = vadd.f32 %v2165, %v2320
        %v2434 = vadd.f32 %v2166, %v2324
        %v2435 = vadd.f32 %v2167, %v2320
        %v2436 = vadd.f32 %v2168, %v2324
        %v2437 = vadd.f32 %v2169, %v2320
        %v2438 = vadd.f32 %v2170, %v2324
        %v2439 = vadd.f32 %v2171, %v2320
        %v2440 = vadd.f32 %v2172, %v2324
        %v2441 = vadd.f32 %v2173, %v2320
        %v2442 = vadd.f32 %v2174, %v2324
        %v2443 = vadd.f32 %v2175, %v2320
        %v2444 = vadd.f32 %v2176, %v2324
        %v2445 = vadd.f32 %v2177, %v2320
        %v2446 = vadd.f32 %v2178, %v2324
        %v2447 = vadd.f32 %v2179, %v2320
        %v2448 = vadd.f32 %v2180, %v2324
        %v2449 = vadd.f32 %v2181, %v2320
        %v2450 = vadd.f32 %v2182, %v2324
        %v2451 = vadd.f32 %v2183, %v2320
        %v2452 = vadd.f32 %v2184, %v2324
        %v2453 = vadd.f32 %v2185, %v2320
        %v2454 = vadd.f32 %v2186, %v2324
        %v2455 = vadd.f32 %v2187, %v2320
        %v2456 = vadd.f32 %v2188, %v2324
        %v2457 = vadd.f32 %v2189, %v2320
        %v2458 = vadd.f32 %v2190, %v2324
        %v2459 = vadd.f32 %v2191, %v2320
        %v2460 = vadd.f32 %v2192, %v2324
        %v2461 = vadd.f32 %v2193, %v2320
        %v2462 = vadd.f32 %v2194, %v2324
        %v2463 = vadd.f32 %v2195, %v2320
        %v2464 = vadd.f32 %v2196, %v2324
        %v2465 = vadd.f32 %v2197, %v2320
        %v2466 = vadd.f32 %v2198, %v2324
        %v2467 = vadd.f32 %v2199, %v2320
        %v2468 = vadd.f32 %v2200, %v2324
        %v2469 = vadd.f32 %v2201, %v2320
        %v2470 = vadd.f32 %v2202, %v2324
        %v2471 = vadd.f32 %v2203, %v2320
        %v2472 = vadd.f32 %v2204, %v2324
        %v2473 = vadd.f32 %v2205, %v2320
        %v2474 = vadd.f32 %v2206, %v2324
        %v2475 = vadd.f32 %v2207, %v2320
        %v2476 = vadd.f32 %v2208, %v2324
        %v2477 = vadd.f32 %v2209, %v2320
        %v2478 = vadd.f32 %v2210, %v2324
        %v2479 = vadd.f32 %v2211, %v2320
        %v2480 = vadd.f32 %v2212, %v2324
        %v2481 = vadd.f32 %v2213, %v2320
        %v2482 = vadd.f32 %v2214, %v2324
        %v2483 = vadd.f32 %v2215, %v2320
        %v2484 = vadd.f32 %v2216, %v2324
        %v2485 = vadd.f32 %v2217, %v2320
        %v2486 = vadd.f32 %v2218, %v2324
        %v2487 = vadd.f32 %v2219, %v2320
        %v2488 = vadd.f32 %v2220, %v2324
        %v2489 = vadd.f32 %v2221, %v2320
        %v2490 = vadd.f32 %v2222, %v2324
        %v2491 = vadd.f32 %v2223, %v2320
        %v2492 = vadd.f32 %v2224, %v2324
        %v2493 = vadd.f32 %v2225, %v2320
        %v2494 = vadd.f32 %v2226, %v2324
        %v2495 = vadd.f32 %v2227, %v2320
        %v2496 = vadd.f32 %v2228, %v2324
        %v2497 = vadd.f32 %v2229, %v2320
        %v2498 = vadd.f32 %v2230, %v2324
        %v2499 = vadd.f32 %v2231, %v2320
        %v2500 = vadd.f32 %v2232, %v2324
        %v2501 = vadd.f32 %v2233, %v2320
        %v2502 = vadd.f32 %v2234, %v2324
        %v2503 = vadd.f32 %v2235, %v2320
        %v2504 = vadd.f32 %v2236, %v2324
        %v2505 = vadd.f32 %v2237, %v2320
        %v2506 = vadd.f32 %v2238, %v2324
        %v2507 = vadd.f32 %v2239, %v2320
        %v2508 = vadd.f32 %v2240, %v2324
        %v2509 = vadd.f32 %v2241, %v2320
        %v2510 = vadd.f32 %v2242, %v2324
        %v2511 = vadd.f32 %v2243, %v2320
        %v2512 = vadd.f32 %v2244, %v2324
        %v2513 = vadd.f32 %v2245, %v2320
        %v2514 = vadd.f32 %v2246, %v2324
        %v2515 = vadd.f32 %v2247, %v2320
        %v2516 = vadd.f32 %v2248, %v2324
        %v2517 = vadd.f32 %v2249, %v2320
        %v2518 = vadd.f32 %v2250, %v2324
        %v2519 = vadd.f32 %v2251, %v2320
        %v2520 = vadd.f32 %v2252, %v2324
        %v2521 = vadd.f32 %v2253, %v2320
        %v2522 = vadd.f32 %v2254, %v2324
        %v2523 = vadd.f32 %v2255, %v2320
        %v2524 = vadd.f32 %v2256, %v2324
        %v2525 = vadd.f32 %v2257, %v2320
        %v2526 = vadd.f32 %v2258, %v2324
        %v2527 = vadd.f32 %v2259, %v2320
        %v2528 = vadd.f32 %v2260, %v2324
        %v2529 = vadd.f32 %v2261, %v2320
        %v2530 = vadd.f32 %v2262, %v2324
        %v2531 = vadd.f32 %v2263, %v2320
        %v2532 = vadd.f32 %v2264, %v2324
        %v2533 = vadd.f32 %v2265, %v2320
        %v2534 = vadd.f32 %v2266, %v2324
        %v2535 = vadd.f32 %v2267, %v2320
        %v2536 = vadd.f32 %v2268, %v2324
        %v2537 = vadd.f32 %v2269, %v2320
        %v2538 = vadd.f32 %v2270, %v2324
        %v2539 = vadd.f32 %v2271, %v2320
        %v2540 = vadd.f32 %v2272, %v2324
        %v2541 = vadd.f32 %v2273, %v2320
        %v2542 = vadd.f32 %v2274, %v2324
        %v2543 = vadd.f32 %v2275, %v2320
        %v2544 = vadd.f32 %v2276, %v2324
        %v2545 = vadd.f32 %v2277, %v2320
        %v2546 = vadd.f32 %v2278, %v2324
        %v2547 = vadd.f32 %v2279, %v2320
        %v2548 = vadd.f32 %v2280, %v2324
        %v2549 = vadd.f32 %v2281, %v2320
        %v2550 = vadd.f32 %v2282, %v2324
        %v2551 = vadd.f32 %v2283, %v2320
        %v2552 = vadd.f32 %v2284, %v2324
        %v2553 = vadd.f32 %v2285, %v2320
        %v2554 = vadd.f32 %v2286, %v2324
        %v2555 = vadd.f32 %v2287, %v2320
        %v2556 = vadd.f32 %v2288, %v2324
        %v2557 = vadd.f32 %v2289, %v2320
        %v2558 = vadd.f32 %v2290, %v2324
        %v2559 = vadd.f32 %v2291, %v2320
        %v2560 = vadd.f32 %v2292, %v2324
        %v2561 = vadd.f32 %v2293, %v2320
        %v2562 = vadd.f32 %v2294, %v2324
        %v2563 = vadd.f32 %v2295, %v2320
        %v2564 = vadd.f32 %v2296, %v2324
        %v2565 = vadd.f32 %v2297, %v2320
        %v2566 = vadd.f32 %v2298, %v2324
        %v2567 = vadd.f32 %v2299, %v2320
        %v2568 = vadd.f32 %v2300, %v2324
        %v2569 = vadd.f32 %v2301, %v2320
        %v2570 = vadd.f32 %v2302, %v2324
        %v2571 = vadd.f32 %v2303, %v2320
        %v2572 = vadd.f32 %v2304, %v2324
        %v2573 = vadd.f32 %v2305, %v2320
        %v2574 = vadd.f32 %v2306, %v2324
        %v2575 = vadd.f32 %v2307, %v2320
        %v2576 = vadd.f32 %v2308, %v2324
        %v2577 = vadd.f32 %v2309, %v2320
        %v2578 = vadd.f32 %v2310, %v2324
        %v2579 = vadd.f32 %v2311, %v2320
        %v2580 = vadd.f32 %v2312, %v2324
        %v2581 = vadd.f32 %v2313, %v2320
        %v2582 = vadd.f32 %v2314, %v2324
        %v2583 = vmax.f32 %v2327, 0.0
        %v2584 = vmax.f32 %v2328, 0.0
        %v2585 = vmax.f32 %v2329, 0.0
        %v2586 = vmax.f32 %v2330, 0.0
        %v2587 = vmax.f32 %v2331, 0.0
        %v2588 = vmax.f32 %v2332, 0.0
        %v2589 = vmax.f32 %v2333, 0.0
        %v2590 = vmax.f32 %v2334, 0.0
        %v2591 = vmax.f32 %v2335, 0.0
        %v2592 = vmax.f32 %v2336, 0.0
        %v2593 = vmax.f32 %v2337, 0.0
        %v2594 = vmax.f32 %v2338, 0.0
        %v2595 = vmax.f32 %v2339, 0.0
        %v2596 = vmax.f32 %v2340, 0.0
        %v2597 = vmax.f32 %v2341, 0.0
        %v2598 = vmax.f32 %v2342, 0.0
        %v2599 = vmax.f32 %v2343, 0.0
        %v2600 = vmax.f32 %v2344, 0.0
        %v2601 = vmax.f32 %v2345, 0.0
        %v2602 = vmax.f32 %v2346, 0.0
        %v2603 = vmax.f32 %v2347, 0.0
        %v2604 = vmax.f32 %v2348, 0.0
        %v2605 = vmax.f32 %v2349, 0.0
        %v2606 = vmax.f32 %v2350, 0.0
        %v2607 = vmax.f32 %v2351, 0.0
        %v2608 = vmax.f32 %v2352, 0.0
        %v2609 = vmax.f32 %v2353, 0.0
        %v2610 = vmax.f32 %v2354, 0.0
        %v2611 = vmax.f32 %v2355, 0.0
        %v2612 = vmax.f32 %v2356, 0.0
        %v2613 = vmax.f32 %v2357, 0.0
        %v2614 = vmax.f32 %v2358, 0.0
        %v2615 = vmax.f32 %v2359, 0.0
        %v2616 = vmax.f32 %v2360, 0.0
        %v2617 = vmax.f32 %v2361, 0.0
        %v2618 = vmax.f32 %v2362, 0.0
        %v2619 = vmax.f32 %v2363, 0.0
        %v2620 = vmax.f32 %v2364, 0.0
        %v2621 = vmax.f32 %v2365, 0.0
        %v2622 = vmax.f32 %v2366, 0.0
        %v2623 = vmax.f32 %v2367, 0.0
        %v2624 = vmax.f32 %v2368, 0.0
        %v2625 = vmax.f32 %v2369, 0.0
        %v2626 = vmax.f32 %v2370, 0.0
        %v2627 = vmax.f32 %v2371, 0.0
        %v2628 = vmax.f32 %v2372, 0.0
        %v2629 = vmax.f32 %v2373, 0.0
        %v2630 = vmax.f32 %v2374, 0.0
        %v2631 = vmax.f32 %v2375, 0.0
        %v2632 = vmax.f32 %v2376, 0.0
        %v2633 = vmax.f32 %v2377, 0.0
        %v2634 = vmax.f32 %v2378, 0.0
        %v2635 = vmax.f32 %v2379, 0.0
        %v2636 = vmax.f32 %v2380, 0.0
        %v2637 = vmax.f32 %v2381, 0.0
        %v2638 = vmax.f32 %v2382, 0.0
        %v2639 = vmax.f32 %v2383, 0.0
        %v2640 = vmax.f32 %v2384, 0.0
        %v2641 = vmax.f32 %v2385, 0.0
        %v2642 = vmax.f32 %v2386, 0.0
        %v2643 = vmax.f32 %v2387, 0.0
        %v2644 = vmax.f32 %v2388, 0.0
        %v2645 = vmax.f32 %v2389, 0.0
        %v2646 = vmax.f32 %v2390, 0.0
        %v2647 = vmax.f32 %v2391, 0.0
        %v2648 = vmax.f32 %v2392, 0.0
        %v2649 = vmax.f32 %v2393, 0.0
        %v2650 = vmax.f32 %v2394, 0.0
        %v2651 = vmax.f32 %v2395, 0.0
        %v2652 = vmax.f32 %v2396, 0.0
        %v2653 = vmax.f32 %v2397, 0.0
        %v2654 = vmax.f32 %v2398, 0.0
        %v2655 = vmax.f32 %v2399, 0.0
        %v2656 = vmax.f32 %v2400, 0.0
        %v2657 = vmax.f32 %v2401, 0.0
        %v2658 = vmax.f32 %v2402, 0.0
        %v2659 = vmax.f32 %v2403, 0.0
        %v2660 = vmax.f32 %v2404, 0.0
        %v2661 = vmax.f32 %v2405, 0.0
        %v2662 = vmax.f32 %v2406, 0.0
        %v2663 = vmax.f32 %v2407, 0.0
        %v2664 = vmax.f32 %v2408, 0.0
        %v2665 = vmax.f32 %v2409, 0.0
        %v2666 = vmax.f32 %v2410, 0.0
        %v2667 = vmax.f32 %v2411, 0.0
        %v2668 = vmax.f32 %v2412, 0.0
        %v2669 = vmax.f32 %v2413, 0.0
        %v2670 = vmax.f32 %v2414, 0.0
        %v2671 = vmax.f32 %v2415, 0.0
        %v2672 = vmax.f32 %v2416, 0.0
        %v2673 = vmax.f32 %v2417, 0.0
        %v2674 = vmax.f32 %v2418, 0.0
        %v2675 = vmax.f32 %v2419, 0.0
        %v2676 = vmax.f32 %v2420, 0.0
        %v2677 = vmax.f32 %v2421, 0.0
        %v2678 = vmax.f32 %v2422, 0.0
        %v2679 = vmax.f32 %v2423, 0.0
        %v2680 = vmax.f32 %v2424, 0.0
        %v2681 = vmax.f32 %v2425, 0.0
        %v2682 = vmax.f32 %v2426, 0.0
        %v2683 = vmax.f32 %v2427, 0.0
        %v2684 = vmax.f32 %v2428, 0.0
        %v2685 = vmax.f32 %v2429, 0.0
        %v2686 = vmax.f32 %v2430, 0.0
        %v2687 = vmax.f32 %v2431, 0.0
        %v2688 = vmax.f32 %v2432, 0.0
        %v2689 = vmax.f32 %v2433, 0.0
        %v2690 = vmax.f32 %v2434, 0.0
        %v2691 = vmax.f32 %v2435, 0.0
        %v2692 = vmax.f32 %v2436, 0.0
        %v2693 = vmax.f32 %v2437, 0.0
        %v2694 = vmax.f32 %v2438, 0.0
        %v2695 = vmax.f32 %v2439, 0.0
        %v2696 = vmax.f32 %v2440, 0.0
        %v2697 = vmax.f32 %v2441, 0.0
        %v2698 = vmax.f32 %v2442, 0.0
        %v2699 = vmax.f32 %v2443, 0.0
        %v2700 = vmax.f32 %v2444, 0.0
        %v2701 = vmax.f32 %v2445, 0.0
        %v2702 = vmax.f32 %v2446, 0.0
        %v2703 = vmax.f32 %v2447, 0.0
        %v2704 = vmax.f32 %v2448, 0.0
        %v2705 = vmax.f32 %v2449, 0.0
        %v2706 = vmax.f32 %v2450, 0.0
        %v2707 = vmax.f32 %v2451, 0.0
        %v2708 = vmax.f32 %v2452, 0.0
        %v2709 = vmax.f32 %v2453, 0.0
        %v2710 = vmax.f32 %v2454, 0.0
        %v2711 = vmax.f32 %v2455, 0.0
        %v2712 = vmax.f32 %v2456, 0.0
        %v2713 = vmax.f32 %v2457, 0.0
        %v2714 = vmax.f32 %v2458, 0.0
        %v2715 = vmax.f32 %v2459, 0.0
        %v2716 = vmax.f32 %v2460, 0.0
        %v2717 = vmax.f32 %v2461, 0.0
        %v2718 = vmax.f32 %v2462, 0.0
        %v2719 = vmax.f32 %v2463, 0.0
        %v2720 = vmax.f32 %v2464, 0.0
        %v2721 = vmax.f32 %v2465, 0.0
        %v2722 = vmax.f32 %v2466, 0.0
        %v2723 = vmax.f32 %v2467, 0.0
        %v2724 = vmax.f32 %v2468, 0.0
        %v2725 = vmax.f32 %v2469, 0.0
        %v2726 = vmax.f32 %v2470, 0.0
        %v2727 = vmax.f32 %v2471, 0.0
        %v2728 = vmax.f32 %v2472, 0.0
        %v2729 = vmax.f32 %v2473, 0.0
        %v2730 = vmax.f32 %v2474, 0.0
        %v2731 = vmax.f32 %v2475, 0.0
        %v2732 = vmax.f32 %v2476, 0.0
        %v2733 = vmax.f32 %v2477, 0.0
        %v2734 = vmax.f32 %v2478, 0.0
        %v2735 = vmax.f32 %v2479, 0.0
        %v2736 = vmax.f32 %v2480, 0.0
        %v2737 = vmax.f32 %v2481, 0.0
        %v2738 = vmax.f32 %v2482, 0.0
        %v2739 = vmax.f32 %v2483, 0.0
        %v2740 = vmax.f32 %v2484, 0.0
        %v2741 = vmax.f32 %v2485, 0.0
        %v2742 = vmax.f32 %v2486, 0.0
        %v2743 = vmax.f32 %v2487, 0.0
        %v2744 = vmax.f32 %v2488, 0.0
        %v2745 = vmax.f32 %v2489, 0.0
        %v2746 = vmax.f32 %v2490, 0.0
        %v2747 = vmax.f32 %v2491, 0.0
        %v2748 = vmax.f32 %v2492, 0.0
        %v2749 = vmax.f32 %v2493, 0.0
        %v2750 = vmax.f32 %v2494, 0.0
        %v2751 = vmax.f32 %v2495, 0.0
        %v2752 = vmax.f32 %v2496, 0.0
        %v2753 = vmax.f32 %v2497, 0.0
        %v2754 = vmax.f32 %v2498, 0.0
        %v2755 = vmax.f32 %v2499, 0.0
        %v2756 = vmax.f32 %v2500, 0.0
        %v2757 = vmax.f32 %v2501, 0.0
        %v2758 = vmax.f32 %v2502, 0.0
        %v2759 = vmax.f32 %v2503, 0.0
        %v2760 = vmax.f32 %v2504, 0.0
        %v2761 = vmax.f32 %v2505, 0.0
        %v2762 = vmax.f32 %v2506, 0.0
        %v2763 = vmax.f32 %v2507, 0.0
        %v2764 = vmax.f32 %v2508, 0.0
        %v2765 = vmax.f32 %v2509, 0.0
        %v2766 = vmax.f32 %v2510, 0.0
        %v2767 = vmax.f32 %v2511, 0.0
        %v2768 = vmax.f32 %v2512, 0.0
        %v2769 = vmax.f32 %v2513, 0.0
        %v2770 = vmax.f32 %v2514, 0.0
        %v2771 = vmax.f32 %v2515, 0.0
        %v2772 = vmax.f32 %v2516, 0.0
        %v2773 = vmax.f32 %v2517, 0.0
        %v2774 = vmax.f32 %v2518, 0.0
        %v2775 = vmax.f32 %v2519, 0.0
        %v2776 = vmax.f32 %v2520, 0.0
        %v2777 = vmax.f32 %v2521, 0.0
        %v2778 = vmax.f32 %v2522, 0.0
        %v2779 = vmax.f32 %v2523, 0.0
        %v2780 = vmax.f32 %v2524, 0.0
        %v2781 = vmax.f32 %v2525, 0.0
        %v2782 = vmax.f32 %v2526, 0.0
        %v2783 = vmax.f32 %v2527, 0.0
        %v2784 = vmax.f32 %v2528, 0.0
        %v2785 = vmax.f32 %v2529, 0.0
        %v2786 = vmax.f32 %v2530, 0.0
        %v2787 = vmax.f32 %v2531, 0.0
        %v2788 = vmax.f32 %v2532, 0.0
        %v2789 = vmax.f32 %v2533, 0.0
        %v2790 = vmax.f32 %v2534, 0.0
        %v2791 = vmax.f32 %v2535, 0.0
        %v2792 = vmax.f32 %v2536, 0.0
        %v2793 = vmax.f32 %v2537, 0.0
        %v2794 = vmax.f32 %v2538, 0.0
        %v2795 = vmax.f32 %v2539, 0.0
        %v2796 = vmax.f32 %v2540, 0.0
        %v2797 = vmax.f32 %v2541, 0.0
        %v2798 = vmax.f32 %v2542, 0.0
        %v2799 = vmax.f32 %v2543, 0.0
        %v2800 = vmax.f32 %v2544, 0.0
        %v2801 = vmax.f32 %v2545, 0.0
        %v2802 = vmax.f32 %v2546, 0.0
        %v2803 = vmax.f32 %v2547, 0.0
        %v2804 = vmax.f32 %v2548, 0.0
        %v2805 = vmax.f32 %v2549, 0.0
        %v2806 = vmax.f32 %v2550, 0.0
        %v2807 = vmax.f32 %v2551, 0.0
        %v2808 = vmax.f32 %v2552, 0.0
        %v2809 = vmax.f32 %v2553, 0.0
        %v2810 = vmax.f32 %v2554, 0.0
        %v2811 = vmax.f32 %v2555, 0.0
        %v2812 = vmax.f32 %v2556, 0.0
        %v2813 = vmax.f32 %v2557, 0.0
        %v2814 = vmax.f32 %v2558, 0.0
        %v2815 = vmax.f32 %v2559, 0.0
        %v2816 = vmax.f32 %v2560, 0.0
        %v2817 = vmax.f32 %v2561, 0.0
        %v2818 = vmax.f32 %v2562, 0.0
        %v2819 = vmax.f32 %v2563, 0.0
        %v2820 = vmax.f32 %v2564, 0.0
        %v2821 = vmax.f32 %v2565, 0.0
        %v2822 = vmax.f32 %v2566, 0.0
        %v2823 = vmax.f32 %v2567, 0.0
        %v2824 = vmax.f32 %v2568, 0.0
        %v2825 = vmax.f32 %v2569, 0.0
        %v2826 = vmax.f32 %v2570, 0.0
        %v2827 = vmax.f32 %v2571, 0.0
        %v2828 = vmax.f32 %v2572, 0.0
        %v2829 = vmax.f32 %v2573, 0.0
        %v2830 = vmax.f32 %v2574, 0.0
        %v2831 = vmax.f32 %v2575, 0.0
        %v2832 = vmax.f32 %v2576, 0.0
        %v2833 = vmax.f32 %v2577, 0.0
        %v2834 = vmax.f32 %v2578, 0.0
        %v2835 = vmax.f32 %v2579, 0.0
        %v2836 = vmax.f32 %v2580, 0.0
        %v2837 = vmax.f32 %v2581, 0.0
        %v2838 = vmax.f32 %v2582, 0.0
        %v2839 = vpack.c.bf16 %v2585, %v2583
        %v2840 = vpack.c.bf16 %v2586, %v2584
        %v2841 = vpack.c.bf16 %v2589, %v2587
        %v2842 = vpack.c.bf16 %v2590, %v2588
        %v2843 = vpack.c.bf16 %v2593, %v2591
        %v2844 = vpack.c.bf16 %v2594, %v2592
        %v2845 = vpack.c.bf16 %v2597, %v2595
        %v2846 = vpack.c.bf16 %v2598, %v2596
        %v2847 = vpack.c.bf16 %v2601, %v2599
        %v2848 = vpack.c.bf16 %v2602, %v2600
        %v2849 = vpack.c.bf16 %v2605, %v2603
        %v2850 = vpack.c.bf16 %v2606, %v2604
        %v2851 = vpack.c.bf16 %v2609, %v2607
        %v2852 = vpack.c.bf16 %v2610, %v2608
        %v2853 = vpack.c.bf16 %v2613, %v2611
        %v2854 = vpack.c.bf16 %v2614, %v2612
        %v2855 = vpack.c.bf16 %v2617, %v2615
        %v2856 = vpack.c.bf16 %v2618, %v2616
        %v2857 = vpack.c.bf16 %v2621, %v2619
        %v2858 = vpack.c.bf16 %v2622, %v2620
        %v2859 = vpack.c.bf16 %v2625, %v2623
        %v2860 = vpack.c.bf16 %v2626, %v2624
        %v2861 = vpack.c.bf16 %v2629, %v2627
        %v2862 = vpack.c.bf16 %v2630, %v2628
        %v2863 = vpack.c.bf16 %v2633, %v2631
        %v2864 = vpack.c.bf16 %v2634, %v2632
        %v2865 = vpack.c.bf16 %v2637, %v2635
        %v2866 = vpack.c.bf16 %v2638, %v2636
        %v2867 = vpack.c.bf16 %v2641, %v2639
        %v2868 = vpack.c.bf16 %v2642, %v2640
        %v2869 = vpack.c.bf16 %v2645, %v2643
        %v2870 = vpack.c.bf16 %v2646, %v2644
        %v2871 = vpack.c.bf16 %v2649, %v2647
        %v2872 = vpack.c.bf16 %v2650, %v2648
        %v2873 = vpack.c.bf16 %v2653, %v2651
        %v2874 = vpack.c.bf16 %v2654, %v2652
        %v2875 = vpack.c.bf16 %v2657, %v2655
        %v2876 = vpack.c.bf16 %v2658, %v2656
        %v2877 = vpack.c.bf16 %v2661, %v2659
        %v2878 = vpack.c.bf16 %v2662, %v2660
        %v2879 = vpack.c.bf16 %v2665, %v2663
        %v2880 = vpack.c.bf16 %v2666, %v2664
        %v2881 = vpack.c.bf16 %v2669, %v2667
        %v2882 = vpack.c.bf16 %v2670, %v2668
        %v2883 = vpack.c.bf16 %v2673, %v2671
        %v2884 = vpack.c.bf16 %v2674, %v2672
        %v2885 = vpack.c.bf16 %v2677, %v2675
        %v2886 = vpack.c.bf16 %v2678, %v2676
        %v2887 = vpack.c.bf16 %v2681, %v2679
        %v2888 = vpack.c.bf16 %v2682, %v2680
        %v2889 = vpack.c.bf16 %v2685, %v2683
        %v2890 = vpack.c.bf16 %v2686, %v2684
        %v2891 = vpack.c.bf16 %v2689, %v2687
        %v2892 = vpack.c.bf16 %v2690, %v2688
        %v2893 = vpack.c.bf16 %v2693, %v2691
        %v2894 = vpack.c.bf16 %v2694, %v2692
        %v2895 = vpack.c.bf16 %v2697, %v2695
        %v2896 = vpack.c.bf16 %v2698, %v2696
        %v2897 = vpack.c.bf16 %v2701, %v2699
        %v2898 = vpack.c.bf16 %v2702, %v2700
        %v2899 = vpack.c.bf16 %v2705, %v2703
        %v2900 = vpack.c.bf16 %v2706, %v2704
        %v2901 = vpack.c.bf16 %v2709, %v2707
        %v2902 = vpack.c.bf16 %v2710, %v2708
        %v2903 = vpack.c.bf16 %v2713, %v2711
        %v2904 = vpack.c.bf16 %v2714, %v2712
        %v2905 = vpack.c.bf16 %v2717, %v2715
        %v2906 = vpack.c.bf16 %v2718, %v2716
        %v2907 = vpack.c.bf16 %v2721, %v2719
        %v2908 = vpack.c.bf16 %v2722, %v2720
        %v2909 = vpack.c.bf16 %v2725, %v2723
        %v2910 = vpack.c.bf16 %v2726, %v2724
        %v2911 = vpack.c.bf16 %v2729, %v2727
        %v2912 = vpack.c.bf16 %v2730, %v2728
        %v2913 = vpack.c.bf16 %v2733, %v2731
        %v2914 = vpack.c.bf16 %v2734, %v2732
        %v2915 = vpack.c.bf16 %v2737, %v2735
        %v2916 = vpack.c.bf16 %v2738, %v2736
        %v2917 = vpack.c.bf16 %v2741, %v2739
        %v2918 = vpack.c.bf16 %v2742, %v2740
        %v2919 = vpack.c.bf16 %v2745, %v2743
        %v2920 = vpack.c.bf16 %v2746, %v2744
        %v2921 = vpack.c.bf16 %v2749, %v2747
        %v2922 = vpack.c.bf16 %v2750, %v2748
        %v2923 = vpack.c.bf16 %v2753, %v2751
        %v2924 = vpack.c.bf16 %v2754, %v2752
        %v2925 = vpack.c.bf16 %v2757, %v2755
        %v2926 = vpack.c.bf16 %v2758, %v2756
        %v2927 = vpack.c.bf16 %v2761, %v2759
        %v2928 = vpack.c.bf16 %v2762, %v2760
        %v2929 = vpack.c.bf16 %v2765, %v2763
        %v2930 = vpack.c.bf16 %v2766, %v2764
        %v2931 = vpack.c.bf16 %v2769, %v2767
        %v2932 = vpack.c.bf16 %v2770, %v2768
        %v2933 = vpack.c.bf16 %v2773, %v2771
        %v2934 = vpack.c.bf16 %v2774, %v2772
        %v2935 = vpack.c.bf16 %v2777, %v2775
        %v2936 = vpack.c.bf16 %v2778, %v2776
        %v2937 = vpack.c.bf16 %v2781, %v2779
        %v2938 = vpack.c.bf16 %v2782, %v2780
        %v2939 = vpack.c.bf16 %v2785, %v2783
        %v2940 = vpack.c.bf16 %v2786, %v2784
        %v2941 = vpack.c.bf16 %v2789, %v2787
        %v2942 = vpack.c.bf16 %v2790, %v2788
        %v2943 = vpack.c.bf16 %v2793, %v2791
        %v2944 = vpack.c.bf16 %v2794, %v2792
        %v2945 = vpack.c.bf16 %v2797, %v2795
        %v2946 = vpack.c.bf16 %v2798, %v2796
        %v2947 = vpack.c.bf16 %v2801, %v2799
        %v2948 = vpack.c.bf16 %v2802, %v2800
        %v2949 = vpack.c.bf16 %v2805, %v2803
        %v2950 = vpack.c.bf16 %v2806, %v2804
        %v2951 = vpack.c.bf16 %v2809, %v2807
        %v2952 = vpack.c.bf16 %v2810, %v2808
        %v2953 = vpack.c.bf16 %v2813, %v2811
        %v2954 = vpack.c.bf16 %v2814, %v2812
        %v2955 = vpack.c.bf16 %v2817, %v2815
        %v2956 = vpack.c.bf16 %v2818, %v2816
        %v2957 = vpack.c.bf16 %v2821, %v2819
        %v2958 = vpack.c.bf16 %v2822, %v2820
        %v2959 = vpack.c.bf16 %v2825, %v2823
        %v2960 = vpack.c.bf16 %v2826, %v2824
        %v2961 = vpack.c.bf16 %v2829, %v2827
        %v2962 = vpack.c.bf16 %v2830, %v2828
        %v2963 = vpack.c.bf16 %v2833, %v2831
        %v2964 = vpack.c.bf16 %v2834, %v2832
        %v2965 = vpack.c.bf16 %v2837, %v2835
        %v2966 = vpack.c.bf16 %v2838, %v2836
        %v2967 = vld [vmem:[#allocation8] sm:$0xff]
        %v2968 = vld [vmem:[#allocation8 + $0x8] sm:$0xff]
        %v2969 = vld [vmem:[#allocation8 + $0x10] sm:$0xff]
        %v2970 = vld [vmem:[#allocation8 + $0x18] sm:$0xff]
        %v2971 = vld [vmem:[#allocation8 + $0x20] sm:$0xff]
        %v2972 = vld [vmem:[#allocation8 + $0x28] sm:$0xff]
        %v2973 = vld [vmem:[#allocation8 + $0x30] sm:$0xff]
        %v2974 = vld [vmem:[#allocation8 + $0x38] sm:$0xff]
        %v2975 = vld [vmem:[#allocation8 + $0x40] sm:$0xff]
        %v2976 = vld [vmem:[#allocation8 + $0x48] sm:$0xff]
        %v2977 = vld [vmem:[#allocation8 + $0x50] sm:$0xff]
        %v2978 = vld [vmem:[#allocation8 + $0x58] sm:$0xff]
        %v2979 = vld [vmem:[#allocation8 + $0x60] sm:$0xff]
        %v2980 = vld [vmem:[#allocation8 + $0x68] sm:$0xff]
        %v2981 = vld [vmem:[#allocation8 + $0x70] sm:$0xff]
        %v2982 = vld [vmem:[#allocation8 + $0x78] sm:$0xff]
        %v2983 = vld [vmem:[#allocation8 + $0x80] sm:$0xff]
        %v2984 = vld [vmem:[#allocation8 + $0x88] sm:$0xff]
        %v2985 = vld [vmem:[#allocation8 + $0x90] sm:$0xff]
        %v2986 = vld [vmem:[#allocation8 + $0x98] sm:$0xff]
        %v2987 = vld [vmem:[#allocation8 + $0xa0] sm:$0xff]
        %v2988 = vld [vmem:[#allocation8 + $0xa8] sm:$0xff]
        %v2989 = vld [vmem:[#allocation8 + $0xb0] sm:$0xff]
        %v2990 = vld [vmem:[#allocation8 + $0xb8] sm:$0xff]
        %v2991 = vld [vmem:[#allocation8 + $0xc0] sm:$0xff]
        %v2992 = vld [vmem:[#allocation8 + $0xc8] sm:$0xff]
        %v2993 = vld [vmem:[#allocation8 + $0xd0] sm:$0xff]
        %v2994 = vld [vmem:[#allocation8 + $0xd8] sm:$0xff]
        %v2995 = vld [vmem:[#allocation8 + $0xe0] sm:$0xff]
        %v2996 = vld [vmem:[#allocation8 + $0xe8] sm:$0xff]
        %v2997 = vld [vmem:[#allocation8 + $0xf0] sm:$0xff]
        %v2998 = vld [vmem:[#allocation8 + $0xf8] sm:$0xff]
        %v2999 = vld [vmem:[%s9] sm:$0x3]
        %v3001 = vlaneseq
        %v3002 = vshrl.u32 %v3001, 7
        %v3003 = vsub.s32 0, %v3002
        %v3004 = vrot.slane %v2999, %v3003
        %v3005 = vlaneseq
        %v3006 = vshrl.u32 %v3005, 7
        %v3007 = vsub.s32 1, %v3006
        %v3008 = vrot.slane %v2999, %v3007
        %v3043 = vunpack.c.l.b16 %v2967
        %v3044 = vunpack.c.h.b16 %v2967
        %v3045 = vunpack.c.l.b16 %v2968
        %v3046 = vunpack.c.h.b16 %v2968
        %v3047 = vunpack.c.l.b16 %v2969
        %v3048 = vunpack.c.h.b16 %v2969
        %v3049 = vunpack.c.l.b16 %v2970
        %v3050 = vunpack.c.h.b16 %v2970
        %v3051 = vunpack.c.l.b16 %v2971
        %v3052 = vunpack.c.h.b16 %v2971
        %v3053 = vunpack.c.l.b16 %v2972
        %v3054 = vunpack.c.h.b16 %v2972
        %v3055 = vunpack.c.l.b16 %v2973
        %v3056 = vunpack.c.h.b16 %v2973
        %v3057 = vunpack.c.l.b16 %v2974
        %v3058 = vunpack.c.h.b16 %v2974
        %v3059 = vunpack.c.l.b16 %v2975
        %v3060 = vunpack.c.h.b16 %v2975
        %v3061 = vunpack.c.l.b16 %v2976
        %v3062 = vunpack.c.h.b16 %v2976
        %v3063 = vunpack.c.l.b16 %v2977
        %v3064 = vunpack.c.h.b16 %v2977
        %v3065 = vunpack.c.l.b16 %v2978
        %v3066 = vunpack.c.h.b16 %v2978
        %v3067 = vunpack.c.l.b16 %v2979
        %v3068 = vunpack.c.h.b16 %v2979
        %v3069 = vunpack.c.l.b16 %v2980
        %v3070 = vunpack.c.h.b16 %v2980
        %v3071 = vunpack.c.l.b16 %v2981
        %v3072 = vunpack.c.h.b16 %v2981
        %v3073 = vunpack.c.l.b16 %v2982
        %v3074 = vunpack.c.h.b16 %v2982
        %v3075 = vunpack.c.l.b16 %v2983
        %v3076 = vunpack.c.h.b16 %v2983
        %v3077 = vunpack.c.l.b16 %v2984
        %v3078 = vunpack.c.h.b16 %v2984
        %v3079 = vunpack.c.l.b16 %v2985
        %v3080 = vunpack.c.h.b16 %v2985
        %v3081 = vunpack.c.l.b16 %v2986
        %v3082 = vunpack.c.h.b16 %v2986
        %v3083 = vunpack.c.l.b16 %v2987
        %v3084 = vunpack.c.h.b16 %v2987
        %v3085 = vunpack.c.l.b16 %v2988
        %v3086 = vunpack.c.h.b16 %v2988
        %v3087 = vunpack.c.l.b16 %v2989
        %v3088 = vunpack.c.h.b16 %v2989
        %v3089 = vunpack.c.l.b16 %v2990
        %v3090 = vunpack.c.h.b16 %v2990
        %v3091 = vunpack.c.l.b16 %v2991
        %v3092 = vunpack.c.h.b16 %v2991
        %v3093 = vunpack.c.l.b16 %v2992
        %v3094 = vunpack.c.h.b16 %v2992
        %v3095 = vunpack.c.l.b16 %v2993
        %v3096 = vunpack.c.h.b16 %v2993
        %v3097 = vunpack.c.l.b16 %v2994
        %v3098 = vunpack.c.h.b16 %v2994
        %v3099 = vunpack.c.l.b16 %v2995
        %v3100 = vunpack.c.h.b16 %v2995
        %v3101 = vunpack.c.l.b16 %v2996
        %v3102 = vunpack.c.h.b16 %v2996
        %v3103 = vunpack.c.l.b16 %v2997
        %v3104 = vunpack.c.h.b16 %v2997
        %v3105 = vunpack.c.l.b16 %v2998
        %v3106 = vunpack.c.h.b16 %v2998
        %v3107 = vpack.c.b16 %v3045, %v3043
        %v3108 = vpack.c.b16 %v3046, %v3044
        %v3109 = vpack.c.b16 %v3049, %v3047
        %v3110 = vpack.c.b16 %v3050, %v3048
        %v3111 = vpack.c.b16 %v3053, %v3051
        %v3112 = vpack.c.b16 %v3054, %v3052
        %v3113 = vpack.c.b16 %v3057, %v3055
        %v3114 = vpack.c.b16 %v3058, %v3056
        %v3115 = vpack.c.b16 %v3061, %v3059
        %v3116 = vpack.c.b16 %v3062, %v3060
        %v3117 = vpack.c.b16 %v3065, %v3063
        %v3118 = vpack.c.b16 %v3066, %v3064
        %v3119 = vpack.c.b16 %v3069, %v3067
        %v3120 = vpack.c.b16 %v3070, %v3068
        %v3121 = vpack.c.b16 %v3073, %v3071
        %v3122 = vpack.c.b16 %v3074, %v3072
        %v3123 = vpack.c.b16 %v3077, %v3075
        %v3124 = vpack.c.b16 %v3078, %v3076
        %v3125 = vpack.c.b16 %v3081, %v3079
        %v3126 = vpack.c.b16 %v3082, %v3080
        %v3127 = vpack.c.b16 %v3085, %v3083
        %v3128 = vpack.c.b16 %v3086, %v3084
        %v3129 = vpack.c.b16 %v3089, %v3087
        %v3130 = vpack.c.b16 %v3090, %v3088
        %v3131 = vpack.c.b16 %v3093, %v3091
        %v3132 = vpack.c.b16 %v3094, %v3092
        %v3133 = vpack.c.b16 %v3097, %v3095
        %v3134 = vpack.c.b16 %v3098, %v3096
        %v3135 = vpack.c.b16 %v3101, %v3099
        %v3136 = vpack.c.b16 %v3102, %v3100
        %v3137 = vpack.c.b16 %v3105, %v3103
        %v3138 = vpack.c.b16 %v3106, %v3104
        %3171 = vmatprep.subr.bf16.mxu0 %v3108
        %3172 = vmatpush1.bf16.msra.mxu0 %v3107
        %3173 = vmatprep.subr.bf16.mxu0 %v3110
        %3174 = vmatpush1.bf16.msra.mxu0 %v3109
        %3175 = vmatprep.subr.bf16.mxu0 %v3112
        %3176 = vmatpush1.bf16.msra.mxu0 %v3111
        %3177 = vmatprep.subr.bf16.mxu0 %v3114
        %3178 = vmatpush1.bf16.msra.mxu0 %v3113
        %3179 = vmatprep.subr.bf16.mxu0 %v3116
        %3180 = vmatpush1.bf16.msra.mxu0 %v3115
        %3181 = vmatprep.subr.bf16.mxu0 %v3118
        %3182 = vmatpush1.bf16.msra.mxu0 %v3117
        %3183 = vmatprep.subr.bf16.mxu0 %v3120
        %3184 = vmatpush1.bf16.msra.mxu0 %v3119
        %3185 = vmatprep.subr.bf16.mxu0 %v3122
        %3186 = vmatpush1.bf16.msra.mxu0 %v3121
        %3187 = vmatprep.subr.bf16.mxu0 %v3124
        %3188 = vmatpush1.bf16.msra.mxu0 %v3123
        %3189 = vmatprep.subr.bf16.mxu0 %v3126
        %3190 = vmatpush1.bf16.msra.mxu0 %v3125
        %3191 = vmatprep.subr.bf16.mxu0 %v3128
        %3192 = vmatpush1.bf16.msra.mxu0 %v3127
        %3193 = vmatprep.subr.bf16.mxu0 %v3130
        %3194 = vmatpush1.bf16.msra.mxu0 %v3129
        %3195 = vmatprep.subr.bf16.mxu0 %v3132
        %3196 = vmatpush1.bf16.msra.mxu0 %v3131
        %3197 = vmatprep.subr.bf16.mxu0 %v3134
        %3198 = vmatpush1.bf16.msra.mxu0 %v3133
        %3199 = vmatprep.subr.bf16.mxu0 %v3136
        %3200 = vmatpush1.bf16.msra.mxu0 %v3135
        %3201 = vmatprep.subr.bf16.mxu0 %v3138
        %3202 = vmatpush1.bf16.msra.mxu0 %v3137
        %3203 = vmatprep.mubr.bf16.mxu0 %v2840
        %3204 = vmatmul.mubr.bf16.gmra.mrb[0].mxu0 %v2839
        %v3205 = vpop.f32.mrb[0].mxu0
        %v3206 = vadd.f32 %v3004, %v3205
        %v3207 = vpop.f32.mrb[0].mxu0
        %v3208 = vadd.f32 %v3008, %v3207
        %v3209 = vpop.f32.mrb[0].mxu0
        %v3210 = vadd.f32 %v3004, %v3209
        %v3211 = vpop.f32.mrb[0].mxu0
        %v3212 = vadd.f32 %v3008, %v3211
        %3213 = vmatprep.mubr.bf16.mxu0 %v2842
        %3214 = vmatmul.mubr.bf16.gmra.mrb[0].mxu0 %v2841
        %v3215 = vpop.f32.mrb[0].mxu0
        %v3216 = vadd.f32 %v3004, %v3215
        %v3217 = vpop.f32.mrb[0].mxu0
        %v3218 = vadd.f32 %v3008, %v3217
        %v3219 = vpop.f32.mrb[0].mxu0
        %v3220 = vadd.f32 %v3004, %v3219
        %v3221 = vpop.f32.mrb[0].mxu0
        %v3222 = vadd.f32 %v3008, %v3221
        %3223 = vmatprep.mubr.bf16.mxu0 %v2844
        %3224 = vmatmul.mubr.bf16.gmra.mrb[0].mxu0 %v2843
        %v3225 = vpop.f32.mrb[0].mxu0
        %v3226 = vadd.f32 %v3004, %v3225
        %v3227 = vpop.f32.mrb[0].mxu0
        %v3228 = vadd.f32 %v3008, %v3227
        %v3229 = vpop.f32.mrb[0].mxu0
        %v3230 = vadd.f32 %v3004, %v3229
        %v3231 = vpop.f32.mrb[0].mxu0
        %v3232 = vadd.f32 %v3008, %v3231
        %3233 = vmatprep.mubr.bf16.mxu0 %v2846
        %3234 = vmatmul.mubr.bf16.gmra.mrb[0].mxu0 %v2845
        %v3235 = vpop.f32.mrb[0].mxu0
        %v3236 = vadd.f32 %v3004, %v3235
        %v3237 = vpop.f32.mrb[0].mxu0
        %v3238 = vadd.f32 %v3008, %v3237
        %v3239 = vpop.f32.mrb[0].mxu0
        %v3240 = vadd.f32 %v3004, %v3239
        %v3241 = vpop.f32.mrb[0].mxu0
        %v3242 = vadd.f32 %v3008, %v3241
        %3243 = vmatprep.mubr.bf16.mxu0 %v2848
        %3244 = vmatmul.mubr.bf16.gmra.mrb[0].mxu0 %v2847
        %v3245 = vpop.f32.mrb[0].mxu0
        %v3246 = vadd.f32 %v3004, %v3245
        %v3247 = vpop.f32.mrb[0].mxu0
        %v3248 = vadd.f32 %v3008, %v3247
        %v3249 = vpop.f32.mrb[0].mxu0
        %v3250 = vadd.f32 %v3004, %v3249
        %v3251 = vpop.f32.mrb[0].mxu0
        %v3252 = vadd.f32 %v3008, %v3251
        %3253 = vmatprep.mubr.bf16.mxu0 %v2850
        %3254 = vmatmul.mubr.bf16.gmra.mrb[0].mxu0 %v2849
        %v3255 = vpop.f32.mrb[0].mxu0
        %v3256 = vadd.f32 %v3004, %v3255
        %v3257 = vpop.f32.mrb[0].mxu0
        %v3258 = vadd.f32 %v3008, %v3257
        %v3259 = vpop.f32.mrb[0].mxu0
        %v3260 = vadd.f32 %v3004, %v3259
        %v3261 = vpop.f32.mrb[0].mxu0
        %v3262 = vadd.f32 %v3008, %v3261
        %3263 = vmatprep.mubr.bf16.mxu0 %v2852
        %3264 = vmatmul.mubr.bf16.gmra.mrb[0].mxu0 %v2851
        %v3265 = vpop.f32.mrb[0].mxu0
        %v3266 = vadd.f32 %v3004, %v3265
        %v3267 = vpop.f32.mrb[0].mxu0
        %v3268 = vadd.f32 %v3008, %v3267
        %v3269 = vpop.f32.mrb[0].mxu0
        %v3270 = vadd.f32 %v3004, %v3269
        %v3271 = vpop.f32.mrb[0].mxu0
        %v3272 = vadd.f32 %v3008, %v3271
        %3273 = vmatprep.mubr.bf16.mxu0 %v2854
        %3274 = vmatmul.mubr.bf16.gmra.mrb[0].mxu0 %v2853
        %v3275 = vpop.f32.mrb[0].mxu0
        %v3276 = vadd.f32 %v3004, %v3275
        %v3277 = vpop.f32.mrb[0].mxu0
        %v3278 = vadd.f32 %v3008, %v3277
        %v3279 = vpop.f32.mrb[0].mxu0
        %v3280 = vadd.f32 %v3004, %v3279
        %v3281 = vpop.f32.mrb[0].mxu0
        %v3282 = vadd.f32 %v3008, %v3281
        %3283 = vmatprep.mubr.bf16.mxu0 %v2856
        %3284 = vmatmul.mubr.bf16.gmra.mrb[0].mxu0 %v2855
        %v3285 = vpop.f32.mrb[0].mxu0
        %v3286 = vadd.f32 %v3004, %v3285
        %v3287 = vpop.f32.mrb[0].mxu0
        %v3288 = vadd.f32 %v3008, %v3287
        %v3289 = vpop.f32.mrb[0].mxu0
        %v3290 = vadd.f32 %v3004, %v3289
        %v3291 = vpop.f32.mrb[0].mxu0
        %v3292 = vadd.f32 %v3008, %v3291
        %3293 = vmatprep.mubr.bf16.mxu0 %v2858
        %3294 = vmatmul.mubr.bf16.gmra.mrb[0].mxu0 %v2857
        %v3295 = vpop.f32.mrb[0].mxu0
        %v3296 = vadd.f32 %v3004, %v3295
        %v3297 = vpop.f32.mrb[0].mxu0
        %v3298 = vadd.f32 %v3008, %v3297
        %v3299 = vpop.f32.mrb[0].mxu0
        %v3300 = vadd.f32 %v3004, %v3299
        %v3301 = vpop.f32.mrb[0].mxu0
        %v3302 = vadd.f32 %v3008, %v3301
        %3303 = vmatprep.mubr.bf16.mxu0 %v2860
        %3304 = vmatmul.mubr.bf16.gmra.mrb[0].mxu0 %v2859
        %v3305 = vpop.f32.mrb[0].mxu0
        %v3306 = vadd.f32 %v3004, %v3305
        %v3307 = vpop.f32.mrb[0].mxu0
        %v3308 = vadd.f32 %v3008, %v3307
        %v3309 = vpop.f32.mrb[0].mxu0
        %v3310 = vadd.f32 %v3004, %v3309
        %v3311 = vpop.f32.mrb[0].mxu0
        %v3312 = vadd.f32 %v3008, %v3311
        %3313 = vmatprep.mubr.bf16.mxu0 %v2862
        %3314 = vmatmul.mubr.bf16.gmra.mrb[0].mxu0 %v2861
        %v3315 = vpop.f32.mrb[0].mxu0
        %v3316 = vadd.f32 %v3004, %v3315
        %v3317 = vpop.f32.mrb[0].mxu0
        %v3318 = vadd.f32 %v3008, %v3317
        %v3319 = vpop.f32.mrb[0].mxu0
        %v3320 = vadd.f32 %v3004, %v3319
        %v3321 = vpop.f32.mrb[0].mxu0
        %v3322 = vadd.f32 %v3008, %v3321
        %3323 = vmatprep.mubr.bf16.mxu0 %v2864
        %3324 = vmatmul.mubr.bf16.gmra.mrb[0].mxu0 %v2863
        %v3325 = vpop.f32.mrb[0].mxu0
        %v3326 = vadd.f32 %v3004, %v3325
        %v3327 = vpop.f32.mrb[0].mxu0
        %v3328 = vadd.f32 %v3008, %v3327
        %v3329 = vpop.f32.mrb[0].mxu0
        %v3330 = vadd.f32 %v3004, %v3329
        %v3331 = vpop.f32.mrb[0].mxu0
        %v3332 = vadd.f32 %v3008, %v3331
        %3333 = vmatprep.mubr.bf16.mxu0 %v2866
        %3334 = vmatmul.mubr.bf16.gmra.mrb[0].mxu0 %v2865
        %v3335 = vpop.f32.mrb[0].mxu0
        %v3336 = vadd.f32 %v3004, %v3335
        %v3337 = vpop.f32.mrb[0].mxu0
        %v3338 = vadd.f32 %v3008, %v3337
        %v3339 = vpop.f32.mrb[0].mxu0
        %v3340 = vadd.f32 %v3004, %v3339
        %v3341 = vpop.f32.mrb[0].mxu0
        %v3342 = vadd.f32 %v3008, %v3341
        %3343 = vmatprep.mubr.bf16.mxu0 %v2868
        %3344 = vmatmul.mubr.bf16.gmra.mrb[0].mxu0 %v2867
        %v3345 = vpop.f32.mrb[0].mxu0
        %v3346 = vadd.f32 %v3004, %v3345
        %v3347 = vpop.f32.mrb[0].mxu0
        %v3348 = vadd.f32 %v3008, %v3347
        %v3349 = vpop.f32.mrb[0].mxu0
        %v3350 = vadd.f32 %v3004, %v3349
        %v3351 = vpop.f32.mrb[0].mxu0
        %v3352 = vadd.f32 %v3008, %v3351
        %3353 = vmatprep.mubr.bf16.mxu0 %v2870
        %3354 = vmatmul.mubr.bf16.gmra.mrb[0].mxu0 %v2869
        %v3355 = vpop.f32.mrb[0].mxu0
        %v3356 = vadd.f32 %v3004, %v3355
        %v3357 = vpop.f32.mrb[0].mxu0
        %v3358 = vadd.f32 %v3008, %v3357
        %v3359 = vpop.f32.mrb[0].mxu0
        %v3360 = vadd.f32 %v3004, %v3359
        %v3361 = vpop.f32.mrb[0].mxu0
        %v3362 = vadd.f32 %v3008, %v3361
        %3363 = vmatprep.mubr.bf16.mxu0 %v2872
        %3364 = vmatmul.mubr.bf16.gmra.mrb[0].mxu0 %v2871
        %v3365 = vpop.f32.mrb[0].mxu0
        %v3366 = vadd.f32 %v3004, %v3365
        %v3367 = vpop.f32.mrb[0].mxu0
        %v3368 = vadd.f32 %v3008, %v3367
        %v3369 = vpop.f32.mrb[0].mxu0
        %v3370 = vadd.f32 %v3004, %v3369
        %v3371 = vpop.f32.mrb[0].mxu0
        %v3372 = vadd.f32 %v3008, %v3371
        %3373 = vmatprep.mubr.bf16.mxu0 %v2874
        %3374 = vmatmul.mubr.bf16.gmra.mrb[0].mxu0 %v2873
        %v3375 = vpop.f32.mrb[0].mxu0
        %v3376 = vadd.f32 %v3004, %v3375
        %v3377 = vpop.f32.mrb[0].mxu0
        %v3378 = vadd.f32 %v3008, %v3377
        %v3379 = vpop.f32.mrb[0].mxu0
        %v3380 = vadd.f32 %v3004, %v3379
        %v3381 = vpop.f32.mrb[0].mxu0
        %v3382 = vadd.f32 %v3008, %v3381
        %3383 = vmatprep.mubr.bf16.mxu0 %v2876
        %3384 = vmatmul.mubr.bf16.gmra.mrb[0].mxu0 %v2875
        %v3385 = vpop.f32.mrb[0].mxu0
        %v3386 = vadd.f32 %v3004, %v3385
        %v3387 = vpop.f32.mrb[0].mxu0
        %v3388 = vadd.f32 %v3008, %v3387
        %v3389 = vpop.f32.mrb[0].mxu0
        %v3390 = vadd.f32 %v3004, %v3389
        %v3391 = vpop.f32.mrb[0].mxu0
        %v3392 = vadd.f32 %v3008, %v3391
        %3393 = vmatprep.mubr.bf16.mxu0 %v2878
        %3394 = vmatmul.mubr.bf16.gmra.mrb[0].mxu0 %v2877
        %v3395 = vpop.f32.mrb[0].mxu0
        %v3396 = vadd.f32 %v3004, %v3395
        %v3397 = vpop.f32.mrb[0].mxu0
        %v3398 = vadd.f32 %v3008, %v3397
        %v3399 = vpop.f32.mrb[0].mxu0
        %v3400 = vadd.f32 %v3004, %v3399
        %v3401 = vpop.f32.mrb[0].mxu0
        %v3402 = vadd.f32 %v3008, %v3401
        %3403 = vmatprep.mubr.bf16.mxu0 %v2880
        %3404 = vmatmul.mubr.bf16.gmra.mrb[0].mxu0 %v2879
        %v3405 = vpop.f32.mrb[0].mxu0
        %v3406 = vadd.f32 %v3004, %v3405
        %v3407 = vpop.f32.mrb[0].mxu0
        %v3408 = vadd.f32 %v3008, %v3407
        %v3409 = vpop.f32.mrb[0].mxu0
        %v3410 = vadd.f32 %v3004, %v3409
        %v3411 = vpop.f32.mrb[0].mxu0
        %v3412 = vadd.f32 %v3008, %v3411
        %3413 = vmatprep.mubr.bf16.mxu0 %v2882
        %3414 = vmatmul.mubr.bf16.gmra.mrb[0].mxu0 %v2881
        %v3415 = vpop.f32.mrb[0].mxu0
        %v3416 = vadd.f32 %v3004, %v3415
        %v3417 = vpop.f32.mrb[0].mxu0
        %v3418 = vadd.f32 %v3008, %v3417
        %v3419 = vpop.f32.mrb[0].mxu0
        %v3420 = vadd.f32 %v3004, %v3419
        %v3421 = vpop.f32.mrb[0].mxu0
        %v3422 = vadd.f32 %v3008, %v3421
        %3423 = vmatprep.mubr.bf16.mxu0 %v2884
        %3424 = vmatmul.mubr.bf16.gmra.mrb[0].mxu0 %v2883
        %v3425 = vpop.f32.mrb[0].mxu0
        %v3426 = vadd.f32 %v3004, %v3425
        %v3427 = vpop.f32.mrb[0].mxu0
        %v3428 = vadd.f32 %v3008, %v3427
        %v3429 = vpop.f32.mrb[0].mxu0
        %v3430 = vadd.f32 %v3004, %v3429
        %v3431 = vpop.f32.mrb[0].mxu0
        %v3432 = vadd.f32 %v3008, %v3431
        %3433 = vmatprep.mubr.bf16.mxu0 %v2886
        %3434 = vmatmul.mubr.bf16.gmra.mrb[0].mxu0 %v2885
        %v3435 = vpop.f32.mrb[0].mxu0
        %v3436 = vadd.f32 %v3004, %v3435
        %v3437 = vpop.f32.mrb[0].mxu0
        %v3438 = vadd.f32 %v3008, %v3437
        %v3439 = vpop.f32.mrb[0].mxu0
        %v3440 = vadd.f32 %v3004, %v3439
        %v3441 = vpop.f32.mrb[0].mxu0
        %v3442 = vadd.f32 %v3008, %v3441
        %3443 = vmatprep.mubr.bf16.mxu0 %v2888
        %3444 = vmatmul.mubr.bf16.gmra.mrb[0].mxu0 %v2887
        %v3445 = vpop.f32.mrb[0].mxu0
        %v3446 = vadd.f32 %v3004, %v3445
        %v3447 = vpop.f32.mrb[0].mxu0
        %v3448 = vadd.f32 %v3008, %v3447
        %v3449 = vpop.f32.mrb[0].mxu0
        %v3450 = vadd.f32 %v3004, %v3449
        %v3451 = vpop.f32.mrb[0].mxu0
        %v3452 = vadd.f32 %v3008, %v3451
        %3453 = vmatprep.mubr.bf16.mxu0 %v2890
        %3454 = vmatmul.mubr.bf16.gmra.mrb[0].mxu0 %v2889
        %v3455 = vpop.f32.mrb[0].mxu0
        %v3456 = vadd.f32 %v3004, %v3455
        %v3457 = vpop.f32.mrb[0].mxu0
        %v3458 = vadd.f32 %v3008, %v3457
        %v3459 = vpop.f32.mrb[0].mxu0
        %v3460 = vadd.f32 %v3004, %v3459
        %v3461 = vpop.f32.mrb[0].mxu0
        %v3462 = vadd.f32 %v3008, %v3461
        %3463 = vmatprep.mubr.bf16.mxu0 %v2892
        %3464 = vmatmul.mubr.bf16.gmra.mrb[0].mxu0 %v2891
        %v3465 = vpop.f32.mrb[0].mxu0
        %v3466 = vadd.f32 %v3004, %v3465
        %v3467 = vpop.f32.mrb[0].mxu0
        %v3468 = vadd.f32 %v3008, %v3467
        %v3469 = vpop.f32.mrb[0].mxu0
        %v3470 = vadd.f32 %v3004, %v3469
        %v3471 = vpop.f32.mrb[0].mxu0
        %v3472 = vadd.f32 %v3008, %v3471
        %3473 = vmatprep.mubr.bf16.mxu0 %v2894
        %3474 = vmatmul.mubr.bf16.gmra.mrb[0].mxu0 %v2893
        %v3475 = vpop.f32.mrb[0].mxu0
        %v3476 = vadd.f32 %v3004, %v3475
        %v3477 = vpop.f32.mrb[0].mxu0
        %v3478 = vadd.f32 %v3008, %v3477
        %v3479 = vpop.f32.mrb[0].mxu0
        %v3480 = vadd.f32 %v3004, %v3479
        %v3481 = vpop.f32.mrb[0].mxu0
        %v3482 = vadd.f32 %v3008, %v3481
        %3483 = vmatprep.mubr.bf16.mxu0 %v2896
        %3484 = vmatmul.mubr.bf16.gmra.mrb[0].mxu0 %v2895
        %v3485 = vpop.f32.mrb[0].mxu0
        %v3486 = vadd.f32 %v3004, %v3485
        %v3487 = vpop.f32.mrb[0].mxu0
        %v3488 = vadd.f32 %v3008, %v3487
        %v3489 = vpop.f32.mrb[0].mxu0
        %v3490 = vadd.f32 %v3004, %v3489
        %v3491 = vpop.f32.mrb[0].mxu0
        %v3492 = vadd.f32 %v3008, %v3491
        %3493 = vmatprep.mubr.bf16.mxu0 %v2898
        %3494 = vmatmul.mubr.bf16.gmra.mrb[0].mxu0 %v2897
        %v3495 = vpop.f32.mrb[0].mxu0
        %v3496 = vadd.f32 %v3004, %v3495
        %v3497 = vpop.f32.mrb[0].mxu0
        %v3498 = vadd.f32 %v3008, %v3497
        %v3499 = vpop.f32.mrb[0].mxu0
        %v3500 = vadd.f32 %v3004, %v3499
        %v3501 = vpop.f32.mrb[0].mxu0
        %v3502 = vadd.f32 %v3008, %v3501
        %3503 = vmatprep.mubr.bf16.mxu0 %v2900
        %3504 = vmatmul.mubr.bf16.gmra.mrb[0].mxu0 %v2899
        %v3505 = vpop.f32.mrb[0].mxu0
        %v3506 = vadd.f32 %v3004, %v3505
        %v3507 = vpop.f32.mrb[0].mxu0
        %v3508 = vadd.f32 %v3008, %v3507
        %v3509 = vpop.f32.mrb[0].mxu0
        %v3510 = vadd.f32 %v3004, %v3509
        %v3511 = vpop.f32.mrb[0].mxu0
        %v3512 = vadd.f32 %v3008, %v3511
        %3513 = vmatprep.mubr.bf16.mxu0 %v2902
        %3514 = vmatmul.mubr.bf16.gmra.mrb[0].mxu0 %v2901
        %v3515 = vpop.f32.mrb[0].mxu0
        %v3516 = vadd.f32 %v3004, %v3515
        %v3517 = vpop.f32.mrb[0].mxu0
        %v3518 = vadd.f32 %v3008, %v3517
        %v3519 = vpop.f32.mrb[0].mxu0
        %v3520 = vadd.f32 %v3004, %v3519
        %v3521 = vpop.f32.mrb[0].mxu0
        %v3522 = vadd.f32 %v3008, %v3521
        %3523 = vmatprep.mubr.bf16.mxu0 %v2904
        %3524 = vmatmul.mubr.bf16.gmra.mrb[0].mxu0 %v2903
        %v3525 = vpop.f32.mrb[0].mxu0
        %v3526 = vadd.f32 %v3004, %v3525
        %v3527 = vpop.f32.mrb[0].mxu0
        %v3528 = vadd.f32 %v3008, %v3527
        %v3529 = vpop.f32.mrb[0].mxu0
        %v3530 = vadd.f32 %v3004, %v3529
        %v3531 = vpop.f32.mrb[0].mxu0
        %v3532 = vadd.f32 %v3008, %v3531
        %3533 = vmatprep.mubr.bf16.mxu0 %v2906
        %3534 = vmatmul.mubr.bf16.gmra.mrb[0].mxu0 %v2905
        %v3535 = vpop.f32.mrb[0].mxu0
        %v3536 = vadd.f32 %v3004, %v3535
        %v3537 = vpop.f32.mrb[0].mxu0
        %v3538 = vadd.f32 %v3008, %v3537
        %v3539 = vpop.f32.mrb[0].mxu0
        %v3540 = vadd.f32 %v3004, %v3539
        %v3541 = vpop.f32.mrb[0].mxu0
        %v3542 = vadd.f32 %v3008, %v3541
        %3543 = vmatprep.mubr.bf16.mxu0 %v2908
        %3544 = vmatmul.mubr.bf16.gmra.mrb[0].mxu0 %v2907
        %v3545 = vpop.f32.mrb[0].mxu0
        %v3546 = vadd.f32 %v3004, %v3545
        %v3547 = vpop.f32.mrb[0].mxu0
        %v3548 = vadd.f32 %v3008, %v3547
        %v3549 = vpop.f32.mrb[0].mxu0
        %v3550 = vadd.f32 %v3004, %v3549
        %v3551 = vpop.f32.mrb[0].mxu0
        %v3552 = vadd.f32 %v3008, %v3551
        %3553 = vmatprep.mubr.bf16.mxu0 %v2910
        %3554 = vmatmul.mubr.bf16.gmra.mrb[0].mxu0 %v2909
        %v3555 = vpop.f32.mrb[0].mxu0
        %v3556 = vadd.f32 %v3004, %v3555
        %v3557 = vpop.f32.mrb[0].mxu0
        %v3558 = vadd.f32 %v3008, %v3557
        %v3559 = vpop.f32.mrb[0].mxu0
        %v3560 = vadd.f32 %v3004, %v3559
        %v3561 = vpop.f32.mrb[0].mxu0
        %v3562 = vadd.f32 %v3008, %v3561
        %3563 = vmatprep.mubr.bf16.mxu0 %v2912
        %3564 = vmatmul.mubr.bf16.gmra.mrb[0].mxu0 %v2911
        %v3565 = vpop.f32.mrb[0].mxu0
        %v3566 = vadd.f32 %v3004, %v3565
        %v3567 = vpop.f32.mrb[0].mxu0
        %v3568 = vadd.f32 %v3008, %v3567
        %v3569 = vpop.f32.mrb[0].mxu0
        %v3570 = vadd.f32 %v3004, %v3569
        %v3571 = vpop.f32.mrb[0].mxu0
        %v3572 = vadd.f32 %v3008, %v3571
        %3573 = vmatprep.mubr.bf16.mxu0 %v2914
        %3574 = vmatmul.mubr.bf16.gmra.mrb[0].mxu0 %v2913
        %v3575 = vpop.f32.mrb[0].mxu0
        %v3576 = vadd.f32 %v3004, %v3575
        %v3577 = vpop.f32.mrb[0].mxu0
        %v3578 = vadd.f32 %v3008, %v3577
        %v3579 = vpop.f32.mrb[0].mxu0
        %v3580 = vadd.f32 %v3004, %v3579
        %v3581 = vpop.f32.mrb[0].mxu0
        %v3582 = vadd.f32 %v3008, %v3581
        %3583 = vmatprep.mubr.bf16.mxu0 %v2916
        %3584 = vmatmul.mubr.bf16.gmra.mrb[0].mxu0 %v2915
        %v3585 = vpop.f32.mrb[0].mxu0
        %v3586 = vadd.f32 %v3004, %v3585
        %v3587 = vpop.f32.mrb[0].mxu0
        %v3588 = vadd.f32 %v3008, %v3587
        %v3589 = vpop.f32.mrb[0].mxu0
        %v3590 = vadd.f32 %v3004, %v3589
        %v3591 = vpop.f32.mrb[0].mxu0
        %v3592 = vadd.f32 %v3008, %v3591
        %3593 = vmatprep.mubr.bf16.mxu0 %v2918
        %3594 = vmatmul.mubr.bf16.gmra.mrb[0].mxu0 %v2917
        %v3595 = vpop.f32.mrb[0].mxu0
        %v3596 = vadd.f32 %v3004, %v3595
        %v3597 = vpop.f32.mrb[0].mxu0
        %v3598 = vadd.f32 %v3008, %v3597
        %v3599 = vpop.f32.mrb[0].mxu0
        %v3600 = vadd.f32 %v3004, %v3599
        %v3601 = vpop.f32.mrb[0].mxu0
        %v3602 = vadd.f32 %v3008, %v3601
        %3603 = vmatprep.mubr.bf16.mxu0 %v2920
        %3604 = vmatmul.mubr.bf16.gmra.mrb[0].mxu0 %v2919
        %v3605 = vpop.f32.mrb[0].mxu0
        %v3606 = vadd.f32 %v3004, %v3605
        %v3607 = vpop.f32.mrb[0].mxu0
        %v3608 = vadd.f32 %v3008, %v3607
        %v3609 = vpop.f32.mrb[0].mxu0
        %v3610 = vadd.f32 %v3004, %v3609
        %v3611 = vpop.f32.mrb[0].mxu0
        %v3612 = vadd.f32 %v3008, %v3611
        %3613 = vmatprep.mubr.bf16.mxu0 %v2922
        %3614 = vmatmul.mubr.bf16.gmra.mrb[0].mxu0 %v2921
        %v3615 = vpop.f32.mrb[0].mxu0
        %v3616 = vadd.f32 %v3004, %v3615
        %v3617 = vpop.f32.mrb[0].mxu0
        %v3618 = vadd.f32 %v3008, %v3617
        %v3619 = vpop.f32.mrb[0].mxu0
        %v3620 = vadd.f32 %v3004, %v3619
        %v3621 = vpop.f32.mrb[0].mxu0
        %v3622 = vadd.f32 %v3008, %v3621
        %3623 = vmatprep.mubr.bf16.mxu0 %v2924
        %3624 = vmatmul.mubr.bf16.gmra.mrb[0].mxu0 %v2923
        %v3625 = vpop.f32.mrb[0].mxu0
        %v3626 = vadd.f32 %v3004, %v3625
        %v3627 = vpop.f32.mrb[0].mxu0
        %v3628 = vadd.f32 %v3008, %v3627
        %v3629 = vpop.f32.mrb[0].mxu0
        %v3630 = vadd.f32 %v3004, %v3629
        %v3631 = vpop.f32.mrb[0].mxu0
        %v3632 = vadd.f32 %v3008, %v3631
        %3633 = vmatprep.mubr.bf16.mxu0 %v2926
        %3634 = vmatmul.mubr.bf16.gmra.mrb[0].mxu0 %v2925
        %v3635 = vpop.f32.mrb[0].mxu0
        %v3636 = vadd.f32 %v3004, %v3635
        %v3637 = vpop.f32.mrb[0].mxu0
        %v3638 = vadd.f32 %v3008, %v3637
        %v3639 = vpop.f32.mrb[0].mxu0
        %v3640 = vadd.f32 %v3004, %v3639
        %v3641 = vpop.f32.mrb[0].mxu0
        %v3642 = vadd.f32 %v3008, %v3641
        %3643 = vmatprep.mubr.bf16.mxu0 %v2928
        %3644 = vmatmul.mubr.bf16.gmra.mrb[0].mxu0 %v2927
        %v3645 = vpop.f32.mrb[0].mxu0
        %v3646 = vadd.f32 %v3004, %v3645
        %v3647 = vpop.f32.mrb[0].mxu0
        %v3648 = vadd.f32 %v3008, %v3647
        %v3649 = vpop.f32.mrb[0].mxu0
        %v3650 = vadd.f32 %v3004, %v3649
        %v3651 = vpop.f32.mrb[0].mxu0
        %v3652 = vadd.f32 %v3008, %v3651
        %3653 = vmatprep.mubr.bf16.mxu0 %v2930
        %3654 = vmatmul.mubr.bf16.gmra.mrb[0].mxu0 %v2929
        %v3655 = vpop.f32.mrb[0].mxu0
        %v3656 = vadd.f32 %v3004, %v3655
        %v3657 = vpop.f32.mrb[0].mxu0
        %v3658 = vadd.f32 %v3008, %v3657
        %v3659 = vpop.f32.mrb[0].mxu0
        %v3660 = vadd.f32 %v3004, %v3659
        %v3661 = vpop.f32.mrb[0].mxu0
        %v3662 = vadd.f32 %v3008, %v3661
        %3663 = vmatprep.mubr.bf16.mxu0 %v2932
        %3664 = vmatmul.mubr.bf16.gmra.mrb[0].mxu0 %v2931
        %v3665 = vpop.f32.mrb[0].mxu0
        %v3666 = vadd.f32 %v3004, %v3665
        %v3667 = vpop.f32.mrb[0].mxu0
        %v3668 = vadd.f32 %v3008, %v3667
        %v3669 = vpop.f32.mrb[0].mxu0
        %v3670 = vadd.f32 %v3004, %v3669
        %v3671 = vpop.f32.mrb[0].mxu0
        %v3672 = vadd.f32 %v3008, %v3671
        %3673 = vmatprep.mubr.bf16.mxu0 %v2934
        %3674 = vmatmul.mubr.bf16.gmra.mrb[0].mxu0 %v2933
        %v3675 = vpop.f32.mrb[0].mxu0
        %v3676 = vadd.f32 %v3004, %v3675
        %v3677 = vpop.f32.mrb[0].mxu0
        %v3678 = vadd.f32 %v3008, %v3677
        %v3679 = vpop.f32.mrb[0].mxu0
        %v3680 = vadd.f32 %v3004, %v3679
        %v3681 = vpop.f32.mrb[0].mxu0
        %v3682 = vadd.f32 %v3008, %v3681
        %3683 = vmatprep.mubr.bf16.mxu0 %v2936
        %3684 = vmatmul.mubr.bf16.gmra.mrb[0].mxu0 %v2935
        %v3685 = vpop.f32.mrb[0].mxu0
        %v3686 = vadd.f32 %v3004, %v3685
        %v3687 = vpop.f32.mrb[0].mxu0
        %v3688 = vadd.f32 %v3008, %v3687
        %v3689 = vpop.f32.mrb[0].mxu0
        %v3690 = vadd.f32 %v3004, %v3689
        %v3691 = vpop.f32.mrb[0].mxu0
        %v3692 = vadd.f32 %v3008, %v3691
        %3693 = vmatprep.mubr.bf16.mxu0 %v2938
        %3694 = vmatmul.mubr.bf16.gmra.mrb[0].mxu0 %v2937
        %v3695 = vpop.f32.mrb[0].mxu0
        %v3696 = vadd.f32 %v3004, %v3695
        %v3697 = vpop.f32.mrb[0].mxu0
        %v3698 = vadd.f32 %v3008, %v3697
        %v3699 = vpop.f32.mrb[0].mxu0
        %v3700 = vadd.f32 %v3004, %v3699
        %v3701 = vpop.f32.mrb[0].mxu0
        %v3702 = vadd.f32 %v3008, %v3701
        %3703 = vmatprep.mubr.bf16.mxu0 %v2940
        %3704 = vmatmul.mubr.bf16.gmra.mrb[0].mxu0 %v2939
        %v3705 = vpop.f32.mrb[0].mxu0
        %v3706 = vadd.f32 %v3004, %v3705
        %v3707 = vpop.f32.mrb[0].mxu0
        %v3708 = vadd.f32 %v3008, %v3707
        %v3709 = vpop.f32.mrb[0].mxu0
        %v3710 = vadd.f32 %v3004, %v3709
        %v3711 = vpop.f32.mrb[0].mxu0
        %v3712 = vadd.f32 %v3008, %v3711
        %3713 = vmatprep.mubr.bf16.mxu0 %v2942
        %3714 = vmatmul.mubr.bf16.gmra.mrb[0].mxu0 %v2941
        %v3715 = vpop.f32.mrb[0].mxu0
        %v3716 = vadd.f32 %v3004, %v3715
        %v3717 = vpop.f32.mrb[0].mxu0
        %v3718 = vadd.f32 %v3008, %v3717
        %v3719 = vpop.f32.mrb[0].mxu0
        %v3720 = vadd.f32 %v3004, %v3719
        %v3721 = vpop.f32.mrb[0].mxu0
        %v3722 = vadd.f32 %v3008, %v3721
        %3723 = vmatprep.mubr.bf16.mxu0 %v2944
        %3724 = vmatmul.mubr.bf16.gmra.mrb[0].mxu0 %v2943
        %v3725 = vpop.f32.mrb[0].mxu0
        %v3726 = vadd.f32 %v3004, %v3725
        %v3727 = vpop.f32.mrb[0].mxu0
        %v3728 = vadd.f32 %v3008, %v3727
        %v3729 = vpop.f32.mrb[0].mxu0
        %v3730 = vadd.f32 %v3004, %v3729
        %v3731 = vpop.f32.mrb[0].mxu0
        %v3732 = vadd.f32 %v3008, %v3731
        %3733 = vmatprep.mubr.bf16.mxu0 %v2946
        %3734 = vmatmul.mubr.bf16.gmra.mrb[0].mxu0 %v2945
        %v3735 = vpop.f32.mrb[0].mxu0
        %v3736 = vadd.f32 %v3004, %v3735
        %v3737 = vpop.f32.mrb[0].mxu0
        %v3738 = vadd.f32 %v3008, %v3737
        %v3739 = vpop.f32.mrb[0].mxu0
        %v3740 = vadd.f32 %v3004, %v3739
        %v3741 = vpop.f32.mrb[0].mxu0
        %v3742 = vadd.f32 %v3008, %v3741
        %3743 = vmatprep.mubr.bf16.mxu0 %v2948
        %3744 = vmatmul.mubr.bf16.gmra.mrb[0].mxu0 %v2947
        %v3745 = vpop.f32.mrb[0].mxu0
        %v3746 = vadd.f32 %v3004, %v3745
        %v3747 = vpop.f32.mrb[0].mxu0
        %v3748 = vadd.f32 %v3008, %v3747
        %v3749 = vpop.f32.mrb[0].mxu0
        %v3750 = vadd.f32 %v3004, %v3749
        %v3751 = vpop.f32.mrb[0].mxu0
        %v3752 = vadd.f32 %v3008, %v3751
        %3753 = vmatprep.mubr.bf16.mxu0 %v2950
        %3754 = vmatmul.mubr.bf16.gmra.mrb[0].mxu0 %v2949
        %v3755 = vpop.f32.mrb[0].mxu0
        %v3756 = vadd.f32 %v3004, %v3755
        %v3757 = vpop.f32.mrb[0].mxu0
        %v3758 = vadd.f32 %v3008, %v3757
        %v3759 = vpop.f32.mrb[0].mxu0
        %v3760 = vadd.f32 %v3004, %v3759
        %v3761 = vpop.f32.mrb[0].mxu0
        %v3762 = vadd.f32 %v3008, %v3761
        %3763 = vmatprep.mubr.bf16.mxu0 %v2952
        %3764 = vmatmul.mubr.bf16.gmra.mrb[0].mxu0 %v2951
        %v3765 = vpop.f32.mrb[0].mxu0
        %v3766 = vadd.f32 %v3004, %v3765
        %v3767 = vpop.f32.mrb[0].mxu0
        %v3768 = vadd.f32 %v3008, %v3767
        %v3769 = vpop.f32.mrb[0].mxu0
        %v3770 = vadd.f32 %v3004, %v3769
        %v3771 = vpop.f32.mrb[0].mxu0
        %v3772 = vadd.f32 %v3008, %v3771
        %3773 = vmatprep.mubr.bf16.mxu0 %v2954
        %3774 = vmatmul.mubr.bf16.gmra.mrb[0].mxu0 %v2953
        %v3775 = vpop.f32.mrb[0].mxu0
        %v3776 = vadd.f32 %v3004, %v3775
        %v3777 = vpop.f32.mrb[0].mxu0
        %v3778 = vadd.f32 %v3008, %v3777
        %v3779 = vpop.f32.mrb[0].mxu0
        %v3780 = vadd.f32 %v3004, %v3779
        %v3781 = vpop.f32.mrb[0].mxu0
        %v3782 = vadd.f32 %v3008, %v3781
        %3783 = vmatprep.mubr.bf16.mxu0 %v2956
        %3784 = vmatmul.mubr.bf16.gmra.mrb[0].mxu0 %v2955
        %v3785 = vpop.f32.mrb[0].mxu0
        %v3786 = vadd.f32 %v3004, %v3785
        %v3787 = vpop.f32.mrb[0].mxu0
        %v3788 = vadd.f32 %v3008, %v3787
        %v3789 = vpop.f32.mrb[0].mxu0
        %v3790 = vadd.f32 %v3004, %v3789
        %v3791 = vpop.f32.mrb[0].mxu0
        %v3792 = vadd.f32 %v3008, %v3791
        %3793 = vmatprep.mubr.bf16.mxu0 %v2958
        %3794 = vmatmul.mubr.bf16.gmra.mrb[0].mxu0 %v2957
        %v3795 = vpop.f32.mrb[0].mxu0
        %v3796 = vadd.f32 %v3004, %v3795
        %v3797 = vpop.f32.mrb[0].mxu0
        %v3798 = vadd.f32 %v3008, %v3797
        %v3799 = vpop.f32.mrb[0].mxu0
        %v3800 = vadd.f32 %v3004, %v3799
        %v3801 = vpop.f32.mrb[0].mxu0
        %v3802 = vadd.f32 %v3008, %v3801
        %3803 = vmatprep.mubr.bf16.mxu0 %v2960
        %3804 = vmatmul.mubr.bf16.gmra.mrb[0].mxu0 %v2959
        %v3805 = vpop.f32.mrb[0].mxu0
        %v3806 = vadd.f32 %v3004, %v3805
        %v3807 = vpop.f32.mrb[0].mxu0
        %v3808 = vadd.f32 %v3008, %v3807
        %v3809 = vpop.f32.mrb[0].mxu0
        %v3810 = vadd.f32 %v3004, %v3809
        %v3811 = vpop.f32.mrb[0].mxu0
        %v3812 = vadd.f32 %v3008, %v3811
        %3813 = vmatprep.mubr.bf16.mxu0 %v2962
        %3814 = vmatmul.mubr.bf16.gmra.mrb[0].mxu0 %v2961
        %v3815 = vpop.f32.mrb[0].mxu0
        %v3816 = vadd.f32 %v3004, %v3815
        %v3817 = vpop.f32.mrb[0].mxu0
        %v3818 = vadd.f32 %v3008, %v3817
        %v3819 = vpop.f32.mrb[0].mxu0
        %v3820 = vadd.f32 %v3004, %v3819
        %v3821 = vpop.f32.mrb[0].mxu0
        %v3822 = vadd.f32 %v3008, %v3821
        %3823 = vmatprep.mubr.bf16.mxu0 %v2964
        %3824 = vmatmul.mubr.bf16.gmra.mrb[0].mxu0 %v2963
        %v3825 = vpop.f32.mrb[0].mxu0
        %v3826 = vadd.f32 %v3004, %v3825
        %v3827 = vpop.f32.mrb[0].mxu0
        %v3828 = vadd.f32 %v3008, %v3827
        %v3829 = vpop.f32.mrb[0].mxu0
        %v3830 = vadd.f32 %v3004, %v3829
        %v3831 = vpop.f32.mrb[0].mxu0
        %v3832 = vadd.f32 %v3008, %v3831
        %3833 = vmatprep.mubr.bf16.mxu0 %v2966
        %3834 = vmatmul.mubr.bf16.gmra.mrb[0].mxu0 %v2965
        %v3835 = vpop.f32.mrb[0].mxu0
        %v3836 = vadd.f32 %v3004, %v3835
        %v3837 = vpop.f32.mrb[0].mxu0
        %v3838 = vadd.f32 %v3008, %v3837
        %v3839 = vpop.f32.mrb[0].mxu0
        %v3840 = vadd.f32 %v3004, %v3839
        %v3841 = vpop.f32.mrb[0].mxu0
        %v3842 = vadd.f32 %v3008, %v3841
        %3843 = vdwg.mxu0
        %v3844 = vmax.f32 %v3206, 0.0
        %v3845 = vmax.f32 %v3208, 0.0
        %v3846 = vmax.f32 %v3210, 0.0
        %v3847 = vmax.f32 %v3212, 0.0
        %v3848 = vmax.f32 %v3216, 0.0
        %v3849 = vmax.f32 %v3218, 0.0
        %v3850 = vmax.f32 %v3220, 0.0
        %v3851 = vmax.f32 %v3222, 0.0
        %v3852 = vmax.f32 %v3226, 0.0
        %v3853 = vmax.f32 %v3228, 0.0
        %v3854 = vmax.f32 %v3230, 0.0
        %v3855 = vmax.f32 %v3232, 0.0
        %v3856 = vmax.f32 %v3236, 0.0
        %v3857 = vmax.f32 %v3238, 0.0
        %v3858 = vmax.f32 %v3240, 0.0
        %v3859 = vmax.f32 %v3242, 0.0
        %v3860 = vmax.f32 %v3246, 0.0
        %v3861 = vmax.f32 %v3248, 0.0
        %v3862 = vmax.f32 %v3250, 0.0
        %v3863 = vmax.f32 %v3252, 0.0
        %v3864 = vmax.f32 %v3256, 0.0
        %v3865 = vmax.f32 %v3258, 0.0
        %v3866 = vmax.f32 %v3260, 0.0
        %v3867 = vmax.f32 %v3262, 0.0
        %v3868 = vmax.f32 %v3266, 0.0
        %v3869 = vmax.f32 %v3268, 0.0
        %v3870 = vmax.f32 %v3270, 0.0
        %v3871 = vmax.f32 %v3272, 0.0
        %v3872 = vmax.f32 %v3276, 0.0
        %v3873 = vmax.f32 %v3278, 0.0
        %v3874 = vmax.f32 %v3280, 0.0
        %v3875 = vmax.f32 %v3282, 0.0
        %v3876 = vmax.f32 %v3286, 0.0
        %v3877 = vmax.f32 %v3288, 0.0
        %v3878 = vmax.f32 %v3290, 0.0
        %v3879 = vmax.f32 %v3292, 0.0
        %v3880 = vmax.f32 %v3296, 0.0
        %v3881 = vmax.f32 %v3298, 0.0
        %v3882 = vmax.f32 %v3300, 0.0
        %v3883 = vmax.f32 %v3302, 0.0
        %v3884 = vmax.f32 %v3306, 0.0
        %v3885 = vmax.f32 %v3308, 0.0
        %v3886 = vmax.f32 %v3310, 0.0
        %v3887 = vmax.f32 %v3312, 0.0
        %v3888 = vmax.f32 %v3316, 0.0
        %v3889 = vmax.f32 %v3318, 0.0
        %v3890 = vmax.f32 %v3320, 0.0
        %v3891 = vmax.f32 %v3322, 0.0
        %v3892 = vmax.f32 %v3326, 0.0
        %v3893 = vmax.f32 %v3328, 0.0
        %v3894 = vmax.f32 %v3330, 0.0
        %v3895 = vmax.f32 %v3332, 0.0
        %v3896 = vmax.f32 %v3336, 0.0
        %v3897 = vmax.f32 %v3338, 0.0
        %v3898 = vmax.f32 %v3340, 0.0
        %v3899 = vmax.f32 %v3342, 0.0
        %v3900 = vmax.f32 %v3346, 0.0
        %v3901 = vmax.f32 %v3348, 0.0
        %v3902 = vmax.f32 %v3350, 0.0
        %v3903 = vmax.f32 %v3352, 0.0
        %v3904 = vmax.f32 %v3356, 0.0
        %v3905 = vmax.f32 %v3358, 0.0
        %v3906 = vmax.f32 %v3360, 0.0
        %v3907 = vmax.f32 %v3362, 0.0
        %v3908 = vmax.f32 %v3366, 0.0
        %v3909 = vmax.f32 %v3368, 0.0
        %v3910 = vmax.f32 %v3370, 0.0
        %v3911 = vmax.f32 %v3372, 0.0
        %v3912 = vmax.f32 %v3376, 0.0
        %v3913 = vmax.f32 %v3378, 0.0
        %v3914 = vmax.f32 %v3380, 0.0
        %v3915 = vmax.f32 %v3382, 0.0
        %v3916 = vmax.f32 %v3386, 0.0
        %v3917 = vmax.f32 %v3388, 0.0
        %v3918 = vmax.f32 %v3390, 0.0
        %v3919 = vmax.f32 %v3392, 0.0
        %v3920 = vmax.f32 %v3396, 0.0
        %v3921 = vmax.f32 %v3398, 0.0
        %v3922 = vmax.f32 %v3400, 0.0
        %v3923 = vmax.f32 %v3402, 0.0
        %v3924 = vmax.f32 %v3406, 0.0
        %v3925 = vmax.f32 %v3408, 0.0
        %v3926 = vmax.f32 %v3410, 0.0
        %v3927 = vmax.f32 %v3412, 0.0
        %v3928 = vmax.f32 %v3416, 0.0
        %v3929 = vmax.f32 %v3418, 0.0
        %v3930 = vmax.f32 %v3420, 0.0
        %v3931 = vmax.f32 %v3422, 0.0
        %v3932 = vmax.f32 %v3426, 0.0
        %v3933 = vmax.f32 %v3428, 0.0
        %v3934 = vmax.f32 %v3430, 0.0
        %v3935 = vmax.f32 %v3432, 0.0
        %v3936 = vmax.f32 %v3436, 0.0
        %v3937 = vmax.f32 %v3438, 0.0
        %v3938 = vmax.f32 %v3440, 0.0
        %v3939 = vmax.f32 %v3442, 0.0
        %v3940 = vmax.f32 %v3446, 0.0
        %v3941 = vmax.f32 %v3448, 0.0
        %v3942 = vmax.f32 %v3450, 0.0
        %v3943 = vmax.f32 %v3452, 0.0
        %v3944 = vmax.f32 %v3456, 0.0
        %v3945 = vmax.f32 %v3458, 0.0
        %v3946 = vmax.f32 %v3460, 0.0
        %v3947 = vmax.f32 %v3462, 0.0
        %v3948 = vmax.f32 %v3466, 0.0
        %v3949 = vmax.f32 %v3468, 0.0
        %v3950 = vmax.f32 %v3470, 0.0
        %v3951 = vmax.f32 %v3472, 0.0
        %v3952 = vmax.f32 %v3476, 0.0
        %v3953 = vmax.f32 %v3478, 0.0
        %v3954 = vmax.f32 %v3480, 0.0
        %v3955 = vmax.f32 %v3482, 0.0
        %v3956 = vmax.f32 %v3486, 0.0
        %v3957 = vmax.f32 %v3488, 0.0
        %v3958 = vmax.f32 %v3490, 0.0
        %v3959 = vmax.f32 %v3492, 0.0
        %v3960 = vmax.f32 %v3496, 0.0
        %v3961 = vmax.f32 %v3498, 0.0
        %v3962 = vmax.f32 %v3500, 0.0
        %v3963 = vmax.f32 %v3502, 0.0
        %v3964 = vmax.f32 %v3506, 0.0
        %v3965 = vmax.f32 %v3508, 0.0
        %v3966 = vmax.f32 %v3510, 0.0
        %v3967 = vmax.f32 %v3512, 0.0
        %v3968 = vmax.f32 %v3516, 0.0
        %v3969 = vmax.f32 %v3518, 0.0
        %v3970 = vmax.f32 %v3520, 0.0
        %v3971 = vmax.f32 %v3522, 0.0
        %v3972 = vmax.f32 %v3526, 0.0
        %v3973 = vmax.f32 %v3528, 0.0
        %v3974 = vmax.f32 %v3530, 0.0
        %v3975 = vmax.f32 %v3532, 0.0
        %v3976 = vmax.f32 %v3536, 0.0
        %v3977 = vmax.f32 %v3538, 0.0
        %v3978 = vmax.f32 %v3540, 0.0
        %v3979 = vmax.f32 %v3542, 0.0
        %v3980 = vmax.f32 %v3546, 0.0
        %v3981 = vmax.f32 %v3548, 0.0
        %v3982 = vmax.f32 %v3550, 0.0
        %v3983 = vmax.f32 %v3552, 0.0
        %v3984 = vmax.f32 %v3556, 0.0
        %v3985 = vmax.f32 %v3558, 0.0
        %v3986 = vmax.f32 %v3560, 0.0
        %v3987 = vmax.f32 %v3562, 0.0
        %v3988 = vmax.f32 %v3566, 0.0
        %v3989 = vmax.f32 %v3568, 0.0
        %v3990 = vmax.f32 %v3570, 0.0
        %v3991 = vmax.f32 %v3572, 0.0
        %v3992 = vmax.f32 %v3576, 0.0
        %v3993 = vmax.f32 %v3578, 0.0
        %v3994 = vmax.f32 %v3580, 0.0
        %v3995 = vmax.f32 %v3582, 0.0
        %v3996 = vmax.f32 %v3586, 0.0
        %v3997 = vmax.f32 %v3588, 0.0
        %v3998 = vmax.f32 %v3590, 0.0
        %v3999 = vmax.f32 %v3592, 0.0
        %v4000 = vmax.f32 %v3596, 0.0
        %v4001 = vmax.f32 %v3598, 0.0
        %v4002 = vmax.f32 %v3600, 0.0
        %v4003 = vmax.f32 %v3602, 0.0
        %v4004 = vmax.f32 %v3606, 0.0
        %v4005 = vmax.f32 %v3608, 0.0
        %v4006 = vmax.f32 %v3610, 0.0
        %v4007 = vmax.f32 %v3612, 0.0
        %v4008 = vmax.f32 %v3616, 0.0
        %v4009 = vmax.f32 %v3618, 0.0
        %v4010 = vmax.f32 %v3620, 0.0
        %v4011 = vmax.f32 %v3622, 0.0
        %v4012 = vmax.f32 %v3626, 0.0
        %v4013 = vmax.f32 %v3628, 0.0
        %v4014 = vmax.f32 %v3630, 0.0
        %v4015 = vmax.f32 %v3632, 0.0
        %v4016 = vmax.f32 %v3636, 0.0
        %v4017 = vmax.f32 %v3638, 0.0
        %v4018 = vmax.f32 %v3640, 0.0
        %v4019 = vmax.f32 %v3642, 0.0
        %v4020 = vmax.f32 %v3646, 0.0
        %v4021 = vmax.f32 %v3648, 0.0
        %v4022 = vmax.f32 %v3650, 0.0
        %v4023 = vmax.f32 %v3652, 0.0
        %v4024 = vmax.f32 %v3656, 0.0
        %v4025 = vmax.f32 %v3658, 0.0
        %v4026 = vmax.f32 %v3660, 0.0
        %v4027 = vmax.f32 %v3662, 0.0
        %v4028 = vmax.f32 %v3666, 0.0
        %v4029 = vmax.f32 %v3668, 0.0
        %v4030 = vmax.f32 %v3670, 0.0
        %v4031 = vmax.f32 %v3672, 0.0
        %v4032 = vmax.f32 %v3676, 0.0
        %v4033 = vmax.f32 %v3678, 0.0
        %v4034 = vmax.f32 %v3680, 0.0
        %v4035 = vmax.f32 %v3682, 0.0
        %v4036 = vmax.f32 %v3686, 0.0
        %v4037 = vmax.f32 %v3688, 0.0
        %v4038 = vmax.f32 %v3690, 0.0
        %v4039 = vmax.f32 %v3692, 0.0
        %v4040 = vmax.f32 %v3696, 0.0
        %v4041 = vmax.f32 %v3698, 0.0
        %v4042 = vmax.f32 %v3700, 0.0
        %v4043 = vmax.f32 %v3702, 0.0
        %v4044 = vmax.f32 %v3706, 0.0
        %v4045 = vmax.f32 %v3708, 0.0
        %v4046 = vmax.f32 %v3710, 0.0
        %v4047 = vmax.f32 %v3712, 0.0
        %v4048 = vmax.f32 %v3716, 0.0
        %v4049 = vmax.f32 %v3718, 0.0
        %v4050 = vmax.f32 %v3720, 0.0
        %v4051 = vmax.f32 %v3722, 0.0
        %v4052 = vmax.f32 %v3726, 0.0
        %v4053 = vmax.f32 %v3728, 0.0
        %v4054 = vmax.f32 %v3730, 0.0
        %v4055 = vmax.f32 %v3732, 0.0
        %v4056 = vmax.f32 %v3736, 0.0
        %v4057 = vmax.f32 %v3738, 0.0
        %v4058 = vmax.f32 %v3740, 0.0
        %v4059 = vmax.f32 %v3742, 0.0
        %v4060 = vmax.f32 %v3746, 0.0
        %v4061 = vmax.f32 %v3748, 0.0
        %v4062 = vmax.f32 %v3750, 0.0
        %v4063 = vmax.f32 %v3752, 0.0
        %v4064 = vmax.f32 %v3756, 0.0
        %v4065 = vmax.f32 %v3758, 0.0
        %v4066 = vmax.f32 %v3760, 0.0
        %v4067 = vmax.f32 %v3762, 0.0
        %v4068 = vmax.f32 %v3766, 0.0
        %v4069 = vmax.f32 %v3768, 0.0
        %v4070 = vmax.f32 %v3770, 0.0
        %v4071 = vmax.f32 %v3772, 0.0
        %v4072 = vmax.f32 %v3776, 0.0
        %v4073 = vmax.f32 %v3778, 0.0
        %v4074 = vmax.f32 %v3780, 0.0
        %v4075 = vmax.f32 %v3782, 0.0
        %v4076 = vmax.f32 %v3786, 0.0
        %v4077 = vmax.f32 %v3788, 0.0
        %v4078 = vmax.f32 %v3790, 0.0
        %v4079 = vmax.f32 %v3792, 0.0
        %v4080 = vmax.f32 %v3796, 0.0
        %v4081 = vmax.f32 %v3798, 0.0
        %v4082 = vmax.f32 %v3800, 0.0
        %v4083 = vmax.f32 %v3802, 0.0
        %v4084 = vmax.f32 %v3806, 0.0
        %v4085 = vmax.f32 %v3808, 0.0
        %v4086 = vmax.f32 %v3810, 0.0
        %v4087 = vmax.f32 %v3812, 0.0
        %v4088 = vmax.f32 %v3816, 0.0
        %v4089 = vmax.f32 %v3818, 0.0
        %v4090 = vmax.f32 %v3820, 0.0
        %v4091 = vmax.f32 %v3822, 0.0
        %v4092 = vmax.f32 %v3826, 0.0
        %v4093 = vmax.f32 %v3828, 0.0
        %v4094 = vmax.f32 %v3830, 0.0
        %v4095 = vmax.f32 %v3832, 0.0
        %v4096 = vmax.f32 %v3836, 0.0
        %v4097 = vmax.f32 %v3838, 0.0
        %v4098 = vmax.f32 %v3840, 0.0
        %v4099 = vmax.f32 %v3842, 0.0
        %v4100 = vld [vmem:[%s10] sm:$0x3]
        %v4102 = vlaneseq
        %v4103 = vshrl.u32 %v4102, 7
        %v4104 = vsub.s32 0, %v4103
        %v4105 = vrot.slane %v4100, %v4104
        %v4106 = vlaneseq
        %v4107 = vshrl.u32 %v4106, 7
        %v4108 = vsub.s32 1, %v4107
        %v4109 = vrot.slane %v4100, %v4108
        %v4112 = vmul.f32 %v3844, %v4105
        %v4113 = vmul.f32 %v3845, %v4109
        %v4114 = vmul.f32 %v3846, %v4105
        %v4115 = vmul.f32 %v3847, %v4109
        %v4116 = vmul.f32 %v3848, %v4105
        %v4117 = vmul.f32 %v3849, %v4109
        %v4118 = vmul.f32 %v3850, %v4105
        %v4119 = vmul.f32 %v3851, %v4109
        %v4120 = vmul.f32 %v3852, %v4105
        %v4121 = vmul.f32 %v3853, %v4109
        %v4122 = vmul.f32 %v3854, %v4105
        %v4123 = vmul.f32 %v3855, %v4109
        %v4124 = vmul.f32 %v3856, %v4105
        %v4125 = vmul.f32 %v3857, %v4109
        %v4126 = vmul.f32 %v3858, %v4105
        %v4127 = vmul.f32 %v3859, %v4109
        %v4128 = vmul.f32 %v3860, %v4105
        %v4129 = vmul.f32 %v3861, %v4109
        %v4130 = vmul.f32 %v3862, %v4105
        %v4131 = vmul.f32 %v3863, %v4109
        %v4132 = vmul.f32 %v3864, %v4105
        %v4133 = vmul.f32 %v3865, %v4109
        %v4134 = vmul.f32 %v3866, %v4105
        %v4135 = vmul.f32 %v3867, %v4109
        %v4136 = vmul.f32 %v3868, %v4105
        %v4137 = vmul.f32 %v3869, %v4109
        %v4138 = vmul.f32 %v3870, %v4105
        %v4139 = vmul.f32 %v3871, %v4109
        %v4140 = vmul.f32 %v3872, %v4105
        %v4141 = vmul.f32 %v3873, %v4109
        %v4142 = vmul.f32 %v3874, %v4105
        %v4143 = vmul.f32 %v3875, %v4109
        %v4144 = vmul.f32 %v3876, %v4105
        %v4145 = vmul.f32 %v3877, %v4109
        %v4146 = vmul.f32 %v3878, %v4105
        %v4147 = vmul.f32 %v3879, %v4109
        %v4148 = vmul.f32 %v3880, %v4105
        %v4149 = vmul.f32 %v3881, %v4109
        %v4150 = vmul.f32 %v3882, %v4105
        %v4151 = vmul.f32 %v3883, %v4109
        %v4152 = vmul.f32 %v3884, %v4105
        %v4153 = vmul.f32 %v3885, %v4109
        %v4154 = vmul.f32 %v3886, %v4105
        %v4155 = vmul.f32 %v3887, %v4109
        %v4156 = vmul.f32 %v3888, %v4105
        %v4157 = vmul.f32 %v3889, %v4109
        %v4158 = vmul.f32 %v3890, %v4105
        %v4159 = vmul.f32 %v3891, %v4109
        %v4160 = vmul.f32 %v3892, %v4105
        %v4161 = vmul.f32 %v3893, %v4109
        %v4162 = vmul.f32 %v3894, %v4105
        %v4163 = vmul.f32 %v3895, %v4109
        %v4164 = vmul.f32 %v3896, %v4105
        %v4165 = vmul.f32 %v3897, %v4109
        %v4166 = vmul.f32 %v3898, %v4105
        %v4167 = vmul.f32 %v3899, %v4109
        %v4168 = vmul.f32 %v3900, %v4105
        %v4169 = vmul.f32 %v3901, %v4109
        %v4170 = vmul.f32 %v3902, %v4105
        %v4171 = vmul.f32 %v3903, %v4109
        %v4172 = vmul.f32 %v3904, %v4105
        %v4173 = vmul.f32 %v3905, %v4109
        %v4174 = vmul.f32 %v3906, %v4105
        %v4175 = vmul.f32 %v3907, %v4109
        %v4176 = vmul.f32 %v3908, %v4105
        %v4177 = vmul.f32 %v3909, %v4109
        %v4178 = vmul.f32 %v3910, %v4105
        %v4179 = vmul.f32 %v3911, %v4109
        %v4180 = vmul.f32 %v3912, %v4105
        %v4181 = vmul.f32 %v3913, %v4109
        %v4182 = vmul.f32 %v3914, %v4105
        %v4183 = vmul.f32 %v3915, %v4109
        %v4184 = vmul.f32 %v3916, %v4105
        %v4185 = vmul.f32 %v3917, %v4109
        %v4186 = vmul.f32 %v3918, %v4105
        %v4187 = vmul.f32 %v3919, %v4109
        %v4188 = vmul.f32 %v3920, %v4105
        %v4189 = vmul.f32 %v3921, %v4109
        %v4190 = vmul.f32 %v3922, %v4105
        %v4191 = vmul.f32 %v3923, %v4109
        %v4192 = vmul.f32 %v3924, %v4105
        %v4193 = vmul.f32 %v3925, %v4109
        %v4194 = vmul.f32 %v3926, %v4105
        %v4195 = vmul.f32 %v3927, %v4109
        %v4196 = vmul.f32 %v3928, %v4105
        %v4197 = vmul.f32 %v3929, %v4109
        %v4198 = vmul.f32 %v3930, %v4105
        %v4199 = vmul.f32 %v3931, %v4109
        %v4200 = vmul.f32 %v3932, %v4105
        %v4201 = vmul.f32 %v3933, %v4109
        %v4202 = vmul.f32 %v3934, %v4105
        %v4203 = vmul.f32 %v3935, %v4109
        %v4204 = vmul.f32 %v3936, %v4105
        %v4205 = vmul.f32 %v3937, %v4109
        %v4206 = vmul.f32 %v3938, %v4105
        %v4207 = vmul.f32 %v3939, %v4109
        %v4208 = vmul.f32 %v3940, %v4105
        %v4209 = vmul.f32 %v3941, %v4109
        %v4210 = vmul.f32 %v3942, %v4105
        %v4211 = vmul.f32 %v3943, %v4109
        %v4212 = vmul.f32 %v3944, %v4105
        %v4213 = vmul.f32 %v3945, %v4109
        %v4214 = vmul.f32 %v3946, %v4105
        %v4215 = vmul.f32 %v3947, %v4109
        %v4216 = vmul.f32 %v3948, %v4105
        %v4217 = vmul.f32 %v3949, %v4109
        %v4218 = vmul.f32 %v3950, %v4105
        %v4219 = vmul.f32 %v3951, %v4109
        %v4220 = vmul.f32 %v3952, %v4105
        %v4221 = vmul.f32 %v3953, %v4109
        %v4222 = vmul.f32 %v3954, %v4105
        %v4223 = vmul.f32 %v3955, %v4109
        %v4224 = vmul.f32 %v3956, %v4105
        %v4225 = vmul.f32 %v3957, %v4109
        %v4226 = vmul.f32 %v3958, %v4105
        %v4227 = vmul.f32 %v3959, %v4109
        %v4228 = vmul.f32 %v3960, %v4105
        %v4229 = vmul.f32 %v3961, %v4109
        %v4230 = vmul.f32 %v3962, %v4105
        %v4231 = vmul.f32 %v3963, %v4109
        %v4232 = vmul.f32 %v3964, %v4105
        %v4233 = vmul.f32 %v3965, %v4109
        %v4234 = vmul.f32 %v3966, %v4105
        %v4235 = vmul.f32 %v3967, %v4109
        %v4236 = vmul.f32 %v3968, %v4105
        %v4237 = vmul.f32 %v3969, %v4109
        %v4238 = vmul.f32 %v3970, %v4105
        %v4239 = vmul.f32 %v3971, %v4109
        %v4240 = vmul.f32 %v3972, %v4105
        %v4241 = vmul.f32 %v3973, %v4109
        %v4242 = vmul.f32 %v3974, %v4105
        %v4243 = vmul.f32 %v3975, %v4109
        %v4244 = vmul.f32 %v3976, %v4105
        %v4245 = vmul.f32 %v3977, %v4109
        %v4246 = vmul.f32 %v3978, %v4105
        %v4247 = vmul.f32 %v3979, %v4109
        %v4248 = vmul.f32 %v3980, %v4105
        %v4249 = vmul.f32 %v3981, %v4109
        %v4250 = vmul.f32 %v3982, %v4105
        %v4251 = vmul.f32 %v3983, %v4109
        %v4252 = vmul.f32 %v3984, %v4105
        %v4253 = vmul.f32 %v3985, %v4109
        %v4254 = vmul.f32 %v3986, %v4105
        %v4255 = vmul.f32 %v3987, %v4109
        %v4256 = vmul.f32 %v3988, %v4105
        %v4257 = vmul.f32 %v3989, %v4109
        %v4258 = vmul.f32 %v3990, %v4105
        %v4259 = vmul.f32 %v3991, %v4109
        %v4260 = vmul.f32 %v3992, %v4105
        %v4261 = vmul.f32 %v3993, %v4109
        %v4262 = vmul.f32 %v3994, %v4105
        %v4263 = vmul.f32 %v3995, %v4109
        %v4264 = vmul.f32 %v3996, %v4105
        %v4265 = vmul.f32 %v3997, %v4109
        %v4266 = vmul.f32 %v3998, %v4105
        %v4267 = vmul.f32 %v3999, %v4109
        %v4268 = vmul.f32 %v4000, %v4105
        %v4269 = vmul.f32 %v4001, %v4109
        %v4270 = vmul.f32 %v4002, %v4105
        %v4271 = vmul.f32 %v4003, %v4109
        %v4272 = vmul.f32 %v4004, %v4105
        %v4273 = vmul.f32 %v4005, %v4109
        %v4274 = vmul.f32 %v4006, %v4105
        %v4275 = vmul.f32 %v4007, %v4109
        %v4276 = vmul.f32 %v4008, %v4105
        %v4277 = vmul.f32 %v4009, %v4109
        %v4278 = vmul.f32 %v4010, %v4105
        %v4279 = vmul.f32 %v4011, %v4109
        %v4280 = vmul.f32 %v4012, %v4105
        %v4281 = vmul.f32 %v4013, %v4109
        %v4282 = vmul.f32 %v4014, %v4105
        %v4283 = vmul.f32 %v4015, %v4109
        %v4284 = vmul.f32 %v4016, %v4105
        %v4285 = vmul.f32 %v4017, %v4109
        %v4286 = vmul.f32 %v4018, %v4105
        %v4287 = vmul.f32 %v4019, %v4109
        %v4288 = vmul.f32 %v4020, %v4105
        %v4289 = vmul.f32 %v4021, %v4109
        %v4290 = vmul.f32 %v4022, %v4105
        %v4291 = vmul.f32 %v4023, %v4109
        %v4292 = vmul.f32 %v4024, %v4105
        %v4293 = vmul.f32 %v4025, %v4109
        %v4294 = vmul.f32 %v4026, %v4105
        %v4295 = vmul.f32 %v4027, %v4109
        %v4296 = vmul.f32 %v4028, %v4105
        %v4297 = vmul.f32 %v4029, %v4109
        %v4298 = vmul.f32 %v4030, %v4105
        %v4299 = vmul.f32 %v4031, %v4109
        %v4300 = vmul.f32 %v4032, %v4105
        %v4301 = vmul.f32 %v4033, %v4109
        %v4302 = vmul.f32 %v4034, %v4105
        %v4303 = vmul.f32 %v4035, %v4109
        %v4304 = vmul.f32 %v4036, %v4105
        %v4305 = vmul.f32 %v4037, %v4109
        %v4306 = vmul.f32 %v4038, %v4105
        %v4307 = vmul.f32 %v4039, %v4109
        %v4308 = vmul.f32 %v4040, %v4105
        %v4309 = vmul.f32 %v4041, %v4109
        %v4310 = vmul.f32 %v4042, %v4105
        %v4311 = vmul.f32 %v4043, %v4109
        %v4312 = vmul.f32 %v4044, %v4105
        %v4313 = vmul.f32 %v4045, %v4109
        %v4314 = vmul.f32 %v4046, %v4105
        %v4315 = vmul.f32 %v4047, %v4109
        %v4316 = vmul.f32 %v4048, %v4105
        %v4317 = vmul.f32 %v4049, %v4109
        %v4318 = vmul.f32 %v4050, %v4105
        %v4319 = vmul.f32 %v4051, %v4109
        %v4320 = vmul.f32 %v4052, %v4105
        %v4321 = vmul.f32 %v4053, %v4109
        %v4322 = vmul.f32 %v4054, %v4105
        %v4323 = vmul.f32 %v4055, %v4109
        %v4324 = vmul.f32 %v4056, %v4105
        %v4325 = vmul.f32 %v4057, %v4109
        %v4326 = vmul.f32 %v4058, %v4105
        %v4327 = vmul.f32 %v4059, %v4109
        %v4328 = vmul.f32 %v4060, %v4105
        %v4329 = vmul.f32 %v4061, %v4109
        %v4330 = vmul.f32 %v4062, %v4105
        %v4331 = vmul.f32 %v4063, %v4109
        %v4332 = vmul.f32 %v4064, %v4105
        %v4333 = vmul.f32 %v4065, %v4109
        %v4334 = vmul.f32 %v4066, %v4105
        %v4335 = vmul.f32 %v4067, %v4109
        %v4336 = vmul.f32 %v4068, %v4105
        %v4337 = vmul.f32 %v4069, %v4109
        %v4338 = vmul.f32 %v4070, %v4105
        %v4339 = vmul.f32 %v4071, %v4109
        %v4340 = vmul.f32 %v4072, %v4105
        %v4341 = vmul.f32 %v4073, %v4109
        %v4342 = vmul.f32 %v4074, %v4105
        %v4343 = vmul.f32 %v4075, %v4109
        %v4344 = vmul.f32 %v4076, %v4105
        %v4345 = vmul.f32 %v4077, %v4109
        %v4346 = vmul.f32 %v4078, %v4105
        %v4347 = vmul.f32 %v4079, %v4109
        %v4348 = vmul.f32 %v4080, %v4105
        %v4349 = vmul.f32 %v4081, %v4109
        %v4350 = vmul.f32 %v4082, %v4105
        %v4351 = vmul.f32 %v4083, %v4109
        %v4352 = vmul.f32 %v4084, %v4105
        %v4353 = vmul.f32 %v4085, %v4109
        %v4354 = vmul.f32 %v4086, %v4105
        %v4355 = vmul.f32 %v4087, %v4109
        %v4356 = vmul.f32 %v4088, %v4105
        %v4357 = vmul.f32 %v4089, %v4109
        %v4358 = vmul.f32 %v4090, %v4105
        %v4359 = vmul.f32 %v4091, %v4109
        %v4360 = vmul.f32 %v4092, %v4105
        %v4361 = vmul.f32 %v4093, %v4109
        %v4362 = vmul.f32 %v4094, %v4105
        %v4363 = vmul.f32 %v4095, %v4109
        %v4364 = vmul.f32 %v4096, %v4105
        %v4365 = vmul.f32 %v4097, %v4109
        %v4366 = vmul.f32 %v4098, %v4105
        %v4367 = vmul.f32 %v4099, %v4109
        %v4368 = vadd.f32 %v4112, %v4113
        %4369 = vadd.xlane.f32.xlu0 %v4368
        %v4370 = vpop.xlane.xlu0 %4369
        %v4371 = vadd.f32 %v4114, %v4115
        %4372 = vadd.xlane.f32.xlu0 %v4371
        %v4373 = vpop.xlane.xlu0 %4372
        %v4374 = vadd.f32 %v4116, %v4117
        %4375 = vadd.xlane.f32.xlu0 %v4374
        %v4376 = vpop.xlane.xlu0 %4375
        %v4377 = vadd.f32 %v4118, %v4119
        %4378 = vadd.xlane.f32.xlu0 %v4377
        %v4379 = vpop.xlane.xlu0 %4378
        %v4380 = vadd.f32 %v4120, %v4121
        %4381 = vadd.xlane.f32.xlu0 %v4380
        %v4382 = vpop.xlane.xlu0 %4381
        %v4383 = vadd.f32 %v4122, %v4123
        %4384 = vadd.xlane.f32.xlu0 %v4383
        %v4385 = vpop.xlane.xlu0 %4384
        %v4386 = vadd.f32 %v4124, %v4125
        %4387 = vadd.xlane.f32.xlu0 %v4386
        %v4388 = vpop.xlane.xlu0 %4387
        %v4389 = vadd.f32 %v4126, %v4127
        %4390 = vadd.xlane.f32.xlu0 %v4389
        %v4391 = vpop.xlane.xlu0 %4390
        %v4392 = vadd.f32 %v4128, %v4129
        %4393 = vadd.xlane.f32.xlu0 %v4392
        %v4394 = vpop.xlane.xlu0 %4393
        %v4395 = vadd.f32 %v4130, %v4131
        %4396 = vadd.xlane.f32.xlu0 %v4395
        %v4397 = vpop.xlane.xlu0 %4396
        %v4398 = vadd.f32 %v4132, %v4133
        %4399 = vadd.xlane.f32.xlu0 %v4398
        %v4400 = vpop.xlane.xlu0 %4399
        %v4401 = vadd.f32 %v4134, %v4135
        %4402 = vadd.xlane.f32.xlu0 %v4401
        %v4403 = vpop.xlane.xlu0 %4402
        %v4404 = vadd.f32 %v4136, %v4137
        %4405 = vadd.xlane.f32.xlu0 %v4404
        %v4406 = vpop.xlane.xlu0 %4405
        %v4407 = vadd.f32 %v4138, %v4139
        %4408 = vadd.xlane.f32.xlu0 %v4407
        %v4409 = vpop.xlane.xlu0 %4408
        %v4410 = vadd.f32 %v4140, %v4141
        %4411 = vadd.xlane.f32.xlu0 %v4410
        %v4412 = vpop.xlane.xlu0 %4411
        %v4413 = vadd.f32 %v4142, %v4143
        %4414 = vadd.xlane.f32.xlu0 %v4413
        %v4415 = vpop.xlane.xlu0 %4414
        %v4416 = vadd.f32 %v4144, %v4145
        %4417 = vadd.xlane.f32.xlu0 %v4416
        %v4418 = vpop.xlane.xlu0 %4417
        %v4419 = vadd.f32 %v4146, %v4147
        %4420 = vadd.xlane.f32.xlu0 %v4419
        %v4421 = vpop.xlane.xlu0 %4420
        %v4422 = vadd.f32 %v4148, %v4149
        %4423 = vadd.xlane.f32.xlu0 %v4422
        %v4424 = vpop.xlane.xlu0 %4423
        %v4425 = vadd.f32 %v4150, %v4151
        %4426 = vadd.xlane.f32.xlu0 %v4425
        %v4427 = vpop.xlane.xlu0 %4426
        %v4428 = vadd.f32 %v4152, %v4153
        %4429 = vadd.xlane.f32.xlu0 %v4428
        %v4430 = vpop.xlane.xlu0 %4429
        %v4431 = vadd.f32 %v4154, %v4155
        %4432 = vadd.xlane.f32.xlu0 %v4431
        %v4433 = vpop.xlane.xlu0 %4432
        %v4434 = vadd.f32 %v4156, %v4157
        %4435 = vadd.xlane.f32.xlu0 %v4434
        %v4436 = vpop.xlane.xlu0 %4435
        %v4437 = vadd.f32 %v4158, %v4159
        %4438 = vadd.xlane.f32.xlu0 %v4437
        %v4439 = vpop.xlane.xlu0 %4438
        %v4440 = vadd.f32 %v4160, %v4161
        %4441 = vadd.xlane.f32.xlu0 %v4440
        %v4442 = vpop.xlane.xlu0 %4441
        %v4443 = vadd.f32 %v4162, %v4163
        %4444 = vadd.xlane.f32.xlu0 %v4443
        %v4445 = vpop.xlane.xlu0 %4444
        %v4446 = vadd.f32 %v4164, %v4165
        %4447 = vadd.xlane.f32.xlu0 %v4446
        %v4448 = vpop.xlane.xlu0 %4447
        %v4449 = vadd.f32 %v4166, %v4167
        %4450 = vadd.xlane.f32.xlu0 %v4449
        %v4451 = vpop.xlane.xlu0 %4450
        %v4452 = vadd.f32 %v4168, %v4169
        %4453 = vadd.xlane.f32.xlu0 %v4452
        %v4454 = vpop.xlane.xlu0 %4453
        %v4455 = vadd.f32 %v4170, %v4171
        %4456 = vadd.xlane.f32.xlu0 %v4455
        %v4457 = vpop.xlane.xlu0 %4456
        %v4458 = vadd.f32 %v4172, %v4173
        %4459 = vadd.xlane.f32.xlu0 %v4458
        %v4460 = vpop.xlane.xlu0 %4459
        %v4461 = vadd.f32 %v4174, %v4175
        %4462 = vadd.xlane.f32.xlu0 %v4461
        %v4463 = vpop.xlane.xlu0 %4462
        %v4464 = vadd.f32 %v4176, %v4177
        %4465 = vadd.xlane.f32.xlu0 %v4464
        %v4466 = vpop.xlane.xlu0 %4465
        %v4467 = vadd.f32 %v4178, %v4179
        %4468 = vadd.xlane.f32.xlu0 %v4467
        %v4469 = vpop.xlane.xlu0 %4468
        %v4470 = vadd.f32 %v4180, %v4181
        %4471 = vadd.xlane.f32.xlu0 %v4470
        %v4472 = vpop.xlane.xlu0 %4471
        %v4473 = vadd.f32 %v4182, %v4183
        %4474 = vadd.xlane.f32.xlu0 %v4473
        %v4475 = vpop.xlane.xlu0 %4474
        %v4476 = vadd.f32 %v4184, %v4185
        %4477 = vadd.xlane.f32.xlu0 %v4476
        %v4478 = vpop.xlane.xlu0 %4477
        %v4479 = vadd.f32 %v4186, %v4187
        %4480 = vadd.xlane.f32.xlu0 %v4479
        %v4481 = vpop.xlane.xlu0 %4480
        %v4482 = vadd.f32 %v4188, %v4189
        %4483 = vadd.xlane.f32.xlu0 %v4482
        %v4484 = vpop.xlane.xlu0 %4483
        %v4485 = vadd.f32 %v4190, %v4191
        %4486 = vadd.xlane.f32.xlu0 %v4485
        %v4487 = vpop.xlane.xlu0 %4486
        %v4488 = vadd.f32 %v4192, %v4193
        %4489 = vadd.xlane.f32.xlu0 %v4488
        %v4490 = vpop.xlane.xlu0 %4489
        %v4491 = vadd.f32 %v4194, %v4195
        %4492 = vadd.xlane.f32.xlu0 %v4491
        %v4493 = vpop.xlane.xlu0 %4492
        %v4494 = vadd.f32 %v4196, %v4197
        %4495 = vadd.xlane.f32.xlu0 %v4494
        %v4496 = vpop.xlane.xlu0 %4495
        %v4497 = vadd.f32 %v4198, %v4199
        %4498 = vadd.xlane.f32.xlu0 %v4497
        %v4499 = vpop.xlane.xlu0 %4498
        %v4500 = vadd.f32 %v4200, %v4201
        %4501 = vadd.xlane.f32.xlu0 %v4500
        %v4502 = vpop.xlane.xlu0 %4501
        %v4503 = vadd.f32 %v4202, %v4203
        %4504 = vadd.xlane.f32.xlu0 %v4503
        %v4505 = vpop.xlane.xlu0 %4504
        %v4506 = vadd.f32 %v4204, %v4205
        %4507 = vadd.xlane.f32.xlu0 %v4506
        %v4508 = vpop.xlane.xlu0 %4507
        %v4509 = vadd.f32 %v4206, %v4207
        %4510 = vadd.xlane.f32.xlu0 %v4509
        %v4511 = vpop.xlane.xlu0 %4510
        %v4512 = vadd.f32 %v4208, %v4209
        %4513 = vadd.xlane.f32.xlu0 %v4512
        %v4514 = vpop.xlane.xlu0 %4513
        %v4515 = vadd.f32 %v4210, %v4211
        %4516 = vadd.xlane.f32.xlu0 %v4515
        %v4517 = vpop.xlane.xlu0 %4516
        %v4518 = vadd.f32 %v4212, %v4213
        %4519 = vadd.xlane.f32.xlu0 %v4518
        %v4520 = vpop.xlane.xlu0 %4519
        %v4521 = vadd.f32 %v4214, %v4215
        %4522 = vadd.xlane.f32.xlu0 %v4521
        %v4523 = vpop.xlane.xlu0 %4522
        %v4524 = vadd.f32 %v4216, %v4217
        %4525 = vadd.xlane.f32.xlu0 %v4524
        %v4526 = vpop.xlane.xlu0 %4525
        %v4527 = vadd.f32 %v4218, %v4219
        %4528 = vadd.xlane.f32.xlu0 %v4527
        %v4529 = vpop.xlane.xlu0 %4528
        %v4530 = vadd.f32 %v4220, %v4221
        %4531 = vadd.xlane.f32.xlu0 %v4530
        %v4532 = vpop.xlane.xlu0 %4531
        %v4533 = vadd.f32 %v4222, %v4223
        %4534 = vadd.xlane.f32.xlu0 %v4533
        %v4535 = vpop.xlane.xlu0 %4534
        %v4536 = vadd.f32 %v4224, %v4225
        %4537 = vadd.xlane.f32.xlu0 %v4536
        %v4538 = vpop.xlane.xlu0 %4537
        %v4539 = vadd.f32 %v4226, %v4227
        %4540 = vadd.xlane.f32.xlu0 %v4539
        %v4541 = vpop.xlane.xlu0 %4540
        %v4542 = vadd.f32 %v4228, %v4229
        %4543 = vadd.xlane.f32.xlu0 %v4542
        %v4544 = vpop.xlane.xlu0 %4543
        %v4545 = vadd.f32 %v4230, %v4231
        %4546 = vadd.xlane.f32.xlu0 %v4545
        %v4547 = vpop.xlane.xlu0 %4546
        %v4548 = vadd.f32 %v4232, %v4233
        %4549 = vadd.xlane.f32.xlu0 %v4548
        %v4550 = vpop.xlane.xlu0 %4549
        %v4551 = vadd.f32 %v4234, %v4235
        %4552 = vadd.xlane.f32.xlu0 %v4551
        %v4553 = vpop.xlane.xlu0 %4552
        %v4554 = vadd.f32 %v4236, %v4237
        %4555 = vadd.xlane.f32.xlu0 %v4554
        %v4556 = vpop.xlane.xlu0 %4555
        %v4557 = vadd.f32 %v4238, %v4239
        %4558 = vadd.xlane.f32.xlu0 %v4557
        %v4559 = vpop.xlane.xlu0 %4558
        %v4560 = vadd.f32 %v4240, %v4241
        %4561 = vadd.xlane.f32.xlu0 %v4560
        %v4562 = vpop.xlane.xlu0 %4561
        %v4563 = vadd.f32 %v4242, %v4243
        %4564 = vadd.xlane.f32.xlu0 %v4563
        %v4565 = vpop.xlane.xlu0 %4564
        %v4566 = vadd.f32 %v4244, %v4245
        %4567 = vadd.xlane.f32.xlu0 %v4566
        %v4568 = vpop.xlane.xlu0 %4567
        %v4569 = vadd.f32 %v4246, %v4247
        %4570 = vadd.xlane.f32.xlu0 %v4569
        %v4571 = vpop.xlane.xlu0 %4570
        %v4572 = vadd.f32 %v4248, %v4249
        %4573 = vadd.xlane.f32.xlu0 %v4572
        %v4574 = vpop.xlane.xlu0 %4573
        %v4575 = vadd.f32 %v4250, %v4251
        %4576 = vadd.xlane.f32.xlu0 %v4575
        %v4577 = vpop.xlane.xlu0 %4576
        %v4578 = vadd.f32 %v4252, %v4253
        %4579 = vadd.xlane.f32.xlu0 %v4578
        %v4580 = vpop.xlane.xlu0 %4579
        %v4581 = vadd.f32 %v4254, %v4255
        %4582 = vadd.xlane.f32.xlu0 %v4581
        %v4583 = vpop.xlane.xlu0 %4582
        %v4584 = vadd.f32 %v4256, %v4257
        %4585 = vadd.xlane.f32.xlu0 %v4584
        %v4586 = vpop.xlane.xlu0 %4585
        %v4587 = vadd.f32 %v4258, %v4259
        %4588 = vadd.xlane.f32.xlu0 %v4587
        %v4589 = vpop.xlane.xlu0 %4588
        %v4590 = vadd.f32 %v4260, %v4261
        %4591 = vadd.xlane.f32.xlu0 %v4590
        %v4592 = vpop.xlane.xlu0 %4591
        %v4593 = vadd.f32 %v4262, %v4263
        %4594 = vadd.xlane.f32.xlu0 %v4593
        %v4595 = vpop.xlane.xlu0 %4594
        %v4596 = vadd.f32 %v4264, %v4265
        %4597 = vadd.xlane.f32.xlu0 %v4596
        %v4598 = vpop.xlane.xlu0 %4597
        %v4599 = vadd.f32 %v4266, %v4267
        %4600 = vadd.xlane.f32.xlu0 %v4599
        %v4601 = vpop.xlane.xlu0 %4600
        %v4602 = vadd.f32 %v4268, %v4269
        %4603 = vadd.xlane.f32.xlu0 %v4602
        %v4604 = vpop.xlane.xlu0 %4603
        %v4605 = vadd.f32 %v4270, %v4271
        %4606 = vadd.xlane.f32.xlu0 %v4605
        %v4607 = vpop.xlane.xlu0 %4606
        %v4608 = vadd.f32 %v4272, %v4273
        %4609 = vadd.xlane.f32.xlu0 %v4608
        %v4610 = vpop.xlane.xlu0 %4609
        %v4611 = vadd.f32 %v4274, %v4275
        %4612 = vadd.xlane.f32.xlu0 %v4611
        %v4613 = vpop.xlane.xlu0 %4612
        %v4614 = vadd.f32 %v4276, %v4277
        %4615 = vadd.xlane.f32.xlu0 %v4614
        %v4616 = vpop.xlane.xlu0 %4615
        %v4617 = vadd.f32 %v4278, %v4279
        %4618 = vadd.xlane.f32.xlu0 %v4617
        %v4619 = vpop.xlane.xlu0 %4618
        %v4620 = vadd.f32 %v4280, %v4281
        %4621 = vadd.xlane.f32.xlu0 %v4620
        %v4622 = vpop.xlane.xlu0 %4621
        %v4623 = vadd.f32 %v4282, %v4283
        %4624 = vadd.xlane.f32.xlu0 %v4623
        %v4625 = vpop.xlane.xlu0 %4624
        %v4626 = vadd.f32 %v4284, %v4285
        %4627 = vadd.xlane.f32.xlu0 %v4626
        %v4628 = vpop.xlane.xlu0 %4627
        %v4629 = vadd.f32 %v4286, %v4287
        %4630 = vadd.xlane.f32.xlu0 %v4629
        %v4631 = vpop.xlane.xlu0 %4630
        %v4632 = vadd.f32 %v4288, %v4289
        %4633 = vadd.xlane.f32.xlu0 %v4632
        %v4634 = vpop.xlane.xlu0 %4633
        %v4635 = vadd.f32 %v4290, %v4291
        %4636 = vadd.xlane.f32.xlu0 %v4635
        %v4637 = vpop.xlane.xlu0 %4636
        %v4638 = vadd.f32 %v4292, %v4293
        %4639 = vadd.xlane.f32.xlu0 %v4638
        %v4640 = vpop.xlane.xlu0 %4639
        %v4641 = vadd.f32 %v4294, %v4295
        %4642 = vadd.xlane.f32.xlu0 %v4641
        %v4643 = vpop.xlane.xlu0 %4642
        %v4644 = vadd.f32 %v4296, %v4297
        %4645 = vadd.xlane.f32.xlu0 %v4644
        %v4646 = vpop.xlane.xlu0 %4645
        %v4647 = vadd.f32 %v4298, %v4299
        %4648 = vadd.xlane.f32.xlu0 %v4647
        %v4649 = vpop.xlane.xlu0 %4648
        %v4650 = vadd.f32 %v4300, %v4301
        %4651 = vadd.xlane.f32.xlu0 %v4650
        %v4652 = vpop.xlane.xlu0 %4651
        %v4653 = vadd.f32 %v4302, %v4303
        %4654 = vadd.xlane.f32.xlu0 %v4653
        %v4655 = vpop.xlane.xlu0 %4654
        %v4656 = vadd.f32 %v4304, %v4305
        %4657 = vadd.xlane.f32.xlu0 %v4656
        %v4658 = vpop.xlane.xlu0 %4657
        %v4659 = vadd.f32 %v4306, %v4307
        %4660 = vadd.xlane.f32.xlu0 %v4659
        %v4661 = vpop.xlane.xlu0 %4660
        %v4662 = vadd.f32 %v4308, %v4309
        %4663 = vadd.xlane.f32.xlu0 %v4662
        %v4664 = vpop.xlane.xlu0 %4663
        %v4665 = vadd.f32 %v4310, %v4311
        %4666 = vadd.xlane.f32.xlu0 %v4665
        %v4667 = vpop.xlane.xlu0 %4666
        %v4668 = vadd.f32 %v4312, %v4313
        %4669 = vadd.xlane.f32.xlu0 %v4668
        %v4670 = vpop.xlane.xlu0 %4669
        %v4671 = vadd.f32 %v4314, %v4315
        %4672 = vadd.xlane.f32.xlu0 %v4671
        %v4673 = vpop.xlane.xlu0 %4672
        %v4674 = vadd.f32 %v4316, %v4317
        %4675 = vadd.xlane.f32.xlu0 %v4674
        %v4676 = vpop.xlane.xlu0 %4675
        %v4677 = vadd.f32 %v4318, %v4319
        %4678 = vadd.xlane.f32.xlu0 %v4677
        %v4679 = vpop.xlane.xlu0 %4678
        %v4680 = vadd.f32 %v4320, %v4321
        %4681 = vadd.xlane.f32.xlu0 %v4680
        %v4682 = vpop.xlane.xlu0 %4681
        %v4683 = vadd.f32 %v4322, %v4323
        %4684 = vadd.xlane.f32.xlu0 %v4683
        %v4685 = vpop.xlane.xlu0 %4684
        %v4686 = vadd.f32 %v4324, %v4325
        %4687 = vadd.xlane.f32.xlu0 %v4686
        %v4688 = vpop.xlane.xlu0 %4687
        %v4689 = vadd.f32 %v4326, %v4327
        %4690 = vadd.xlane.f32.xlu0 %v4689
        %v4691 = vpop.xlane.xlu0 %4690
        %v4692 = vadd.f32 %v4328, %v4329
        %4693 = vadd.xlane.f32.xlu0 %v4692
        %v4694 = vpop.xlane.xlu0 %4693
        %v4695 = vadd.f32 %v4330, %v4331
        %4696 = vadd.xlane.f32.xlu0 %v4695
        %v4697 = vpop.xlane.xlu0 %4696
        %v4698 = vadd.f32 %v4332, %v4333
        %4699 = vadd.xlane.f32.xlu0 %v4698
        %v4700 = vpop.xlane.xlu0 %4699
        %v4701 = vadd.f32 %v4334, %v4335
        %4702 = vadd.xlane.f32.xlu0 %v4701
        %v4703 = vpop.xlane.xlu0 %4702
        %v4704 = vadd.f32 %v4336, %v4337
        %4705 = vadd.xlane.f32.xlu0 %v4704
        %v4706 = vpop.xlane.xlu0 %4705
        %v4707 = vadd.f32 %v4338, %v4339
        %4708 = vadd.xlane.f32.xlu0 %v4707
        %v4709 = vpop.xlane.xlu0 %4708
        %v4710 = vadd.f32 %v4340, %v4341
        %4711 = vadd.xlane.f32.xlu0 %v4710
        %v4712 = vpop.xlane.xlu0 %4711
        %v4713 = vadd.f32 %v4342, %v4343
        %4714 = vadd.xlane.f32.xlu0 %v4713
        %v4715 = vpop.xlane.xlu0 %4714
        %v4716 = vadd.f32 %v4344, %v4345
        %4717 = vadd.xlane.f32.xlu0 %v4716
        %v4718 = vpop.xlane.xlu0 %4717
        %v4719 = vadd.f32 %v4346, %v4347
        %4720 = vadd.xlane.f32.xlu0 %v4719
        %v4721 = vpop.xlane.xlu0 %4720
        %v4722 = vadd.f32 %v4348, %v4349
        %4723 = vadd.xlane.f32.xlu0 %v4722
        %v4724 = vpop.xlane.xlu0 %4723
        %v4725 = vadd.f32 %v4350, %v4351
        %4726 = vadd.xlane.f32.xlu0 %v4725
        %v4727 = vpop.xlane.xlu0 %4726
        %v4728 = vadd.f32 %v4352, %v4353
        %4729 = vadd.xlane.f32.xlu0 %v4728
        %v4730 = vpop.xlane.xlu0 %4729
        %v4731 = vadd.f32 %v4354, %v4355
        %4732 = vadd.xlane.f32.xlu0 %v4731
        %v4733 = vpop.xlane.xlu0 %4732
        %v4734 = vadd.f32 %v4356, %v4357
        %4735 = vadd.xlane.f32.xlu0 %v4734
        %v4736 = vpop.xlane.xlu0 %4735
        %v4737 = vadd.f32 %v4358, %v4359
        %4738 = vadd.xlane.f32.xlu0 %v4737
        %v4739 = vpop.xlane.xlu0 %4738
        %v4740 = vadd.f32 %v4360, %v4361
        %4741 = vadd.xlane.f32.xlu0 %v4740
        %v4742 = vpop.xlane.xlu0 %4741
        %v4743 = vadd.f32 %v4362, %v4363
        %4744 = vadd.xlane.f32.xlu0 %v4743
        %v4745 = vpop.xlane.xlu0 %4744
        %v4746 = vadd.f32 %v4364, %v4365
        %4747 = vadd.xlane.f32.xlu0 %v4746
        %v4748 = vpop.xlane.xlu0 %4747
        %v4749 = vadd.f32 %v4366, %v4367
        %4750 = vadd.xlane.f32.xlu0 %v4749
        %v4751 = vpop.xlane.xlu0 %4750
        %v4752 = vld [vmem:[#allocation2] sm:$0x1]
        %v4754 = vlaneseq
        %v4755 = vshrl.u32 %v4754, 7
        %v4756 = vsub.s32 0, %v4755
        %v4757 = vrot.slane %v4752, %v4756
        %v4759 = vadd.f32 %v4370, %v4757
        %v4760 = vadd.f32 %v4373, %v4757
        %v4761 = vadd.f32 %v4376, %v4757
        %v4762 = vadd.f32 %v4379, %v4757
        %v4763 = vadd.f32 %v4382, %v4757
        %v4764 = vadd.f32 %v4385, %v4757
        %v4765 = vadd.f32 %v4388, %v4757
        %v4766 = vadd.f32 %v4391, %v4757
        %v4767 = vadd.f32 %v4394, %v4757
        %v4768 = vadd.f32 %v4397, %v4757
        %v4769 = vadd.f32 %v4400, %v4757
        %v4770 = vadd.f32 %v4403, %v4757
        %v4771 = vadd.f32 %v4406, %v4757
        %v4772 = vadd.f32 %v4409, %v4757
        %v4773 = vadd.f32 %v4412, %v4757
        %v4774 = vadd.f32 %v4415, %v4757
        %v4775 = vadd.f32 %v4418, %v4757
        %v4776 = vadd.f32 %v4421, %v4757
        %v4777 = vadd.f32 %v4424, %v4757
        %v4778 = vadd.f32 %v4427, %v4757
        %v4779 = vadd.f32 %v4430, %v4757
        %v4780 = vadd.f32 %v4433, %v4757
        %v4781 = vadd.f32 %v4436, %v4757
        %v4782 = vadd.f32 %v4439, %v4757
        %v4783 = vadd.f32 %v4442, %v4757
        %v4784 = vadd.f32 %v4445, %v4757
        %v4785 = vadd.f32 %v4448, %v4757
        %v4786 = vadd.f32 %v4451, %v4757
        %v4787 = vadd.f32 %v4454, %v4757
        %v4788 = vadd.f32 %v4457, %v4757
        %v4789 = vadd.f32 %v4460, %v4757
        %v4790 = vadd.f32 %v4463, %v4757
        %v4791 = vadd.f32 %v4466, %v4757
        %v4792 = vadd.f32 %v4469, %v4757
        %v4793 = vadd.f32 %v4472, %v4757
        %v4794 = vadd.f32 %v4475, %v4757
        %v4795 = vadd.f32 %v4478, %v4757
        %v4796 = vadd.f32 %v4481, %v4757
        %v4797 = vadd.f32 %v4484, %v4757
        %v4798 = vadd.f32 %v4487, %v4757
        %v4799 = vadd.f32 %v4490, %v4757
        %v4800 = vadd.f32 %v4493, %v4757
        %v4801 = vadd.f32 %v4496, %v4757
        %v4802 = vadd.f32 %v4499, %v4757
        %v4803 = vadd.f32 %v4502, %v4757
        %v4804 = vadd.f32 %v4505, %v4757
        %v4805 = vadd.f32 %v4508, %v4757
        %v4806 = vadd.f32 %v4511, %v4757
        %v4807 = vadd.f32 %v4514, %v4757
        %v4808 = vadd.f32 %v4517, %v4757
        %v4809 = vadd.f32 %v4520, %v4757
        %v4810 = vadd.f32 %v4523, %v4757
        %v4811 = vadd.f32 %v4526, %v4757
        %v4812 = vadd.f32 %v4529, %v4757
        %v4813 = vadd.f32 %v4532, %v4757
        %v4814 = vadd.f32 %v4535, %v4757
        %v4815 = vadd.f32 %v4538, %v4757
        %v4816 = vadd.f32 %v4541, %v4757
        %v4817 = vadd.f32 %v4544, %v4757
        %v4818 = vadd.f32 %v4547, %v4757
        %v4819 = vadd.f32 %v4550, %v4757
        %v4820 = vadd.f32 %v4553, %v4757
        %v4821 = vadd.f32 %v4556, %v4757
        %v4822 = vadd.f32 %v4559, %v4757
        %v4823 = vadd.f32 %v4562, %v4757
        %v4824 = vadd.f32 %v4565, %v4757
        %v4825 = vadd.f32 %v4568, %v4757
        %v4826 = vadd.f32 %v4571, %v4757
        %v4827 = vadd.f32 %v4574, %v4757
        %v4828 = vadd.f32 %v4577, %v4757
        %v4829 = vadd.f32 %v4580, %v4757
        %v4830 = vadd.f32 %v4583, %v4757
        %v4831 = vadd.f32 %v4586, %v4757
        %v4832 = vadd.f32 %v4589, %v4757
        %v4833 = vadd.f32 %v4592, %v4757
        %v4834 = vadd.f32 %v4595, %v4757
        %v4835 = vadd.f32 %v4598, %v4757
        %v4836 = vadd.f32 %v4601, %v4757
        %v4837 = vadd.f32 %v4604, %v4757
        %v4838 = vadd.f32 %v4607, %v4757
        %v4839 = vadd.f32 %v4610, %v4757
        %v4840 = vadd.f32 %v4613, %v4757
        %v4841 = vadd.f32 %v4616, %v4757
        %v4842 = vadd.f32 %v4619, %v4757
        %v4843 = vadd.f32 %v4622, %v4757
        %v4844 = vadd.f32 %v4625, %v4757
        %v4845 = vadd.f32 %v4628, %v4757
        %v4846 = vadd.f32 %v4631, %v4757
        %v4847 = vadd.f32 %v4634, %v4757
        %v4848 = vadd.f32 %v4637, %v4757
        %v4849 = vadd.f32 %v4640, %v4757
        %v4850 = vadd.f32 %v4643, %v4757
        %v4851 = vadd.f32 %v4646, %v4757
        %v4852 = vadd.f32 %v4649, %v4757
        %v4853 = vadd.f32 %v4652, %v4757
        %v4854 = vadd.f32 %v4655, %v4757
        %v4855 = vadd.f32 %v4658, %v4757
        %v4856 = vadd.f32 %v4661, %v4757
        %v4857 = vadd.f32 %v4664, %v4757
        %v4858 = vadd.f32 %v4667, %v4757
        %v4859 = vadd.f32 %v4670, %v4757
        %v4860 = vadd.f32 %v4673, %v4757
        %v4861 = vadd.f32 %v4676, %v4757
        %v4862 = vadd.f32 %v4679, %v4757
        %v4863 = vadd.f32 %v4682, %v4757
        %v4864 = vadd.f32 %v4685, %v4757
        %v4865 = vadd.f32 %v4688, %v4757
        %v4866 = vadd.f32 %v4691, %v4757
        %v4867 = vadd.f32 %v4694, %v4757
        %v4868 = vadd.f32 %v4697, %v4757
        %v4869 = vadd.f32 %v4700, %v4757
        %v4870 = vadd.f32 %v4703, %v4757
        %v4871 = vadd.f32 %v4706, %v4757
        %v4872 = vadd.f32 %v4709, %v4757
        %v4873 = vadd.f32 %v4712, %v4757
        %v4874 = vadd.f32 %v4715, %v4757
        %v4875 = vadd.f32 %v4718, %v4757
        %v4876 = vadd.f32 %v4721, %v4757
        %v4877 = vadd.f32 %v4724, %v4757
        %v4878 = vadd.f32 %v4727, %v4757
        %v4879 = vadd.f32 %v4730, %v4757
        %v4880 = vadd.f32 %v4733, %v4757
        %v4881 = vadd.f32 %v4736, %v4757
        %v4882 = vadd.f32 %v4739, %v4757
        %v4883 = vadd.f32 %v4742, %v4757
        %v4884 = vadd.f32 %v4745, %v4757
        %v4885 = vadd.f32 %v4748, %v4757
        %v4886 = vadd.f32 %v4751, %v4757
        %v4887 = vadd.f32 %v1046, %v1082
        %v4888 = vadd.f32 %v1046, %v1083
        %v4889 = vadd.f32 %v1046, %v1084
        %v4890 = vadd.f32 %v1046, %v1085
        %v4891 = vadd.f32 %v1046, %v1086
        %v4892 = vadd.f32 %v1046, %v1087
        %v4893 = vadd.f32 %v1046, %v1088
        %v4894 = vadd.f32 %v1046, %v1089
        %v4895 = vadd.f32 %v1046, %v1090
        %v4896 = vadd.f32 %v1046, %v1091
        %v4897 = vadd.f32 %v1046, %v1092
        %v4898 = vadd.f32 %v1046, %v1093
        %v4899 = vadd.f32 %v1046, %v1094
        %v4900 = vadd.f32 %v1046, %v1095
        %v4901 = vadd.f32 %v1046, %v1096
        %v4902 = vadd.f32 %v1046, %v1097
        %v4903 = vadd.f32 %v1051, %v1082
        %v4904 = vadd.f32 %v1051, %v1083
        %v4905 = vadd.f32 %v1051, %v1084
        %v4906 = vadd.f32 %v1051, %v1085
        %v4907 = vadd.f32 %v1051, %v1086
        %v4908 = vadd.f32 %v1051, %v1087
        %v4909 = vadd.f32 %v1051, %v1088
        %v4910 = vadd.f32 %v1051, %v1089
        %v4911 = vadd.f32 %v1051, %v1090
        %v4912 = vadd.f32 %v1051, %v1091
        %v4913 = vadd.f32 %v1051, %v1092
        %v4914 = vadd.f32 %v1051, %v1093
        %v4915 = vadd.f32 %v1051, %v1094
        %v4916 = vadd.f32 %v1051, %v1095
        %v4917 = vadd.f32 %v1051, %v1096
        %v4918 = vadd.f32 %v1051, %v1097
        %v4919 = vadd.f32 %v1056, %v1082
        %v4920 = vadd.f32 %v1056, %v1083
        %v4921 = vadd.f32 %v1056, %v1084
        %v4922 = vadd.f32 %v1056, %v1085
        %v4923 = vadd.f32 %v1056, %v1086
        %v4924 = vadd.f32 %v1056, %v1087
        %v4925 = vadd.f32 %v1056, %v1088
        %v4926 = vadd.f32 %v1056, %v1089
        %v4927 = vadd.f32 %v1056, %v1090
        %v4928 = vadd.f32 %v1056, %v1091
        %v4929 = vadd.f32 %v1056, %v1092
        %v4930 = vadd.f32 %v1056, %v1093
        %v4931 = vadd.f32 %v1056, %v1094
        %v4932 = vadd.f32 %v1056, %v1095
        %v4933 = vadd.f32 %v1056, %v1096
        %v4934 = vadd.f32 %v1056, %v1097
        %v4935 = vadd.f32 %v1061, %v1082
        %v4936 = vadd.f32 %v1061, %v1083
        %v4937 = vadd.f32 %v1061, %v1084
        %v4938 = vadd.f32 %v1061, %v1085
        %v4939 = vadd.f32 %v1061, %v1086
        %v4940 = vadd.f32 %v1061, %v1087
        %v4941 = vadd.f32 %v1061, %v1088
        %v4942 = vadd.f32 %v1061, %v1089
        %v4943 = vadd.f32 %v1061, %v1090
        %v4944 = vadd.f32 %v1061, %v1091
        %v4945 = vadd.f32 %v1061, %v1092
        %v4946 = vadd.f32 %v1061, %v1093
        %v4947 = vadd.f32 %v1061, %v1094
        %v4948 = vadd.f32 %v1061, %v1095
        %v4949 = vadd.f32 %v1061, %v1096
        %v4950 = vadd.f32 %v1061, %v1097
        %v4951 = vadd.f32 %v1066, %v1082
        %v4952 = vadd.f32 %v1066, %v1083
        %v4953 = vadd.f32 %v1066, %v1084
        %v4954 = vadd.f32 %v1066, %v1085
        %v4955 = vadd.f32 %v1066, %v1086
        %v4956 = vadd.f32 %v1066, %v1087
        %v4957 = vadd.f32 %v1066, %v1088
        %v4958 = vadd.f32 %v1066, %v1089
        %v4959 = vadd.f32 %v1066, %v1090
        %v4960 = vadd.f32 %v1066, %v1091
        %v4961 = vadd.f32 %v1066, %v1092
        %v4962 = vadd.f32 %v1066, %v1093
        %v4963 = vadd.f32 %v1066, %v1094
        %v4964 = vadd.f32 %v1066, %v1095
        %v4965 = vadd.f32 %v1066, %v1096
        %v4966 = vadd.f32 %v1066, %v1097
        %v4967 = vadd.f32 %v1071, %v1082
        %v4968 = vadd.f32 %v1071, %v1083
        %v4969 = vadd.f32 %v1071, %v1084
        %v4970 = vadd.f32 %v1071, %v1085
        %v4971 = vadd.f32 %v1071, %v1086
        %v4972 = vadd.f32 %v1071, %v1087
        %v4973 = vadd.f32 %v1071, %v1088
        %v4974 = vadd.f32 %v1071, %v1089
        %v4975 = vadd.f32 %v1071, %v1090
        %v4976 = vadd.f32 %v1071, %v1091
        %v4977 = vadd.f32 %v1071, %v1092
        %v4978 = vadd.f32 %v1071, %v1093
        %v4979 = vadd.f32 %v1071, %v1094
        %v4980 = vadd.f32 %v1071, %v1095
        %v4981 = vadd.f32 %v1071, %v1096
        %v4982 = vadd.f32 %v1071, %v1097
        %v4983 = vadd.f32 %v1076, %v1082
        %v4984 = vadd.f32 %v1076, %v1083
        %v4985 = vadd.f32 %v1076, %v1084
        %v4986 = vadd.f32 %v1076, %v1085
        %v4987 = vadd.f32 %v1076, %v1086
        %v4988 = vadd.f32 %v1076, %v1087
        %v4989 = vadd.f32 %v1076, %v1088
        %v4990 = vadd.f32 %v1076, %v1089
        %v4991 = vadd.f32 %v1076, %v1090
        %v4992 = vadd.f32 %v1076, %v1091
        %v4993 = vadd.f32 %v1076, %v1092
        %v4994 = vadd.f32 %v1076, %v1093
        %v4995 = vadd.f32 %v1076, %v1094
        %v4996 = vadd.f32 %v1076, %v1095
        %v4997 = vadd.f32 %v1076, %v1096
        %v4998 = vadd.f32 %v1076, %v1097
        %v4999 = vadd.f32 %v1081, %v1082
        %v5000 = vadd.f32 %v1081, %v1083
        %v5001 = vadd.f32 %v1081, %v1084
        %v5002 = vadd.f32 %v1081, %v1085
        %v5003 = vadd.f32 %v1081, %v1086
        %v5004 = vadd.f32 %v1081, %v1087
        %v5005 = vadd.f32 %v1081, %v1088
        %v5006 = vadd.f32 %v1081, %v1089
        %v5007 = vadd.f32 %v1081, %v1090
        %v5008 = vadd.f32 %v1081, %v1091
        %v5009 = vadd.f32 %v1081, %v1092
        %v5010 = vadd.f32 %v1081, %v1093
        %v5011 = vadd.f32 %v1081, %v1094
        %v5012 = vadd.f32 %v1081, %v1095
        %v5013 = vadd.f32 %v1081, %v1096
        %v5014 = vadd.f32 %v1081, %v1097
        %v5015 = vadd.f32 %v4887, %v4759
        %v5016 = vadd.f32 %v4888, %v4760
        %v5017 = vadd.f32 %v4889, %v4761
        %v5018 = vadd.f32 %v4890, %v4762
        %v5019 = vadd.f32 %v4891, %v4763
        %v5020 = vadd.f32 %v4892, %v4764
        %v5021 = vadd.f32 %v4893, %v4765
        %v5022 = vadd.f32 %v4894, %v4766
        %v5023 = vadd.f32 %v4895, %v4767
        %v5024 = vadd.f32 %v4896, %v4768
        %v5025 = vadd.f32 %v4897, %v4769
        %v5026 = vadd.f32 %v4898, %v4770
        %v5027 = vadd.f32 %v4899, %v4771
        %v5028 = vadd.f32 %v4900, %v4772
        %v5029 = vadd.f32 %v4901, %v4773
        %v5030 = vadd.f32 %v4902, %v4774
        %v5031 = vadd.f32 %v4903, %v4775
        %v5032 = vadd.f32 %v4904, %v4776
        %v5033 = vadd.f32 %v4905, %v4777
        %v5034 = vadd.f32 %v4906, %v4778
        %v5035 = vadd.f32 %v4907, %v4779
        %v5036 = vadd.f32 %v4908, %v4780
        %v5037 = vadd.f32 %v4909, %v4781
        %v5038 = vadd.f32 %v4910, %v4782
        %v5039 = vadd.f32 %v4911, %v4783
        %v5040 = vadd.f32 %v4912, %v4784
        %v5041 = vadd.f32 %v4913, %v4785
        %v5042 = vadd.f32 %v4914, %v4786
        %v5043 = vadd.f32 %v4915, %v4787
        %v5044 = vadd.f32 %v4916, %v4788
        %v5045 = vadd.f32 %v4917, %v4789
        %v5046 = vadd.f32 %v4918, %v4790
        %v5047 = vadd.f32 %v4919, %v4791
        %v5048 = vadd.f32 %v4920, %v4792
        %v5049 = vadd.f32 %v4921, %v4793
        %v5050 = vadd.f32 %v4922, %v4794
        %v5051 = vadd.f32 %v4923, %v4795
        %v5052 = vadd.f32 %v4924, %v4796
        %v5053 = vadd.f32 %v4925, %v4797
        %v5054 = vadd.f32 %v4926, %v4798
        %v5055 = vadd.f32 %v4927, %v4799
        %v5056 = vadd.f32 %v4928, %v4800
        %v5057 = vadd.f32 %v4929, %v4801
        %v5058 = vadd.f32 %v4930, %v4802
        %v5059 = vadd.f32 %v4931, %v4803
        %v5060 = vadd.f32 %v4932, %v4804
        %v5061 = vadd.f32 %v4933, %v4805
        %v5062 = vadd.f32 %v4934, %v4806
        %v5063 = vadd.f32 %v4935, %v4807
        %v5064 = vadd.f32 %v4936, %v4808
        %v5065 = vadd.f32 %v4937, %v4809
        %v5066 = vadd.f32 %v4938, %v4810
        %v5067 = vadd.f32 %v4939, %v4811
        %v5068 = vadd.f32 %v4940, %v4812
        %v5069 = vadd.f32 %v4941, %v4813
        %v5070 = vadd.f32 %v4942, %v4814
        %v5071 = vadd.f32 %v4943, %v4815
        %v5072 = vadd.f32 %v4944, %v4816
        %v5073 = vadd.f32 %v4945, %v4817
        %v5074 = vadd.f32 %v4946, %v4818
        %v5075 = vadd.f32 %v4947, %v4819
        %v5076 = vadd.f32 %v4948, %v4820
        %v5077 = vadd.f32 %v4949, %v4821
        %v5078 = vadd.f32 %v4950, %v4822
        %v5079 = vadd.f32 %v4951, %v4823
        %v5080 = vadd.f32 %v4952, %v4824
        %v5081 = vadd.f32 %v4953, %v4825
        %v5082 = vadd.f32 %v4954, %v4826
        %v5083 = vadd.f32 %v4955, %v4827
        %v5084 = vadd.f32 %v4956, %v4828
        %v5085 = vadd.f32 %v4957, %v4829
        %v5086 = vadd.f32 %v4958, %v4830
        %v5087 = vadd.f32 %v4959, %v4831
        %v5088 = vadd.f32 %v4960, %v4832
        %v5089 = vadd.f32 %v4961, %v4833
        %v5090 = vadd.f32 %v4962, %v4834
        %v5091 = vadd.f32 %v4963, %v4835
        %v5092 = vadd.f32 %v4964, %v4836
        %v5093 = vadd.f32 %v4965, %v4837
        %v5094 = vadd.f32 %v4966, %v4838
        %v5095 = vadd.f32 %v4967, %v4839
        %v5096 = vadd.f32 %v4968, %v4840
        %v5097 = vadd.f32 %v4969, %v4841
        %v5098 = vadd.f32 %v4970, %v4842
        %v5099 = vadd.f32 %v4971, %v4843
        %v5100 = vadd.f32 %v4972, %v4844
        %v5101 = vadd.f32 %v4973, %v4845
        %v5102 = vadd.f32 %v4974, %v4846
        %v5103 = vadd.f32 %v4975, %v4847
        %v5104 = vadd.f32 %v4976, %v4848
        %v5105 = vadd.f32 %v4977, %v4849
        %v5106 = vadd.f32 %v4978, %v4850
        %v5107 = vadd.f32 %v4979, %v4851
        %v5108 = vadd.f32 %v4980, %v4852
        %v5109 = vadd.f32 %v4981, %v4853
        %v5110 = vadd.f32 %v4982, %v4854
        %v5111 = vadd.f32 %v4983, %v4855
        %v5112 = vadd.f32 %v4984, %v4856
        %v5113 = vadd.f32 %v4985, %v4857
        %v5114 = vadd.f32 %v4986, %v4858
        %v5115 = vadd.f32 %v4987, %v4859
        %v5116 = vadd.f32 %v4988, %v4860
        %v5117 = vadd.f32 %v4989, %v4861
        %v5118 = vadd.f32 %v4990, %v4862
        %v5119 = vadd.f32 %v4991, %v4863
        %v5120 = vadd.f32 %v4992, %v4864
        %v5121 = vadd.f32 %v4993, %v4865
        %v5122 = vadd.f32 %v4994, %v4866
        %v5123 = vadd.f32 %v4995, %v4867
        %v5124 = vadd.f32 %v4996, %v4868
        %v5125 = vadd.f32 %v4997, %v4869
        %v5126 = vadd.f32 %v4998, %v4870
        %v5127 = vadd.f32 %v4999, %v4871
        %v5128 = vadd.f32 %v5000, %v4872
        %v5129 = vadd.f32 %v5001, %v4873
        %v5130 = vadd.f32 %v5002, %v4874
        %v5131 = vadd.f32 %v5003, %v4875
        %v5132 = vadd.f32 %v5004, %v4876
        %v5133 = vadd.f32 %v5005, %v4877
        %v5134 = vadd.f32 %v5006, %v4878
        %v5135 = vadd.f32 %v5007, %v4879
        %v5136 = vadd.f32 %v5008, %v4880
        %v5137 = vadd.f32 %v5009, %v4881
        %v5138 = vadd.f32 %v5010, %v4882
        %v5139 = vadd.f32 %v5011, %v4883
        %v5140 = vadd.f32 %v5012, %v4884
        %v5141 = vadd.f32 %v5013, %v4885
        %v5142 = vadd.f32 %v5014, %v4886
        %v5143 = vmul.f32 %v5015, 0.33333334
        %v5144 = vmul.f32 %v5016, 0.33333334
        %v5145 = vmul.f32 %v5017, 0.33333334
        %v5146 = vmul.f32 %v5018, 0.33333334
        %v5147 = vmul.f32 %v5019, 0.33333334
        %v5148 = vmul.f32 %v5020, 0.33333334
        %v5149 = vmul.f32 %v5021, 0.33333334
        %v5150 = vmul.f32 %v5022, 0.33333334
        %v5151 = vmul.f32 %v5023, 0.33333334
        %v5152 = vmul.f32 %v5024, 0.33333334
        %v5153 = vmul.f32 %v5025, 0.33333334
        %v5154 = vmul.f32 %v5026, 0.33333334
        %v5155 = vmul.f32 %v5027, 0.33333334
        %v5156 = vmul.f32 %v5028, 0.33333334
        %v5157 = vmul.f32 %v5029, 0.33333334
        %v5158 = vmul.f32 %v5030, 0.33333334
        %v5159 = vmul.f32 %v5031, 0.33333334
        %v5160 = vmul.f32 %v5032, 0.33333334
        %v5161 = vmul.f32 %v5033, 0.33333334
        %v5162 = vmul.f32 %v5034, 0.33333334
        %v5163 = vmul.f32 %v5035, 0.33333334
        %v5164 = vmul.f32 %v5036, 0.33333334
        %v5165 = vmul.f32 %v5037, 0.33333334
        %v5166 = vmul.f32 %v5038, 0.33333334
        %v5167 = vmul.f32 %v5039, 0.33333334
        %v5168 = vmul.f32 %v5040, 0.33333334
        %v5169 = vmul.f32 %v5041, 0.33333334
        %v5170 = vmul.f32 %v5042, 0.33333334
        %v5171 = vmul.f32 %v5043, 0.33333334
        %v5172 = vmul.f32 %v5044, 0.33333334
        %v5173 = vmul.f32 %v5045, 0.33333334
        %v5174 = vmul.f32 %v5046, 0.33333334
        %v5175 = vmul.f32 %v5047, 0.33333334
        %v5176 = vmul.f32 %v5048, 0.33333334
        %v5177 = vmul.f32 %v5049, 0.33333334
        %v5178 = vmul.f32 %v5050, 0.33333334
        %v5179 = vmul.f32 %v5051, 0.33333334
        %v5180 = vmul.f32 %v5052, 0.33333334
        %v5181 = vmul.f32 %v5053, 0.33333334
        %v5182 = vmul.f32 %v5054, 0.33333334
        %v5183 = vmul.f32 %v5055, 0.33333334
        %v5184 = vmul.f32 %v5056, 0.33333334
        %v5185 = vmul.f32 %v5057, 0.33333334
        %v5186 = vmul.f32 %v5058, 0.33333334
        %v5187 = vmul.f32 %v5059, 0.33333334
        %v5188 = vmul.f32 %v5060, 0.33333334
        %v5189 = vmul.f32 %v5061, 0.33333334
        %v5190 = vmul.f32 %v5062, 0.33333334
        %v5191 = vmul.f32 %v5063, 0.33333334
        %v5192 = vmul.f32 %v5064, 0.33333334
        %v5193 = vmul.f32 %v5065, 0.33333334
        %v5194 = vmul.f32 %v5066, 0.33333334
        %v5195 = vmul.f32 %v5067, 0.33333334
        %v5196 = vmul.f32 %v5068, 0.33333334
        %v5197 = vmul.f32 %v5069, 0.33333334
        %v5198 = vmul.f32 %v5070, 0.33333334
        %v5199 = vmul.f32 %v5071, 0.33333334
        %v5200 = vmul.f32 %v5072, 0.33333334
        %v5201 = vmul.f32 %v5073, 0.33333334
        %v5202 = vmul.f32 %v5074, 0.33333334
        %v5203 = vmul.f32 %v5075, 0.33333334
        %v5204 = vmul.f32 %v5076, 0.33333334
        %v5205 = vmul.f32 %v5077, 0.33333334
        %v5206 = vmul.f32 %v5078, 0.33333334
        %v5207 = vmul.f32 %v5079, 0.33333334
        %v5208 = vmul.f32 %v5080, 0.33333334
        %v5209 = vmul.f32 %v5081, 0.33333334
        %v5210 = vmul.f32 %v5082, 0.33333334
        %v5211 = vmul.f32 %v5083, 0.33333334
        %v5212 = vmul.f32 %v5084, 0.33333334
        %v5213 = vmul.f32 %v5085, 0.33333334
        %v5214 = vmul.f32 %v5086, 0.33333334
        %v5215 = vmul.f32 %v5087, 0.33333334
        %v5216 = vmul.f32 %v5088, 0.33333334
        %v5217 = vmul.f32 %v5089, 0.33333334
        %v5218 = vmul.f32 %v5090, 0.33333334
        %v5219 = vmul.f32 %v5091, 0.33333334
        %v5220 = vmul.f32 %v5092, 0.33333334
        %v5221 = vmul.f32 %v5093, 0.33333334
        %v5222 = vmul.f32 %v5094, 0.33333334
        %v5223 = vmul.f32 %v5095, 0.33333334
        %v5224 = vmul.f32 %v5096, 0.33333334
        %v5225 = vmul.f32 %v5097, 0.33333334
        %v5226 = vmul.f32 %v5098, 0.33333334
        %v5227 = vmul.f32 %v5099, 0.33333334
        %v5228 = vmul.f32 %v5100, 0.33333334
        %v5229 = vmul.f32 %v5101, 0.33333334
        %v5230 = vmul.f32 %v5102, 0.33333334
        %v5231 = vmul.f32 %v5103, 0.33333334
        %v5232 = vmul.f32 %v5104, 0.33333334
        %v5233 = vmul.f32 %v5105, 0.33333334
        %v5234 = vmul.f32 %v5106, 0.33333334
        %v5235 = vmul.f32 %v5107, 0.33333334
        %v5236 = vmul.f32 %v5108, 0.33333334
        %v5237 = vmul.f32 %v5109, 0.33333334
        %v5238 = vmul.f32 %v5110, 0.33333334
        %v5239 = vmul.f32 %v5111, 0.33333334
        %v5240 = vmul.f32 %v5112, 0.33333334
        %v5241 = vmul.f32 %v5113, 0.33333334
        %v5242 = vmul.f32 %v5114, 0.33333334
        %v5243 = vmul.f32 %v5115, 0.33333334
        %v5244 = vmul.f32 %v5116, 0.33333334
        %v5245 = vmul.f32 %v5117, 0.33333334
        %v5246 = vmul.f32 %v5118, 0.33333334
        %v5247 = vmul.f32 %v5119, 0.33333334
        %v5248 = vmul.f32 %v5120, 0.33333334
        %v5249 = vmul.f32 %v5121, 0.33333334
        %v5250 = vmul.f32 %v5122, 0.33333334
        %v5251 = vmul.f32 %v5123, 0.33333334
        %v5252 = vmul.f32 %v5124, 0.33333334
        %v5253 = vmul.f32 %v5125, 0.33333334
        %v5254 = vmul.f32 %v5126, 0.33333334
        %v5255 = vmul.f32 %v5127, 0.33333334
        %v5256 = vmul.f32 %v5128, 0.33333334
        %v5257 = vmul.f32 %v5129, 0.33333334
        %v5258 = vmul.f32 %v5130, 0.33333334
        %v5259 = vmul.f32 %v5131, 0.33333334
        %v5260 = vmul.f32 %v5132, 0.33333334
        %v5261 = vmul.f32 %v5133, 0.33333334
        %v5262 = vmul.f32 %v5134, 0.33333334
        %v5263 = vmul.f32 %v5135, 0.33333334
        %v5264 = vmul.f32 %v5136, 0.33333334
        %v5265 = vmul.f32 %v5137, 0.33333334
        %v5266 = vmul.f32 %v5138, 0.33333334
        %v5267 = vmul.f32 %v5139, 0.33333334
        %v5268 = vmul.f32 %v5140, 0.33333334
        %v5269 = vmul.f32 %v5141, 0.33333334
        %v5270 = vmul.f32 %v5142, 0.33333334
        %vm5271 = vcmask 7168
        %5272 = vst.msk [vmem:[%s572] sm:$0xff] %vm5271, %v5143
        %5273 = vst.msk [vmem:[%s572 + $0x8] sm:$0xff] %vm5271, %v5144
        %5274 = vst.msk [vmem:[%s572 + $0x10] sm:$0xff] %vm5271, %v5145
        %5275 = vst.msk [vmem:[%s572 + $0x18] sm:$0xff] %vm5271, %v5146
        %5276 = vst.msk [vmem:[%s572 + $0x20] sm:$0xff] %vm5271, %v5147
        %5277 = vst.msk [vmem:[%s572 + $0x28] sm:$0xff] %vm5271, %v5148
        %5278 = vst.msk [vmem:[%s572 + $0x30] sm:$0xff] %vm5271, %v5149
        %5279 = vst.msk [vmem:[%s572 + $0x38] sm:$0xff] %vm5271, %v5150
        %5280 = vst.msk [vmem:[%s572 + $0x40] sm:$0xff] %vm5271, %v5151
        %5281 = vst.msk [vmem:[%s572 + $0x48] sm:$0xff] %vm5271, %v5152
        %5282 = vst.msk [vmem:[%s572 + $0x50] sm:$0xff] %vm5271, %v5153
        %5283 = vst.msk [vmem:[%s572 + $0x58] sm:$0xff] %vm5271, %v5154
        %5284 = vst.msk [vmem:[%s572 + $0x60] sm:$0xff] %vm5271, %v5155
        %5285 = vst.msk [vmem:[%s572 + $0x68] sm:$0xff] %vm5271, %v5156
        %5286 = vst.msk [vmem:[%s572 + $0x70] sm:$0xff] %vm5271, %v5157
        %5287 = vst.msk [vmem:[%s572 + $0x78] sm:$0xff] %vm5271, %v5158
        %5288 = vst.msk [vmem:[%s572 + $0x80] sm:$0xff] %vm5271, %v5159
        %5289 = vst.msk [vmem:[%s572 + $0x88] sm:$0xff] %vm5271, %v5160
        %5290 = vst.msk [vmem:[%s572 + $0x90] sm:$0xff] %vm5271, %v5161
        %5291 = vst.msk [vmem:[%s572 + $0x98] sm:$0xff] %vm5271, %v5162
        %5292 = vst.msk [vmem:[%s572 + $0xa0] sm:$0xff] %vm5271, %v5163
        %5293 = vst.msk [vmem:[%s572 + $0xa8] sm:$0xff] %vm5271, %v5164
        %5294 = vst.msk [vmem:[%s572 + $0xb0] sm:$0xff] %vm5271, %v5165
        %5295 = vst.msk [vmem:[%s572 + $0xb8] sm:$0xff] %vm5271, %v5166
        %5296 = vst.msk [vmem:[%s572 + $0xc0] sm:$0xff] %vm5271, %v5167
        %5297 = vst.msk [vmem:[%s572 + $0xc8] sm:$0xff] %vm5271, %v5168
        %5298 = vst.msk [vmem:[%s572 + $0xd0] sm:$0xff] %vm5271, %v5169
        %5299 = vst.msk [vmem:[%s572 + $0xd8] sm:$0xff] %vm5271, %v5170
        %5300 = vst.msk [vmem:[%s572 + $0xe0] sm:$0xff] %vm5271, %v5171
        %5301 = vst.msk [vmem:[%s572 + $0xe8] sm:$0xff] %vm5271, %v5172
        %5302 = vst.msk [vmem:[%s572 + $0xf0] sm:$0xff] %vm5271, %v5173
        %5303 = vst.msk [vmem:[%s572 + $0xf8] sm:$0xff] %vm5271, %v5174
        %5304 = vst.msk [vmem:[%s572 + $0x100] sm:$0xff] %vm5271, %v5175
        %5305 = vst.msk [vmem:[%s572 + $0x108] sm:$0xff] %vm5271, %v5176
        %5306 = vst.msk [vmem:[%s572 + $0x110] sm:$0xff] %vm5271, %v5177
        %5307 = vst.msk [vmem:[%s572 + $0x118] sm:$0xff] %vm5271, %v5178
        %5308 = vst.msk [vmem:[%s572 + $0x120] sm:$0xff] %vm5271, %v5179
        %5309 = vst.msk [vmem:[%s572 + $0x128] sm:$0xff] %vm5271, %v5180
        %5310 = vst.msk [vmem:[%s572 + $0x130] sm:$0xff] %vm5271, %v5181
        %5311 = vst.msk [vmem:[%s572 + $0x138] sm:$0xff] %vm5271, %v5182
        %5312 = vst.msk [vmem:[%s572 + $0x140] sm:$0xff] %vm5271, %v5183
        %5313 = vst.msk [vmem:[%s572 + $0x148] sm:$0xff] %vm5271, %v5184
        %5314 = vst.msk [vmem:[%s572 + $0x150] sm:$0xff] %vm5271, %v5185
        %5315 = vst.msk [vmem:[%s572 + $0x158] sm:$0xff] %vm5271, %v5186
        %5316 = vst.msk [vmem:[%s572 + $0x160] sm:$0xff] %vm5271, %v5187
        %5317 = vst.msk [vmem:[%s572 + $0x168] sm:$0xff] %vm5271, %v5188
        %5318 = vst.msk [vmem:[%s572 + $0x170] sm:$0xff] %vm5271, %v5189
        %5319 = vst.msk [vmem:[%s572 + $0x178] sm:$0xff] %vm5271, %v5190
        %5320 = vst.msk [vmem:[%s572 + $0x180] sm:$0xff] %vm5271, %v5191
        %5321 = vst.msk [vmem:[%s572 + $0x188] sm:$0xff] %vm5271, %v5192
        %5322 = vst.msk [vmem:[%s572 + $0x190] sm:$0xff] %vm5271, %v5193
        %5323 = vst.msk [vmem:[%s572 + $0x198] sm:$0xff] %vm5271, %v5194
        %5324 = vst.msk [vmem:[%s572 + $0x1a0] sm:$0xff] %vm5271, %v5195
        %5325 = vst.msk [vmem:[%s572 + $0x1a8] sm:$0xff] %vm5271, %v5196
        %5326 = vst.msk [vmem:[%s572 + $0x1b0] sm:$0xff] %vm5271, %v5197
        %5327 = vst.msk [vmem:[%s572 + $0x1b8] sm:$0xff] %vm5271, %v5198
        %5328 = vst.msk [vmem:[%s572 + $0x1c0] sm:$0xff] %vm5271, %v5199
        %5329 = vst.msk [vmem:[%s572 + $0x1c8] sm:$0xff] %vm5271, %v5200
        %5330 = vst.msk [vmem:[%s572 + $0x1d0] sm:$0xff] %vm5271, %v5201
        %5331 = vst.msk [vmem:[%s572 + $0x1d8] sm:$0xff] %vm5271, %v5202
        %5332 = vst.msk [vmem:[%s572 + $0x1e0] sm:$0xff] %vm5271, %v5203
        %5333 = vst.msk [vmem:[%s572 + $0x1e8] sm:$0xff] %vm5271, %v5204
        %5334 = vst.msk [vmem:[%s572 + $0x1f0] sm:$0xff] %vm5271, %v5205
        %5335 = vst.msk [vmem:[%s572 + $0x1f8] sm:$0xff] %vm5271, %v5206
        %5336 = vst.msk [vmem:[%s572 + $0x200] sm:$0xff] %vm5271, %v5207
        %5337 = vst.msk [vmem:[%s572 + $0x208] sm:$0xff] %vm5271, %v5208
        %5338 = vst.msk [vmem:[%s572 + $0x210] sm:$0xff] %vm5271, %v5209
        %5339 = vst.msk [vmem:[%s572 + $0x218] sm:$0xff] %vm5271, %v5210
        %5340 = vst.msk [vmem:[%s572 + $0x220] sm:$0xff] %vm5271, %v5211
        %5341 = vst.msk [vmem:[%s572 + $0x228] sm:$0xff] %vm5271, %v5212
        %5342 = vst.msk [vmem:[%s572 + $0x230] sm:$0xff] %vm5271, %v5213
        %5343 = vst.msk [vmem:[%s572 + $0x238] sm:$0xff] %vm5271, %v5214
        %5344 = vst.msk [vmem:[%s572 + $0x240] sm:$0xff] %vm5271, %v5215
        %5345 = vst.msk [vmem:[%s572 + $0x248] sm:$0xff] %vm5271, %v5216
        %5346 = vst.msk [vmem:[%s572 + $0x250] sm:$0xff] %vm5271, %v5217
        %5347 = vst.msk [vmem:[%s572 + $0x258] sm:$0xff] %vm5271, %v5218
        %5348 = vst.msk [vmem:[%s572 + $0x260] sm:$0xff] %vm5271, %v5219
        %5349 = vst.msk [vmem:[%s572 + $0x268] sm:$0xff] %vm5271, %v5220
        %5350 = vst.msk [vmem:[%s572 + $0x270] sm:$0xff] %vm5271, %v5221
        %5351 = vst.msk [vmem:[%s572 + $0x278] sm:$0xff] %vm5271, %v5222
        %5352 = vst.msk [vmem:[%s572 + $0x280] sm:$0xff] %vm5271, %v5223
        %5353 = vst.msk [vmem:[%s572 + $0x288] sm:$0xff] %vm5271, %v5224
        %5354 = vst.msk [vmem:[%s572 + $0x290] sm:$0xff] %vm5271, %v5225
        %5355 = vst.msk [vmem:[%s572 + $0x298] sm:$0xff] %vm5271, %v5226
        %5356 = vst.msk [vmem:[%s572 + $0x2a0] sm:$0xff] %vm5271, %v5227
        %5357 = vst.msk [vmem:[%s572 + $0x2a8] sm:$0xff] %vm5271, %v5228
        %5358 = vst.msk [vmem:[%s572 + $0x2b0] sm:$0xff] %vm5271, %v5229
        %5359 = vst.msk [vmem:[%s572 + $0x2b8] sm:$0xff] %vm5271, %v5230
        %5360 = vst.msk [vmem:[%s572 + $0x2c0] sm:$0xff] %vm5271, %v5231
        %5361 = vst.msk [vmem:[%s572 + $0x2c8] sm:$0xff] %vm5271, %v5232
        %5362 = vst.msk [vmem:[%s572 + $0x2d0] sm:$0xff] %vm5271, %v5233
        %5363 = vst.msk [vmem:[%s572 + $0x2d8] sm:$0xff] %vm5271, %v5234
        %5364 = vst.msk [vmem:[%s572 + $0x2e0] sm:$0xff] %vm5271, %v5235
        %5365 = vst.msk [vmem:[%s572 + $0x2e8] sm:$0xff] %vm5271, %v5236
        %5366 = vst.msk [vmem:[%s572 + $0x2f0] sm:$0xff] %vm5271, %v5237
        %5367 = vst.msk [vmem:[%s572 + $0x2f8] sm:$0xff] %vm5271, %v5238
        %5368 = vst.msk [vmem:[%s572 + $0x300] sm:$0xff] %vm5271, %v5239
        %5369 = vst.msk [vmem:[%s572 + $0x308] sm:$0xff] %vm5271, %v5240
        %5370 = vst.msk [vmem:[%s572 + $0x310] sm:$0xff] %vm5271, %v5241
        %5371 = vst.msk [vmem:[%s572 + $0x318] sm:$0xff] %vm5271, %v5242
        %5372 = vst.msk [vmem:[%s572 + $0x320] sm:$0xff] %vm5271, %v5243
        %5373 = vst.msk [vmem:[%s572 + $0x328] sm:$0xff] %vm5271, %v5244
        %5374 = vst.msk [vmem:[%s572 + $0x330] sm:$0xff] %vm5271, %v5245
        %5375 = vst.msk [vmem:[%s572 + $0x338] sm:$0xff] %vm5271, %v5246
        %5376 = vst.msk [vmem:[%s572 + $0x340] sm:$0xff] %vm5271, %v5247
        %5377 = vst.msk [vmem:[%s572 + $0x348] sm:$0xff] %vm5271, %v5248
        %5378 = vst.msk [vmem:[%s572 + $0x350] sm:$0xff] %vm5271, %v5249
        %5379 = vst.msk [vmem:[%s572 + $0x358] sm:$0xff] %vm5271, %v5250
        %5380 = vst.msk [vmem:[%s572 + $0x360] sm:$0xff] %vm5271, %v5251
        %5381 = vst.msk [vmem:[%s572 + $0x368] sm:$0xff] %vm5271, %v5252
        %5382 = vst.msk [vmem:[%s572 + $0x370] sm:$0xff] %vm5271, %v5253
        %5383 = vst.msk [vmem:[%s572 + $0x378] sm:$0xff] %vm5271, %v5254
        %5384 = vst.msk [vmem:[%s572 + $0x380] sm:$0xff] %vm5271, %v5255
        %5385 = vst.msk [vmem:[%s572 + $0x388] sm:$0xff] %vm5271, %v5256
        %5386 = vst.msk [vmem:[%s572 + $0x390] sm:$0xff] %vm5271, %v5257
        %5387 = vst.msk [vmem:[%s572 + $0x398] sm:$0xff] %vm5271, %v5258
        %5388 = vst.msk [vmem:[%s572 + $0x3a0] sm:$0xff] %vm5271, %v5259
        %5389 = vst.msk [vmem:[%s572 + $0x3a8] sm:$0xff] %vm5271, %v5260
        %5390 = vst.msk [vmem:[%s572 + $0x3b0] sm:$0xff] %vm5271, %v5261
        %5391 = vst.msk [vmem:[%s572 + $0x3b8] sm:$0xff] %vm5271, %v5262
        %5392 = vst.msk [vmem:[%s572 + $0x3c0] sm:$0xff] %vm5271, %v5263
        %5393 = vst.msk [vmem:[%s572 + $0x3c8] sm:$0xff] %vm5271, %v5264
        %5394 = vst.msk [vmem:[%s572 + $0x3d0] sm:$0xff] %vm5271, %v5265
        %5395 = vst.msk [vmem:[%s572 + $0x3d8] sm:$0xff] %vm5271, %v5266
        %5396 = vst.msk [vmem:[%s572 + $0x3e0] sm:$0xff] %vm5271, %v5267
        %5397 = vst.msk [vmem:[%s572 + $0x3e8] sm:$0xff] %vm5271, %v5268
        %5398 = vst.msk [vmem:[%s572 + $0x3f0] sm:$0xff] %vm5271, %v5269
        %5399 = vst.msk [vmem:[%s572 + $0x3f8] sm:$0xff] %vm5271, %v5270
        %p5400 = scmp.lt.s32.totalorder %s32, 1
        %s5401 = scalar_select %p5400, %s32, 1
        %p5402 = scmp.lt.s32.totalorder %s33, 0
        %s5403 = scalar_select %p5402, %s33, 0
        %s5404 = smul.addr %s5403, 128
        %s5405 = smul.addr %s5401, 128
        %s5406 = sadd.s32 %s5404, %s5405
        %s5407 = smul.addr %s5406, 8
        %s5408 = scalar_lea.vmem %s12, %s5407
        // Predicated region
        $region85: #{tpu_custom_call.1} parent=67 // pred_check
          %p5409 = pneg %p336
        $region86: #{tpu_custom_call.1} parent=67 // pred_check_branch
          %5411 = sbr.rel (%p5409) target = $region88
        $region87: #{tpu_custom_call.1} parent=67 // pred_region
          _
        $region88: #{tpu_custom_call.1} parent=67 // pred_fallthru
          _
      $region68: #{tpu_custom_call.1} parent=5 // pred_fallthru
        _
      %p5412 = scmp.le.s32.totalorder 2, %s23
      // Predicated region
      $region89: #{tpu_custom_call.1} parent=5 // pred_check
        %p5413 = pneg %p5412
      $region90: #{tpu_custom_call.1} parent=5 // pred_check_branch
        %5415 = sbr.rel (%p5413) target = $region92
      $region91: #{tpu_custom_call.1} parent=5 // pred_region
        %s5416 = ssub.s32 %s23, 2
        // Predicated region
        $region93: #{tpu_custom_call.1} parent=91 // pred_check
          %p5417 = pneg %p342
        $region94: #{tpu_custom_call.1} parent=91 // pred_check_branch
          %5419 = sbr.rel (%p5417) target = $region96
        $region95: #{tpu_custom_call.1} parent=91 // pred_region
          %p5420 = scmp.lt.s32.totalorder %s34, 1
          %s5421 = scalar_select %p5420, %s34, 1
          %p5422 = scmp.lt.s32.totalorder %s35, 0
          %s5423 = scalar_select %p5422, %s35, 0
          %s5424 = smul.addr %s5423, 128
          %s5425 = smul.addr %s5421, 128
          %s5426 = sadd.s32 %s5424, %s5425
          %s5427 = smul.addr %s5426, 8
          %s5428 = scalar_lea.vmem %s12, %s5427
        $region96: #{tpu_custom_call.1} parent=91 // pred_fallthru
          _
      $region92: #{tpu_custom_call.1} parent=5 // pred_fallthru
        _
    $region6: #{tpu_custom_call.1} parent=1 // loop_footer
      %s27 = sadd.s32 1, %s23
    $region7: #{tpu_custom_call.1} parent=1 // loop_footer_branch
      %22 = sbr.rel target = $region3
    $region8: #{tpu_custom_call.1} parent=1 // loop_exit
      _
    %5429 = vsyncpa [#allocation4], 1
    %s5430 = scalar_lea.sflag [#allocation4], 1
    %5431 = vsyncpa %s5430, 1
    %5432 = vsyncpa [#allocation6], 1
    %5433 = vsyncpa [#allocation9], 1

</llo_original>
